<compile_context>
chip_gen: v7x
topology: tpu7x:2x2x1
jax: 0.10.0
libtpu: 0.0.40
codegen_flags: <defaults>
</compile_context>

<pallas_src>
import jax
import jax.numpy as jnp
from jax import lax
from jax.experimental import pallas as pl
from jax.experimental.pallas import tpu as pltpu  # noqa: F401

# ---- synthetic "AutoModel" config (small) -----------------------------------
VOCAB      = 100
TYPE_VOCAB = 2
MAX_POS    = 16
HIDDEN     = 32
HEADS      = 2
HEAD_DIM   = HIDDEN // HEADS
INTER      = 64
LAYERS     = 2
EPS        = 1e-12

BATCH = 2
SEQ   = 8


# ------------------------------ shared math ----------------------------------
def _layernorm(x, g, b):
    mu  = jnp.mean(x, axis=-1, keepdims=True)
    var = jnp.mean(jnp.square(x - mu), axis=-1, keepdims=True)
    return (x - mu) * lax.rsqrt(var + EPS) * g + b


# ------------------------------ fused Pallas kernel ---------------------------
def legal_fused_kernel(emb_ref, bias_ref, sel_ref, eg_ref, eb_ref,
                       wqh_ref, bqh_ref, wkh_ref, bkh_ref, wvh_ref, bvh_ref,
                       woh_ref, bo_ref, ln1g_ref, ln1b_ref,
                       w1_ref, b1_ref, w2_ref, b2_ref, ln2g_ref, ln2b_ref,
                       wp_ref, bp_ref, wc_ref, bc_ref,
                       score_ref):
    # emb_ref : (B*S, H)   flattened token embeddings
    # bias_ref: (B*S, B*S) additive attention bias: BERT's -1e4 padding bias on the
    #           in-batch block diagonal, -1e9 for cross-batch keys (exp() underflows to 0).
    # sel_ref : (B, B*S)   one-hot [CLS]-row selector (row b picks flattened row b*S).
    n_layer = w1_ref.shape[0]
    n_head  = wqh_ref.shape[0] // n_layer

    bias = bias_ref[...]                                           # (B*S, B*S)
    x = _layernorm(emb_ref[...], eg_ref[...], eb_ref[...])         # (B*S, H)

    for l in range(n_layer):                                       # static unroll (2)
        attn = None
        for h in range(n_head):                                    # static unroll (2)
            i = l * n_head + h
            # Head split lives in the (pre-sliced) weights -> no lane slicing of activations.
            # 1/sqrt(dh) is already folded into wqh/bqh at pack time.
            qh = jnp.dot(x, wqh_ref[i], preferred_element_type=jnp.float32) + bqh_ref[i]
            kh = jnp.dot(x, wkh_ref[i], preferred_element_type=jnp.float32) + bkh_ref[i]
            vh = jnp.dot(x, wvh_ref[i], preferred_element_type=jnp.float32) + bvh_ref[i]
            # Scores over the full (B*S, B*S) slab; cross-batch entries killed by the bias.
            s = lax.dot_general(qh, kh, (((1,), (1,)), ((), ())),
                                preferred_element_type=jnp.float32) + bias
            m = jnp.max(s, axis=-1, keepdims=True)
            p = jnp.exp(s - m)
            p = p * pl.reciprocal(jnp.sum(p, axis=-1, keepdims=True), approx=True)
            ctx  = jnp.dot(p, vh, preferred_element_type=jnp.float32)            # (B*S, dh)
            part = jnp.dot(ctx, woh_ref[i], preferred_element_type=jnp.float32)  # (B*S, H)
            attn = part if attn is None else attn + part
        x = _layernorm(x + attn + bo_ref[l], ln1g_ref[l], ln1b_ref[l])

        hdn = jnp.dot(x, w1_ref[l], preferred_element_type=jnp.float32) + b1_ref[l]
        # TODO(synk): HF BERT default is exact erf-GELU; tanh-approx GELU used here (EUP friendly).
        hdn = jax.nn.gelu(hdn)
        hdn = jnp.dot(hdn, w2_ref[l], preferred_element_type=jnp.float32) + b2_ref[l]
        x = _layernorm(x + hdn, ln2g_ref[l], ln2b_ref[l])

    # pooler on the [CLS] rows: one-hot selector matmul (MXU) instead of a sublane concat
    cls = jnp.dot(sel_ref[...], x, preferred_element_type=jnp.float32)            # (B, H)
    pooled = jnp.tanh(jnp.dot(cls, wp_ref[...], preferred_element_type=jnp.float32)
                      + bp_ref[...])
    # classifier Linear(H, 1) as a lane reduction (avoid an N=1 MXU matmul)
    logit = jnp.sum(pooled * wc_ref[...], axis=-1, keepdims=True) + bc_ref[...]   # (B, 1)
    score_ref[...] = jax.nn.sigmoid(logit)


# ------------------------------ weight packing --------------------------------
def pack_params(p):
    layers = p["layers"]
    st = lambda name: jnp.stack([lp[name] for lp in layers])            # (L, ...)
    scale = 1.0 / (HEAD_DIM ** 0.5)

    def head_w(w):   # (L, H, H) -> (L*HEADS, H, dh): per-head column slices of W
        return (w.reshape(LAYERS, HIDDEN, HEADS, HEAD_DIM)
                 .transpose(0, 2, 1, 3)
                 .reshape(LAYERS * HEADS, HIDDEN, HEAD_DIM))

    def head_b(b):   # (L, H) -> (L*HEADS, 1, dh)
        return b.reshape(LAYERS * HEADS, 1, HEAD_DIM)

    return dict(
        eg=p["emb_ln_g"].reshape(1, HIDDEN), eb=p["emb_ln_b"].reshape(1, HIDDEN),
        # softmax scale folded into Q projection (weights and bias)
        wqh=head_w(st("wq")) * scale, bqh=head_b(st("bq")) * scale,
        wkh=head_w(st("wk")), bkh=head_b(st("bk")),
        wvh=head_w(st("wv")), bvh=head_b(st("bv")),
        woh=st("wo").reshape(LAYERS * HEADS, HEAD_DIM, HIDDEN),          # per-head row slices
        bo=st("bo").reshape(LAYERS, 1, HIDDEN),
        ln1g=st("ln1g").reshape(LAYERS, 1, HIDDEN),
        ln1b=st("ln1b").reshape(LAYERS, 1, HIDDEN),
        w1=st("w1"), b1=st("b1").reshape(LAYERS, 1, INTER),
        w2=st("w2"), b2=st("b2").reshape(LAYERS, 1, HIDDEN),
        ln2g=st("ln2g").reshape(LAYERS, 1, HIDDEN),
        ln2b=st("ln2b").reshape(LAYERS, 1, HIDDEN),
        wp=p["pool_w"], bp=p["pool_b"].reshape(1, HIDDEN),
        wc=p["cls_w"].reshape(1, HIDDEN), bc=p["cls_b"].reshape(1, 1),
    )


# ------------------------------ LegalModel.forward ----------------------------
def legal_model_forward(params, input_ids, attention_mask, token_type_ids, label=None):
    B, S = input_ids.shape
    pk = pack_params(params)    # trace-time weight packing (fused by XLA under jit)

    # Embedding lookups are gather glue (plain JAX); everything downstream is Pallas.
    emb = (params["word_emb"][input_ids]
           + params["pos_emb"][jnp.arange(S)][None, :, :]
           + params["type_emb"][token_type_ids])                         # (B, S, H)
    emb2 = emb.reshape(B * S, HIDDEN).astype(jnp.float32)

    # Attention bias hoisted out of the kernel, as a block-diagonal (B*S, B*S) slab:
    # BERT's (1 - mask) * -1e4 in-batch, -1e9 across batches (=> exactly 0 after softmax).
    key_bias   = (1.0 - attention_mask.astype(jnp.float32)) * -1e4       # (B, S)
    same_batch = jnp.eye(B, dtype=jnp.bool_)[:, None, :, None]           # (B,1,B,1)
    bias = jnp.where(same_batch, key_bias[None, None, :, :], -1e9)       # (B,1,B,S)
    bias = jnp.broadcast_to(bias, (B, S, B, S)).reshape(B * S, B * S)

    # One-hot [CLS]-row selector: row b picks flattened row b*S (MXU gather in-kernel).
    sel = jax.nn.one_hot(jnp.arange(B) * S, B * S, dtype=jnp.float32)    # (B, B*S)

    args = (emb2, bias, sel, pk["eg"], pk["eb"],
            pk["wqh"], pk["bqh"], pk["wkh"], pk["bkh"], pk["wvh"], pk["bvh"],
            pk["woh"], pk["bo"], pk["ln1g"], pk["ln1b"],
            pk["w1"], pk["b1"], pk["w2"], pk["b2"], pk["ln2g"], pk["ln2b"],
            pk["wp"], pk["bp"], pk["wc"], pk["bc"])

    # Single invocation, no grid: the whole working set (~80 KB) stays VMEM-resident.
    score = pl.pallas_call(
        legal_fused_kernel,
        out_shape=jax.ShapeDtypeStruct((B, 1), jnp.float32),
    )(*args)

    return score[:, 0], label                 # == torch.sigmoid(logits).squeeze(-1)


# ------------------------------ pure-JAX reference ----------------------------
def legal_model_reference(params, input_ids, attention_mask, token_type_ids):
    B, S = input_ids.shape
    emb = (params["word_emb"][input_ids]
           + params["pos_emb"][jnp.arange(S)][None, :, :]
           + params["type_emb"][token_type_ids])
    x = _layernorm(emb, params["emb_ln_g"], params["emb_ln_b"])
    bias = ((1.0 - attention_mask.astype(jnp.float32)) * -1e4)[:, None, None, :]
    for lp in params["layers"]:
        def split(t):
            return t.reshape(B, S, HEADS, HEAD_DIM).transpose(0, 2, 1, 3)
        q = split(x @ lp["wq"] + lp["bq"])
        k = split(x @ lp["wk"] + lp["bk"])
        v = split(x @ lp["wv"] + lp["bv"])
        s = jnp.einsum('bhqd,bhkd->bhqk', q, k) / (HEAD_DIM ** 0.5) + bias
        p = jax.nn.softmax(s, axis=-1)
        ctx = jnp.einsum('bhqk,bhkd->bhqd', p, v).transpose(0, 2, 1, 3).reshape(B, S, HIDDEN)
        x = _layernorm(x + ctx @ lp["wo"] + lp["bo"], lp["ln1g"], lp["ln1b"])
        hdn = jax.nn.gelu(x @ lp["w1"] + lp["b1"])
        x = _layernorm(x + hdn @ lp["w2"] + lp["b2"], lp["ln2g"], lp["ln2b"])
    pooled = jnp.tanh(x[:, 0, :] @ params["pool_w"] + params["pool_b"])
    logits = pooled @ params["cls_w"] + params["cls_b"]
    return jax.nn.sigmoid(logits)[:, 0]


# ------------------------------ parameters ------------------------------------
def init_params(key):
    keys = iter(jax.random.split(key, 64))

    def nrm(shape):
        return jax.random.normal(next(keys), shape, jnp.float32) * 0.02

    params = {
        "word_emb": nrm((VOCAB, HIDDEN)),
        "pos_emb":  nrm((MAX_POS, HIDDEN)),
        "type_emb": nrm((TYPE_VOCAB, HIDDEN)),
        "emb_ln_g": jnp.ones((HIDDEN,), jnp.float32),
        "emb_ln_b": jnp.zeros((HIDDEN,), jnp.float32),
        "layers": [],
        "pool_w": nrm((HIDDEN, HIDDEN)),
        "pool_b": jnp.zeros((HIDDEN,), jnp.float32),
        "cls_w":  nrm((HIDDEN, 1)),        # nn.Linear(hidden_size, 1) weight^T
        "cls_b":  jnp.zeros((1,), jnp.float32),
    }
    for _ in range(LAYERS):
        params["layers"].append({
            "wq": nrm((HIDDEN, HIDDEN)), "bq": jnp.zeros((HIDDEN,), jnp.float32),
            "wk": nrm((HIDDEN, HIDDEN)), "bk": jnp.zeros((HIDDEN,), jnp.float32),
            "wv": nrm((HIDDEN, HIDDEN)), "bv": jnp.zeros((HIDDEN,), jnp.float32),
            "wo": nrm((HIDDEN, HIDDEN)), "bo": jnp.zeros((HIDDEN,), jnp.float32),
            "ln1g": jnp.ones((HIDDEN,), jnp.float32),
            "ln1b": jnp.zeros((HIDDEN,), jnp.float32),
            "w1": nrm((HIDDEN, INTER)),  "b1": jnp.zeros((INTER,), jnp.float32),
            "w2": nrm((INTER, HIDDEN)),  "b2": jnp.zeros((HIDDEN,), jnp.float32),
            "ln2g": jnp.ones((HIDDEN,), jnp.float32),
            "ln2b": jnp.zeros((HIDDEN,), jnp.float32),
        })
    return params


# ------------------------------ main -------------------------------------------
if __name__ == "__main__":
    key = jax.random.PRNGKey(0)
    k_p, k_ids, k_tt = jax.random.split(key, 3)

    params = init_params(k_p)

    input_ids      = jax.random.randint(k_ids, (BATCH, SEQ), 0, VOCAB, dtype=jnp.int32)
    attention_mask = jnp.ones((BATCH, SEQ), dtype=jnp.int32).at[1, SEQ - 2:].set(0)
    token_type_ids = jax.random.randint(k_tt, (BATCH, SEQ), 0, TYPE_VOCAB, dtype=jnp.int32)
    label          = jnp.array([1.0, 0.0], dtype=jnp.float32)

    fwd = jax.jit(legal_model_forward)
    score, out_label = fwd(params, input_ids, attention_mask, token_type_ids, label)
    score = jax.block_until_ready(score)
    assert score.shape == (BATCH,)

    # sanity check against a pure-JAX reference of the same synthetic encoder
    ref = jax.block_until_ready(
        legal_model_reference(params, input_ids, attention_mask, token_type_ids))
    assert jnp.allclose(score, ref, atol=5e-3), (score, ref)

    print("KERNEL_OK")
</pallas_src>

<mosaic_0001>
module attributes {stable_mosaic.version = 11 : i64} {
  func.func @legal_fused_kernel(%arg0: memref<16x32xf32, #tpu.memory_space<vmem>>, %arg1: memref<16x16xf32, #tpu.memory_space<vmem>>, %arg2: memref<2x16xf32, #tpu.memory_space<vmem>>, %arg3: memref<1x32xf32, #tpu.memory_space<vmem>>, %arg4: memref<1x32xf32, #tpu.memory_space<vmem>>, %arg5: memref<4x32x16xf32, #tpu.memory_space<vmem>>, %arg6: memref<4x1x16xf32, #tpu.memory_space<vmem>>, %arg7: memref<4x32x16xf32, #tpu.memory_space<vmem>>, %arg8: memref<4x1x16xf32, #tpu.memory_space<vmem>>, %arg9: memref<4x32x16xf32, #tpu.memory_space<vmem>>, %arg10: memref<4x1x16xf32, #tpu.memory_space<vmem>>, %arg11: memref<4x16x32xf32, #tpu.memory_space<vmem>>, %arg12: memref<2x1x32xf32, #tpu.memory_space<vmem>>, %arg13: memref<2x1x32xf32, #tpu.memory_space<vmem>>, %arg14: memref<2x1x32xf32, #tpu.memory_space<vmem>>, %arg15: memref<2x32x64xf32, #tpu.memory_space<vmem>>, %arg16: memref<2x1x64xf32, #tpu.memory_space<vmem>>, %arg17: memref<2x64x32xf32, #tpu.memory_space<vmem>>, %arg18: memref<2x1x32xf32, #tpu.memory_space<vmem>>, %arg19: memref<2x1x32xf32, #tpu.memory_space<vmem>>, %arg20: memref<2x1x32xf32, #tpu.memory_space<vmem>>, %arg21: memref<32x32xf32, #tpu.memory_space<vmem>>, %arg22: memref<1x32xf32, #tpu.memory_space<vmem>>, %arg23: memref<1x32xf32, #tpu.memory_space<vmem>>, %arg24: memref<1x1xf32, #tpu.memory_space<vmem>>, %arg25: memref<2x1xf32, #tpu.memory_space<vmem>>) attributes {dimension_semantics = [], scalar_prefetch = 0 : i64, scratch_operands = 0 : i64, tpu.core_type = #tpu.core_type<tc>} {
    %c0 = arith.constant 0 : index
    %c0_0 = arith.constant 0 : index
    %0 = vector.load %arg1[%c0, %c0_0] : memref<16x16xf32, #tpu.memory_space<vmem>>, vector<16x16xf32>
    %c0_1 = arith.constant 0 : index
    %c0_2 = arith.constant 0 : index
    %1 = vector.load %arg0[%c0_1, %c0_2] : memref<16x32xf32, #tpu.memory_space<vmem>>, vector<16x32xf32>
    %c0_3 = arith.constant 0 : index
    %c0_4 = arith.constant 0 : index
    %2 = vector.load %arg3[%c0_3, %c0_4] : memref<1x32xf32, #tpu.memory_space<vmem>>, vector<1x32xf32>
    %c0_5 = arith.constant 0 : index
    %c0_6 = arith.constant 0 : index
    %3 = vector.load %arg4[%c0_5, %c0_6] : memref<1x32xf32, #tpu.memory_space<vmem>>, vector<1x32xf32>
    %cst = arith.constant dense<0.000000e+00> : vector<16xf32>
    %4 = vector.multi_reduction <add>, %1, %cst [1] : vector<16x32xf32> to vector<16xf32>
    %5 = vector.shape_cast %4 : vector<16xf32> to vector<16x1xf32>
    %cst_7 = arith.constant 3.200000e+01 : f32
    %6 = vector.broadcast %cst_7 : f32 to vector<16x1xf32>
    %7 = arith.divf %5, %6 : vector<16x1xf32>
    %8 = vector.broadcast %7 : vector<16x1xf32> to vector<16x32xf32>
    %9 = arith.subf %1, %8 : vector<16x32xf32>
    %10 = arith.mulf %9, %9 : vector<16x32xf32>
    %cst_8 = arith.constant dense<0.000000e+00> : vector<16xf32>
    %11 = vector.multi_reduction <add>, %10, %cst_8 [1] : vector<16x32xf32> to vector<16xf32>
    %12 = vector.shape_cast %11 : vector<16xf32> to vector<16x1xf32>
    %cst_9 = arith.constant 3.200000e+01 : f32
    %13 = vector.broadcast %cst_9 : f32 to vector<16x1xf32>
    %14 = arith.divf %12, %13 : vector<16x1xf32>
    %15 = vector.broadcast %7 : vector<16x1xf32> to vector<16x32xf32>
    %16 = arith.subf %1, %15 : vector<16x32xf32>
    %cst_10 = arith.constant 9.99999996E-13 : f32
    %17 = vector.broadcast %cst_10 : f32 to vector<16x1xf32>
    %18 = arith.addf %14, %17 : vector<16x1xf32>
    %19 = math.rsqrt %18 : vector<16x1xf32>
    %20 = vector.broadcast %19 : vector<16x1xf32> to vector<16x32xf32>
    %21 = arith.mulf %16, %20 : vector<16x32xf32>
    %22 = vector.broadcast %2 : vector<1x32xf32> to vector<16x32xf32>
    %23 = arith.mulf %21, %22 : vector<16x32xf32>
    %24 = vector.broadcast %3 : vector<1x32xf32> to vector<16x32xf32>
    %25 = arith.addf %23, %24 : vector<16x32xf32>
    %c0_11 = arith.constant 0 : index
    %c0_12 = arith.constant 0 : index
    %c0_13 = arith.constant 0 : index
    %26 = vector.load %arg5[%c0_11, %c0_12, %c0_13] : memref<4x32x16xf32, #tpu.memory_space<vmem>>, vector<1x32x16xf32>
    %27 = vector.shape_cast %26 : vector<1x32x16xf32> to vector<32x16xf32>
    %cst_14 = arith.constant dense<0.000000e+00> : vector<16x16xf32>
    %28 = tpu.matmul %25, %27, %cst_14 {dimension_numbers = #tpu.dot_dimension_numbers<[1], [0], [0], [1], [0, 0, 1, 1], [], []>} : vector<16x32xf32>, vector<32x16xf32>, vector<16x16xf32> -> vector<16x16xf32>
    %c0_15 = arith.constant 0 : index
    %c0_16 = arith.constant 0 : index
    %c0_17 = arith.constant 0 : index
    %29 = vector.load %arg6[%c0_15, %c0_16, %c0_17] : memref<4x1x16xf32, #tpu.memory_space<vmem>>, vector<1x1x16xf32>
    %30 = vector.shape_cast %29 : vector<1x1x16xf32> to vector<1x16xf32>
    %31 = vector.broadcast %30 : vector<1x16xf32> to vector<16x16xf32>
    %32 = arith.addf %28, %31 : vector<16x16xf32>
    %c0_18 = arith.constant 0 : index
    %c0_19 = arith.constant 0 : index
    %c0_20 = arith.constant 0 : index
    %33 = vector.load %arg7[%c0_18, %c0_19, %c0_20] : memref<4x32x16xf32, #tpu.memory_space<vmem>>, vector<1x32x16xf32>
    %34 = vector.shape_cast %33 : vector<1x32x16xf32> to vector<32x16xf32>
    %cst_21 = arith.constant dense<0.000000e+00> : vector<16x16xf32>
    %35 = tpu.matmul %25, %34, %cst_21 {dimension_numbers = #tpu.dot_dimension_numbers<[1], [0], [0], [1], [0, 0, 1, 1], [], []>} : vector<16x32xf32>, vector<32x16xf32>, vector<16x16xf32> -> vector<16x16xf32>
    %c0_22 = arith.constant 0 : index
    %c0_23 = arith.constant 0 : index
    %c0_24 = arith.constant 0 : index
    %36 = vector.load %arg8[%c0_22, %c0_23, %c0_24] : memref<4x1x16xf32, #tpu.memory_space<vmem>>, vector<1x1x16xf32>
    %37 = vector.shape_cast %36 : vector<1x1x16xf32> to vector<1x16xf32>
    %38 = vector.broadcast %37 : vector<1x16xf32> to vector<16x16xf32>
    %39 = arith.addf %35, %38 : vector<16x16xf32>
    %c0_25 = arith.constant 0 : index
    %c0_26 = arith.constant 0 : index
    %c0_27 = arith.constant 0 : index
    %40 = vector.load %arg9[%c0_25, %c0_26, %c0_27] : memref<4x32x16xf32, #tpu.memory_space<vmem>>, vector<1x32x16xf32>
    %41 = vector.shape_cast %40 : vector<1x32x16xf32> to vector<32x16xf32>
    %cst_28 = arith.constant dense<0.000000e+00> : vector<16x16xf32>
    %42 = tpu.matmul %25, %41, %cst_28 {dimension_numbers = #tpu.dot_dimension_numbers<[1], [0], [0], [1], [0, 0, 1, 1], [], []>} : vector<16x32xf32>, vector<32x16xf32>, vector<16x16xf32> -> vector<16x16xf32>
    %c0_29 = arith.constant 0 : index
    %c0_30 = arith.constant 0 : index
    %c0_31 = arith.constant 0 : index
    %43 = vector.load %arg10[%c0_29, %c0_30, %c0_31] : memref<4x1x16xf32, #tpu.memory_space<vmem>>, vector<1x1x16xf32>
    %44 = vector.shape_cast %43 : vector<1x1x16xf32> to vector<1x16xf32>
    %45 = vector.broadcast %44 : vector<1x16xf32> to vector<16x16xf32>
    %46 = arith.addf %42, %45 : vector<16x16xf32>
    %cst_32 = arith.constant dense<0.000000e+00> : vector<16x16xf32>
    %47 = tpu.matmul %32, %39, %cst_32 {dimension_numbers = #tpu.dot_dimension_numbers<[1], [1], [0], [0], [0, 0, 1, 0], [], []>} : vector<16x16xf32>, vector<16x16xf32>, vector<16x16xf32> -> vector<16x16xf32>
    %48 = arith.addf %47, %0 : vector<16x16xf32>
    %cst_33 = arith.constant dense<0xFF800000> : vector<16xf32>
    %49 = vector.multi_reduction <maximumf>, %48, %cst_33 [1] : vector<16x16xf32> to vector<16xf32>
    %50 = vector.shape_cast %49 : vector<16xf32> to vector<16x1xf32>
    %51 = vector.broadcast %50 : vector<16x1xf32> to vector<16x16xf32>
    %52 = arith.subf %48, %51 : vector<16x16xf32>
    %53 = math.exp %52 : vector<16x16xf32>
    %cst_34 = arith.constant dense<0.000000e+00> : vector<16xf32>
    %54 = vector.multi_reduction <add>, %53, %cst_34 [1] : vector<16x16xf32> to vector<16xf32>
    %55 = vector.shape_cast %54 : vector<16xf32> to vector<16x1xf32>
    %56 = tpu.reciprocal %55 {approx = true} : vector<16x1xf32> -> vector<16x1xf32>
    %57 = vector.broadcast %56 : vector<16x1xf32> to vector<16x16xf32>
    %58 = arith.mulf %53, %57 : vector<16x16xf32>
    %cst_35 = arith.constant dense<0.000000e+00> : vector<16x16xf32>
    %59 = tpu.matmul %58, %46, %cst_35 {dimension_numbers = #tpu.dot_dimension_numbers<[1], [0], [0], [1], [0, 0, 1, 1], [], []>} : vector<16x16xf32>, vector<16x16xf32>, vector<16x16xf32> -> vector<16x16xf32>
    %c0_36 = arith.constant 0 : index
    %c0_37 = arith.constant 0 : index
    %c0_38 = arith.constant 0 : index
    %60 = vector.load %arg11[%c0_36, %c0_37, %c0_38] : memref<4x16x32xf32, #tpu.memory_space<vmem>>, vector<1x16x32xf32>
    %61 = vector.shape_cast %60 : vector<1x16x32xf32> to vector<16x32xf32>
    %cst_39 = arith.constant dense<0.000000e+00> : vector<16x32xf32>
    %62 = tpu.matmul %59, %61, %cst_39 {dimension_numbers = #tpu.dot_dimension_numbers<[1], [0], [0], [1], [0, 0, 1, 1], [], []>} : vector<16x16xf32>, vector<16x32xf32>, vector<16x32xf32> -> vector<16x32xf32>
    %c1 = arith.constant 1 : index
    %c0_40 = arith.constant 0 : index
    %c0_41 = arith.constant 0 : index
    %63 = vector.load %arg5[%c1, %c0_40, %c0_41] : memref<4x32x16xf32, #tpu.memory_space<vmem>>, vector<1x32x16xf32>
    %64 = vector.shape_cast %63 : vector<1x32x16xf32> to vector<32x16xf32>
    %cst_42 = arith.constant dense<0.000000e+00> : vector<16x16xf32>
    %65 = tpu.matmul %25, %64, %cst_42 {dimension_numbers = #tpu.dot_dimension_numbers<[1], [0], [0], [1], [0, 0, 1, 1], [], []>} : vector<16x32xf32>, vector<32x16xf32>, vector<16x16xf32> -> vector<16x16xf32>
    %c1_43 = arith.constant 1 : index
    %c0_44 = arith.constant 0 : index
    %c0_45 = arith.constant 0 : index
    %66 = vector.load %arg6[%c1_43, %c0_44, %c0_45] : memref<4x1x16xf32, #tpu.memory_space<vmem>>, vector<1x1x16xf32>
    %67 = vector.shape_cast %66 : vector<1x1x16xf32> to vector<1x16xf32>
    %68 = vector.broadcast %67 : vector<1x16xf32> to vector<16x16xf32>
    %69 = arith.addf %65, %68 : vector<16x16xf32>
    %c1_46 = arith.constant 1 : index
    %c0_47 = arith.constant 0 : index
    %c0_48 = arith.constant 0 : index
    %70 = vector.load %arg7[%c1_46, %c0_47, %c0_48] : memref<4x32x16xf32, #tpu.memory_space<vmem>>, vector<1x32x16xf32>
    %71 = vector.shape_cast %70 : vector<1x32x16xf32> to vector<32x16xf32>
    %cst_49 = arith.constant dense<0.000000e+00> : vector<16x16xf32>
    %72 = tpu.matmul %25, %71, %cst_49 {dimension_numbers = #tpu.dot_dimension_numbers<[1], [0], [0], [1], [0, 0, 1, 1], [], []>} : vector<16x32xf32>, vector<32x16xf32>, vector<16x16xf32> -> vector<16x16xf32>
    %c1_50 = arith.constant 1 : index
    %c0_51 = arith.constant 0 : index
    %c0_52 = arith.constant 0 : index
    %73 = vector.load %arg8[%c1_50, %c0_51, %c0_52] : memref<4x1x16xf32, #tpu.memory_space<vmem>>, vector<1x1x16xf32>
    %74 = vector.shape_cast %73 : vector<1x1x16xf32> to vector<1x16xf32>
    %75 = vector.broadcast %74 : vector<1x16xf32> to vector<16x16xf32>
    %76 = arith.addf %72, %75 : vector<16x16xf32>
    %c1_53 = arith.constant 1 : index
    %c0_54 = arith.constant 0 : index
    %c0_55 = arith.constant 0 : index
    %77 = vector.load %arg9[%c1_53, %c0_54, %c0_55] : memref<4x32x16xf32, #tpu.memory_space<vmem>>, vector<1x32x16xf32>
    %78 = vector.shape_cast %77 : vector<1x32x16xf32> to vector<32x16xf32>
    %cst_56 = arith.constant dense<0.000000e+00> : vector<16x16xf32>
    %79 = tpu.matmul %25, %78, %cst_56 {dimension_numbers = #tpu.dot_dimension_numbers<[1], [0], [0], [1], [0, 0, 1, 1], [], []>} : vector<16x32xf32>, vector<32x16xf32>, vector<16x16xf32> -> vector<16x16xf32>
    %c1_57 = arith.constant 1 : index
    %c0_58 = arith.constant 0 : index
    %c0_59 = arith.constant 0 : index
    %80 = vector.load %arg10[%c1_57, %c0_58, %c0_59] : memref<4x1x16xf32, #tpu.memory_space<vmem>>, vector<1x1x16xf32>
    %81 = vector.shape_cast %80 : vector<1x1x16xf32> to vector<1x16xf32>
    %82 = vector.broadcast %81 : vector<1x16xf32> to vector<16x16xf32>
    %83 = arith.addf %79, %82 : vector<16x16xf32>
    %cst_60 = arith.constant dense<0.000000e+00> : vector<16x16xf32>
    %84 = tpu.matmul %69, %76, %cst_60 {dimension_numbers = #tpu.dot_dimension_numbers<[1], [1], [0], [0], [0, 0, 1, 0], [], []>} : vector<16x16xf32>, vector<16x16xf32>, vector<16x16xf32> -> vector<16x16xf32>
    %85 = arith.addf %84, %0 : vector<16x16xf32>
    %cst_61 = arith.constant dense<0xFF800000> : vector<16xf32>
    %86 = vector.multi_reduction <maximumf>, %85, %cst_61 [1] : vector<16x16xf32> to vector<16xf32>
    %87 = vector.shape_cast %86 : vector<16xf32> to vector<16x1xf32>
    %88 = vector.broadcast %87 : vector<16x1xf32> to vector<16x16xf32>
    %89 = arith.subf %85, %88 : vector<16x16xf32>
    %90 = math.exp %89 : vector<16x16xf32>
    %cst_62 = arith.constant dense<0.000000e+00> : vector<16xf32>
    %91 = vector.multi_reduction <add>, %90, %cst_62 [1] : vector<16x16xf32> to vector<16xf32>
    %92 = vector.shape_cast %91 : vector<16xf32> to vector<16x1xf32>
    %93 = tpu.reciprocal %92 {approx = true} : vector<16x1xf32> -> vector<16x1xf32>
    %94 = vector.broadcast %93 : vector<16x1xf32> to vector<16x16xf32>
    %95 = arith.mulf %90, %94 : vector<16x16xf32>
    %cst_63 = arith.constant dense<0.000000e+00> : vector<16x16xf32>
    %96 = tpu.matmul %95, %83, %cst_63 {dimension_numbers = #tpu.dot_dimension_numbers<[1], [0], [0], [1], [0, 0, 1, 1], [], []>} : vector<16x16xf32>, vector<16x16xf32>, vector<16x16xf32> -> vector<16x16xf32>
    %c1_64 = arith.constant 1 : index
    %c0_65 = arith.constant 0 : index
    %c0_66 = arith.constant 0 : index
    %97 = vector.load %arg11[%c1_64, %c0_65, %c0_66] : memref<4x16x32xf32, #tpu.memory_space<vmem>>, vector<1x16x32xf32>
    %98 = vector.shape_cast %97 : vector<1x16x32xf32> to vector<16x32xf32>
    %cst_67 = arith.constant dense<0.000000e+00> : vector<16x32xf32>
    %99 = tpu.matmul %96, %98, %cst_67 {dimension_numbers = #tpu.dot_dimension_numbers<[1], [0], [0], [1], [0, 0, 1, 1], [], []>} : vector<16x16xf32>, vector<16x32xf32>, vector<16x32xf32> -> vector<16x32xf32>
    %100 = arith.addf %62, %99 : vector<16x32xf32>
    %101 = arith.addf %25, %100 : vector<16x32xf32>
    %c0_68 = arith.constant 0 : index
    %c0_69 = arith.constant 0 : index
    %c0_70 = arith.constant 0 : index
    %102 = vector.load %arg12[%c0_68, %c0_69, %c0_70] : memref<2x1x32xf32, #tpu.memory_space<vmem>>, vector<1x1x32xf32>
    %103 = vector.shape_cast %102 : vector<1x1x32xf32> to vector<1x32xf32>
    %104 = vector.broadcast %103 : vector<1x32xf32> to vector<16x32xf32>
    %105 = arith.addf %101, %104 : vector<16x32xf32>
    %c0_71 = arith.constant 0 : index
    %c0_72 = arith.constant 0 : index
    %c0_73 = arith.constant 0 : index
    %106 = vector.load %arg13[%c0_71, %c0_72, %c0_73] : memref<2x1x32xf32, #tpu.memory_space<vmem>>, vector<1x1x32xf32>
    %107 = vector.shape_cast %106 : vector<1x1x32xf32> to vector<1x32xf32>
    %c0_74 = arith.constant 0 : index
    %c0_75 = arith.constant 0 : index
    %c0_76 = arith.constant 0 : index
    %108 = vector.load %arg14[%c0_74, %c0_75, %c0_76] : memref<2x1x32xf32, #tpu.memory_space<vmem>>, vector<1x1x32xf32>
    %109 = vector.shape_cast %108 : vector<1x1x32xf32> to vector<1x32xf32>
    %cst_77 = arith.constant dense<0.000000e+00> : vector<16xf32>
    %110 = vector.multi_reduction <add>, %105, %cst_77 [1] : vector<16x32xf32> to vector<16xf32>
    %111 = vector.shape_cast %110 : vector<16xf32> to vector<16x1xf32>
    %cst_78 = arith.constant 3.200000e+01 : f32
    %112 = vector.broadcast %cst_78 : f32 to vector<16x1xf32>
    %113 = arith.divf %111, %112 : vector<16x1xf32>
    %114 = vector.broadcast %113 : vector<16x1xf32> to vector<16x32xf32>
    %115 = arith.subf %105, %114 : vector<16x32xf32>
    %116 = arith.mulf %115, %115 : vector<16x32xf32>
    %cst_79 = arith.constant dense<0.000000e+00> : vector<16xf32>
    %117 = vector.multi_reduction <add>, %116, %cst_79 [1] : vector<16x32xf32> to vector<16xf32>
    %118 = vector.shape_cast %117 : vector<16xf32> to vector<16x1xf32>
    %cst_80 = arith.constant 3.200000e+01 : f32
    %119 = vector.broadcast %cst_80 : f32 to vector<16x1xf32>
    %120 = arith.divf %118, %119 : vector<16x1xf32>
    %121 = vector.broadcast %113 : vector<16x1xf32> to vector<16x32xf32>
    %122 = arith.subf %105, %121 : vector<16x32xf32>
    %cst_81 = arith.constant 9.99999996E-13 : f32
    %123 = vector.broadcast %cst_81 : f32 to vector<16x1xf32>
    %124 = arith.addf %120, %123 : vector<16x1xf32>
    %125 = math.rsqrt %124 : vector<16x1xf32>
    %126 = vector.broadcast %125 : vector<16x1xf32> to vector<16x32xf32>
    %127 = arith.mulf %122, %126 : vector<16x32xf32>
    %128 = vector.broadcast %107 : vector<1x32xf32> to vector<16x32xf32>
    %129 = arith.mulf %127, %128 : vector<16x32xf32>
    %130 = vector.broadcast %109 : vector<1x32xf32> to vector<16x32xf32>
    %131 = arith.addf %129, %130 : vector<16x32xf32>
    %c0_82 = arith.constant 0 : index
    %c0_83 = arith.constant 0 : index
    %c0_84 = arith.constant 0 : index
    %132 = vector.load %arg15[%c0_82, %c0_83, %c0_84] : memref<2x32x64xf32, #tpu.memory_space<vmem>>, vector<1x32x64xf32>
    %133 = vector.shape_cast %132 : vector<1x32x64xf32> to vector<32x64xf32>
    %cst_85 = arith.constant dense<0.000000e+00> : vector<16x64xf32>
    %134 = tpu.matmul %131, %133, %cst_85 {dimension_numbers = #tpu.dot_dimension_numbers<[1], [0], [0], [1], [0, 0, 1, 1], [], []>} : vector<16x32xf32>, vector<32x64xf32>, vector<16x64xf32> -> vector<16x64xf32>
    %c0_86 = arith.constant 0 : index
    %c0_87 = arith.constant 0 : index
    %c0_88 = arith.constant 0 : index
    %135 = vector.load %arg16[%c0_86, %c0_87, %c0_88] : memref<2x1x64xf32, #tpu.memory_space<vmem>>, vector<1x1x64xf32>
    %136 = vector.shape_cast %135 : vector<1x1x64xf32> to vector<1x64xf32>
    %137 = vector.broadcast %136 : vector<1x64xf32> to vector<16x64xf32>
    %138 = arith.addf %134, %137 : vector<16x64xf32>
    %139 = arith.mulf %138, %138 : vector<16x64xf32>
    %140 = arith.mulf %138, %139 : vector<16x64xf32>
    %cst_89 = arith.constant 4.471500e-02 : f32
    %141 = vector.broadcast %cst_89 : f32 to vector<16x64xf32>
    %142 = arith.mulf %141, %140 : vector<16x64xf32>
    %143 = arith.addf %138, %142 : vector<16x64xf32>
    %cst_90 = arith.constant 0.797884583 : f32
    %144 = vector.broadcast %cst_90 : f32 to vector<16x64xf32>
    %145 = arith.mulf %144, %143 : vector<16x64xf32>
    %146 = math.tanh %145 : vector<16x64xf32>
    %cst_91 = arith.constant 1.000000e+00 : f32
    %147 = vector.broadcast %cst_91 : f32 to vector<16x64xf32>
    %148 = arith.addf %147, %146 : vector<16x64xf32>
    %cst_92 = arith.constant 5.000000e-01 : f32
    %149 = vector.broadcast %cst_92 : f32 to vector<16x64xf32>
    %150 = arith.mulf %149, %148 : vector<16x64xf32>
    %151 = arith.mulf %138, %150 : vector<16x64xf32>
    %c0_93 = arith.constant 0 : index
    %c0_94 = arith.constant 0 : index
    %c0_95 = arith.constant 0 : index
    %152 = vector.load %arg17[%c0_93, %c0_94, %c0_95] : memref<2x64x32xf32, #tpu.memory_space<vmem>>, vector<1x64x32xf32>
    %153 = vector.shape_cast %152 : vector<1x64x32xf32> to vector<64x32xf32>
    %cst_96 = arith.constant dense<0.000000e+00> : vector<16x32xf32>
    %154 = tpu.matmul %151, %153, %cst_96 {dimension_numbers = #tpu.dot_dimension_numbers<[1], [0], [0], [1], [0, 0, 1, 1], [], []>} : vector<16x64xf32>, vector<64x32xf32>, vector<16x32xf32> -> vector<16x32xf32>
    %c0_97 = arith.constant 0 : index
    %c0_98 = arith.constant 0 : index
    %c0_99 = arith.constant 0 : index
    %155 = vector.load %arg18[%c0_97, %c0_98, %c0_99] : memref<2x1x32xf32, #tpu.memory_space<vmem>>, vector<1x1x32xf32>
    %156 = vector.shape_cast %155 : vector<1x1x32xf32> to vector<1x32xf32>
    %157 = vector.broadcast %156 : vector<1x32xf32> to vector<16x32xf32>
    %158 = arith.addf %154, %157 : vector<16x32xf32>
    %159 = arith.addf %131, %158 : vector<16x32xf32>
    %c0_100 = arith.constant 0 : index
    %c0_101 = arith.constant 0 : index
    %c0_102 = arith.constant 0 : index
    %160 = vector.load %arg19[%c0_100, %c0_101, %c0_102] : memref<2x1x32xf32, #tpu.memory_space<vmem>>, vector<1x1x32xf32>
    %161 = vector.shape_cast %160 : vector<1x1x32xf32> to vector<1x32xf32>
    %c0_103 = arith.constant 0 : index
    %c0_104 = arith.constant 0 : index
    %c0_105 = arith.constant 0 : index
    %162 = vector.load %arg20[%c0_103, %c0_104, %c0_105] : memref<2x1x32xf32, #tpu.memory_space<vmem>>, vector<1x1x32xf32>
    %163 = vector.shape_cast %162 : vector<1x1x32xf32> to vector<1x32xf32>
    %cst_106 = arith.constant dense<0.000000e+00> : vector<16xf32>
    %164 = vector.multi_reduction <add>, %159, %cst_106 [1] : vector<16x32xf32> to vector<16xf32>
    %165 = vector.shape_cast %164 : vector<16xf32> to vector<16x1xf32>
    %cst_107 = arith.constant 3.200000e+01 : f32
    %166 = vector.broadcast %cst_107 : f32 to vector<16x1xf32>
    %167 = arith.divf %165, %166 : vector<16x1xf32>
    %168 = vector.broadcast %167 : vector<16x1xf32> to vector<16x32xf32>
    %169 = arith.subf %159, %168 : vector<16x32xf32>
    %170 = arith.mulf %169, %169 : vector<16x32xf32>
    %cst_108 = arith.constant dense<0.000000e+00> : vector<16xf32>
    %171 = vector.multi_reduction <add>, %170, %cst_108 [1] : vector<16x32xf32> to vector<16xf32>
    %172 = vector.shape_cast %171 : vector<16xf32> to vector<16x1xf32>
    %cst_109 = arith.constant 3.200000e+01 : f32
    %173 = vector.broadcast %cst_109 : f32 to vector<16x1xf32>
    %174 = arith.divf %172, %173 : vector<16x1xf32>
    %175 = vector.broadcast %167 : vector<16x1xf32> to vector<16x32xf32>
    %176 = arith.subf %159, %175 : vector<16x32xf32>
    %cst_110 = arith.constant 9.99999996E-13 : f32
    %177 = vector.broadcast %cst_110 : f32 to vector<16x1xf32>
    %178 = arith.addf %174, %177 : vector<16x1xf32>
    %179 = math.rsqrt %178 : vector<16x1xf32>
    %180 = vector.broadcast %179 : vector<16x1xf32> to vector<16x32xf32>
    %181 = arith.mulf %176, %180 : vector<16x32xf32>
    %182 = vector.broadcast %161 : vector<1x32xf32> to vector<16x32xf32>
    %183 = arith.mulf %181, %182 : vector<16x32xf32>
    %184 = vector.broadcast %163 : vector<1x32xf32> to vector<16x32xf32>
    %185 = arith.addf %183, %184 : vector<16x32xf32>
    %c2 = arith.constant 2 : index
    %c0_111 = arith.constant 0 : index
    %c0_112 = arith.constant 0 : index
    %186 = vector.load %arg5[%c2, %c0_111, %c0_112] : memref<4x32x16xf32, #tpu.memory_space<vmem>>, vector<1x32x16xf32>
    %187 = vector.shape_cast %186 : vector<1x32x16xf32> to vector<32x16xf32>
    %cst_113 = arith.constant dense<0.000000e+00> : vector<16x16xf32>
    %188 = tpu.matmul %185, %187, %cst_113 {dimension_numbers = #tpu.dot_dimension_numbers<[1], [0], [0], [1], [0, 0, 1, 1], [], []>} : vector<16x32xf32>, vector<32x16xf32>, vector<16x16xf32> -> vector<16x16xf32>
    %c2_114 = arith.constant 2 : index
    %c0_115 = arith.constant 0 : index
    %c0_116 = arith.constant 0 : index
    %189 = vector.load %arg6[%c2_114, %c0_115, %c0_116] : memref<4x1x16xf32, #tpu.memory_space<vmem>>, vector<1x1x16xf32>
    %190 = vector.shape_cast %189 : vector<1x1x16xf32> to vector<1x16xf32>
    %191 = vector.broadcast %190 : vector<1x16xf32> to vector<16x16xf32>
    %192 = arith.addf %188, %191 : vector<16x16xf32>
    %c2_117 = arith.constant 2 : index
    %c0_118 = arith.constant 0 : index
    %c0_119 = arith.constant 0 : index
    %193 = vector.load %arg7[%c2_117, %c0_118, %c0_119] : memref<4x32x16xf32, #tpu.memory_space<vmem>>, vector<1x32x16xf32>
    %194 = vector.shape_cast %193 : vector<1x32x16xf32> to vector<32x16xf32>
    %cst_120 = arith.constant dense<0.000000e+00> : vector<16x16xf32>
    %195 = tpu.matmul %185, %194, %cst_120 {dimension_numbers = #tpu.dot_dimension_numbers<[1], [0], [0], [1], [0, 0, 1, 1], [], []>} : vector<16x32xf32>, vector<32x16xf32>, vector<16x16xf32> -> vector<16x16xf32>
    %c2_121 = arith.constant 2 : index
    %c0_122 = arith.constant 0 : index
    %c0_123 = arith.constant 0 : index
    %196 = vector.load %arg8[%c2_121, %c0_122, %c0_123] : memref<4x1x16xf32, #tpu.memory_space<vmem>>, vector<1x1x16xf32>
    %197 = vector.shape_cast %196 : vector<1x1x16xf32> to vector<1x16xf32>
    %198 = vector.broadcast %197 : vector<1x16xf32> to vector<16x16xf32>
    %199 = arith.addf %195, %198 : vector<16x16xf32>
    %c2_124 = arith.constant 2 : index
    %c0_125 = arith.constant 0 : index
    %c0_126 = arith.constant 0 : index
    %200 = vector.load %arg9[%c2_124, %c0_125, %c0_126] : memref<4x32x16xf32, #tpu.memory_space<vmem>>, vector<1x32x16xf32>
    %201 = vector.shape_cast %200 : vector<1x32x16xf32> to vector<32x16xf32>
    %cst_127 = arith.constant dense<0.000000e+00> : vector<16x16xf32>
    %202 = tpu.matmul %185, %201, %cst_127 {dimension_numbers = #tpu.dot_dimension_numbers<[1], [0], [0], [1], [0, 0, 1, 1], [], []>} : vector<16x32xf32>, vector<32x16xf32>, vector<16x16xf32> -> vector<16x16xf32>
    %c2_128 = arith.constant 2 : index
    %c0_129 = arith.constant 0 : index
    %c0_130 = arith.constant 0 : index
    %203 = vector.load %arg10[%c2_128, %c0_129, %c0_130] : memref<4x1x16xf32, #tpu.memory_space<vmem>>, vector<1x1x16xf32>
    %204 = vector.shape_cast %203 : vector<1x1x16xf32> to vector<1x16xf32>
    %205 = vector.broadcast %204 : vector<1x16xf32> to vector<16x16xf32>
    %206 = arith.addf %202, %205 : vector<16x16xf32>
    %cst_131 = arith.constant dense<0.000000e+00> : vector<16x16xf32>
    %207 = tpu.matmul %192, %199, %cst_131 {dimension_numbers = #tpu.dot_dimension_numbers<[1], [1], [0], [0], [0, 0, 1, 0], [], []>} : vector<16x16xf32>, vector<16x16xf32>, vector<16x16xf32> -> vector<16x16xf32>
    %208 = arith.addf %207, %0 : vector<16x16xf32>
    %cst_132 = arith.constant dense<0xFF800000> : vector<16xf32>
    %209 = vector.multi_reduction <maximumf>, %208, %cst_132 [1] : vector<16x16xf32> to vector<16xf32>
    %210 = vector.shape_cast %209 : vector<16xf32> to vector<16x1xf32>
    %211 = vector.broadcast %210 : vector<16x1xf32> to vector<16x16xf32>
    %212 = arith.subf %208, %211 : vector<16x16xf32>
    %213 = math.exp %212 : vector<16x16xf32>
    %cst_133 = arith.constant dense<0.000000e+00> : vector<16xf32>
    %214 = vector.multi_reduction <add>, %213, %cst_133 [1] : vector<16x16xf32> to vector<16xf32>
    %215 = vector.shape_cast %214 : vector<16xf32> to vector<16x1xf32>
    %216 = tpu.reciprocal %215 {approx = true} : vector<16x1xf32> -> vector<16x1xf32>
    %217 = vector.broadcast %216 : vector<16x1xf32> to vector<16x16xf32>
    %218 = arith.mulf %213, %217 : vector<16x16xf32>
    %cst_134 = arith.constant dense<0.000000e+00> : vector<16x16xf32>
    %219 = tpu.matmul %218, %206, %cst_134 {dimension_numbers = #tpu.dot_dimension_numbers<[1], [0], [0], [1], [0, 0, 1, 1], [], []>} : vector<16x16xf32>, vector<16x16xf32>, vector<16x16xf32> -> vector<16x16xf32>
    %c2_135 = arith.constant 2 : index
    %c0_136 = arith.constant 0 : index
    %c0_137 = arith.constant 0 : index
    %220 = vector.load %arg11[%c2_135, %c0_136, %c0_137] : memref<4x16x32xf32, #tpu.memory_space<vmem>>, vector<1x16x32xf32>
    %221 = vector.shape_cast %220 : vector<1x16x32xf32> to vector<16x32xf32>
    %cst_138 = arith.constant dense<0.000000e+00> : vector<16x32xf32>
    %222 = tpu.matmul %219, %221, %cst_138 {dimension_numbers = #tpu.dot_dimension_numbers<[1], [0], [0], [1], [0, 0, 1, 1], [], []>} : vector<16x16xf32>, vector<16x32xf32>, vector<16x32xf32> -> vector<16x32xf32>
    %c3 = arith.constant 3 : index
    %c0_139 = arith.constant 0 : index
    %c0_140 = arith.constant 0 : index
    %223 = vector.load %arg5[%c3, %c0_139, %c0_140] : memref<4x32x16xf32, #tpu.memory_space<vmem>>, vector<1x32x16xf32>
    %224 = vector.shape_cast %223 : vector<1x32x16xf32> to vector<32x16xf32>
    %cst_141 = arith.constant dense<0.000000e+00> : vector<16x16xf32>
    %225 = tpu.matmul %185, %224, %cst_141 {dimension_numbers = #tpu.dot_dimension_numbers<[1], [0], [0], [1], [0, 0, 1, 1], [], []>} : vector<16x32xf32>, vector<32x16xf32>, vector<16x16xf32> -> vector<16x16xf32>
    %c3_142 = arith.constant 3 : index
    %c0_143 = arith.constant 0 : index
    %c0_144 = arith.constant 0 : index
    %226 = vector.load %arg6[%c3_142, %c0_143, %c0_144] : memref<4x1x16xf32, #tpu.memory_space<vmem>>, vector<1x1x16xf32>
    %227 = vector.shape_cast %226 : vector<1x1x16xf32> to vector<1x16xf32>
    %228 = vector.broadcast %227 : vector<1x16xf32> to vector<16x16xf32>
    %229 = arith.addf %225, %228 : vector<16x16xf32>
    %c3_145 = arith.constant 3 : index
    %c0_146 = arith.constant 0 : index
    %c0_147 = arith.constant 0 : index
    %230 = vector.load %arg7[%c3_145, %c0_146, %c0_147] : memref<4x32x16xf32, #tpu.memory_space<vmem>>, vector<1x32x16xf32>
    %231 = vector.shape_cast %230 : vector<1x32x16xf32> to vector<32x16xf32>
    %cst_148 = arith.constant dense<0.000000e+00> : vector<16x16xf32>
    %232 = tpu.matmul %185, %231, %cst_148 {dimension_numbers = #tpu.dot_dimension_numbers<[1], [0], [0], [1], [0, 0, 1, 1], [], []>} : vector<16x32xf32>, vector<32x16xf32>, vector<16x16xf32> -> vector<16x16xf32>
    %c3_149 = arith.constant 3 : index
    %c0_150 = arith.constant 0 : index
    %c0_151 = arith.constant 0 : index
    %233 = vector.load %arg8[%c3_149, %c0_150, %c0_151] : memref<4x1x16xf32, #tpu.memory_space<vmem>>, vector<1x1x16xf32>
    %234 = vector.shape_cast %233 : vector<1x1x16xf32> to vector<1x16xf32>
    %235 = vector.broadcast %234 : vector<1x16xf32> to vector<16x16xf32>
    %236 = arith.addf %232, %235 : vector<16x16xf32>
    %c3_152 = arith.constant 3 : index
    %c0_153 = arith.constant 0 : index
    %c0_154 = arith.constant 0 : index
    %237 = vector.load %arg9[%c3_152, %c0_153, %c0_154] : memref<4x32x16xf32, #tpu.memory_space<vmem>>, vector<1x32x16xf32>
    %238 = vector.shape_cast %237 : vector<1x32x16xf32> to vector<32x16xf32>
    %cst_155 = arith.constant dense<0.000000e+00> : vector<16x16xf32>
    %239 = tpu.matmul %185, %238, %cst_155 {dimension_numbers = #tpu.dot_dimension_numbers<[1], [0], [0], [1], [0, 0, 1, 1], [], []>} : vector<16x32xf32>, vector<32x16xf32>, vector<16x16xf32> -> vector<16x16xf32>
    %c3_156 = arith.constant 3 : index
    %c0_157 = arith.constant 0 : index
    %c0_158 = arith.constant 0 : index
    %240 = vector.load %arg10[%c3_156, %c0_157, %c0_158] : memref<4x1x16xf32, #tpu.memory_space<vmem>>, vector<1x1x16xf32>
    %241 = vector.shape_cast %240 : vector<1x1x16xf32> to vector<1x16xf32>
    %242 = vector.broadcast %241 : vector<1x16xf32> to vector<16x16xf32>
    %243 = arith.addf %239, %242 : vector<16x16xf32>
    %cst_159 = arith.constant dense<0.000000e+00> : vector<16x16xf32>
    %244 = tpu.matmul %229, %236, %cst_159 {dimension_numbers = #tpu.dot_dimension_numbers<[1], [1], [0], [0], [0, 0, 1, 0], [], []>} : vector<16x16xf32>, vector<16x16xf32>, vector<16x16xf32> -> vector<16x16xf32>
    %245 = arith.addf %244, %0 : vector<16x16xf32>
    %cst_160 = arith.constant dense<0xFF800000> : vector<16xf32>
    %246 = vector.multi_reduction <maximumf>, %245, %cst_160 [1] : vector<16x16xf32> to vector<16xf32>
    %247 = vector.shape_cast %246 : vector<16xf32> to vector<16x1xf32>
    %248 = vector.broadcast %247 : vector<16x1xf32> to vector<16x16xf32>
    %249 = arith.subf %245, %248 : vector<16x16xf32>
    %250 = math.exp %249 : vector<16x16xf32>
    %cst_161 = arith.constant dense<0.000000e+00> : vector<16xf32>
    %251 = vector.multi_reduction <add>, %250, %cst_161 [1] : vector<16x16xf32> to vector<16xf32>
    %252 = vector.shape_cast %251 : vector<16xf32> to vector<16x1xf32>
    %253 = tpu.reciprocal %252 {approx = true} : vector<16x1xf32> -> vector<16x1xf32>
    %254 = vector.broadcast %253 : vector<16x1xf32> to vector<16x16xf32>
    %255 = arith.mulf %250, %254 : vector<16x16xf32>
    %cst_162 = arith.constant dense<0.000000e+00> : vector<16x16xf32>
    %256 = tpu.matmul %255, %243, %cst_162 {dimension_numbers = #tpu.dot_dimension_numbers<[1], [0], [0], [1], [0, 0, 1, 1], [], []>} : vector<16x16xf32>, vector<16x16xf32>, vector<16x16xf32> -> vector<16x16xf32>
    %c3_163 = arith.constant 3 : index
    %c0_164 = arith.constant 0 : index
    %c0_165 = arith.constant 0 : index
    %257 = vector.load %arg11[%c3_163, %c0_164, %c0_165] : memref<4x16x32xf32, #tpu.memory_space<vmem>>, vector<1x16x32xf32>
    %258 = vector.shape_cast %257 : vector<1x16x32xf32> to vector<16x32xf32>
    %cst_166 = arith.constant dense<0.000000e+00> : vector<16x32xf32>
    %259 = tpu.matmul %256, %258, %cst_166 {dimension_numbers = #tpu.dot_dimension_numbers<[1], [0], [0], [1], [0, 0, 1, 1], [], []>} : vector<16x16xf32>, vector<16x32xf32>, vector<16x32xf32> -> vector<16x32xf32>
    %260 = arith.addf %222, %259 : vector<16x32xf32>
    %261 = arith.addf %185, %260 : vector<16x32xf32>
    %c1_167 = arith.constant 1 : index
    %c0_168 = arith.constant 0 : index
    %c0_169 = arith.constant 0 : index
    %262 = vector.load %arg12[%c1_167, %c0_168, %c0_169] : memref<2x1x32xf32, #tpu.memory_space<vmem>>, vector<1x1x32xf32>
    %263 = vector.shape_cast %262 : vector<1x1x32xf32> to vector<1x32xf32>
    %264 = vector.broadcast %263 : vector<1x32xf32> to vector<16x32xf32>
    %265 = arith.addf %261, %264 : vector<16x32xf32>
    %c1_170 = arith.constant 1 : index
    %c0_171 = arith.constant 0 : index
    %c0_172 = arith.constant 0 : index
    %266 = vector.load %arg13[%c1_170, %c0_171, %c0_172] : memref<2x1x32xf32, #tpu.memory_space<vmem>>, vector<1x1x32xf32>
    %267 = vector.shape_cast %266 : vector<1x1x32xf32> to vector<1x32xf32>
    %c1_173 = arith.constant 1 : index
    %c0_174 = arith.constant 0 : index
    %c0_175 = arith.constant 0 : index
    %268 = vector.load %arg14[%c1_173, %c0_174, %c0_175] : memref<2x1x32xf32, #tpu.memory_space<vmem>>, vector<1x1x32xf32>
    %269 = vector.shape_cast %268 : vector<1x1x32xf32> to vector<1x32xf32>
    %cst_176 = arith.constant dense<0.000000e+00> : vector<16xf32>
    %270 = vector.multi_reduction <add>, %265, %cst_176 [1] : vector<16x32xf32> to vector<16xf32>
    %271 = vector.shape_cast %270 : vector<16xf32> to vector<16x1xf32>
    %cst_177 = arith.constant 3.200000e+01 : f32
    %272 = vector.broadcast %cst_177 : f32 to vector<16x1xf32>
    %273 = arith.divf %271, %272 : vector<16x1xf32>
    %274 = vector.broadcast %273 : vector<16x1xf32> to vector<16x32xf32>
    %275 = arith.subf %265, %274 : vector<16x32xf32>
    %276 = arith.mulf %275, %275 : vector<16x32xf32>
    %cst_178 = arith.constant dense<0.000000e+00> : vector<16xf32>
    %277 = vector.multi_reduction <add>, %276, %cst_178 [1] : vector<16x32xf32> to vector<16xf32>
    %278 = vector.shape_cast %277 : vector<16xf32> to vector<16x1xf32>
    %cst_179 = arith.constant 3.200000e+01 : f32
    %279 = vector.broadcast %cst_179 : f32 to vector<16x1xf32>
    %280 = arith.divf %278, %279 : vector<16x1xf32>
    %281 = vector.broadcast %273 : vector<16x1xf32> to vector<16x32xf32>
    %282 = arith.subf %265, %281 : vector<16x32xf32>
    %cst_180 = arith.constant 9.99999996E-13 : f32
    %283 = vector.broadcast %cst_180 : f32 to vector<16x1xf32>
    %284 = arith.addf %280, %283 : vector<16x1xf32>
    %285 = math.rsqrt %284 : vector<16x1xf32>
    %286 = vector.broadcast %285 : vector<16x1xf32> to vector<16x32xf32>
    %287 = arith.mulf %282, %286 : vector<16x32xf32>
    %288 = vector.broadcast %267 : vector<1x32xf32> to vector<16x32xf32>
    %289 = arith.mulf %287, %288 : vector<16x32xf32>
    %290 = vector.broadcast %269 : vector<1x32xf32> to vector<16x32xf32>
    %291 = arith.addf %289, %290 : vector<16x32xf32>
    %c1_181 = arith.constant 1 : index
    %c0_182 = arith.constant 0 : index
    %c0_183 = arith.constant 0 : index
    %292 = vector.load %arg15[%c1_181, %c0_182, %c0_183] : memref<2x32x64xf32, #tpu.memory_space<vmem>>, vector<1x32x64xf32>
    %293 = vector.shape_cast %292 : vector<1x32x64xf32> to vector<32x64xf32>
    %cst_184 = arith.constant dense<0.000000e+00> : vector<16x64xf32>
    %294 = tpu.matmul %291, %293, %cst_184 {dimension_numbers = #tpu.dot_dimension_numbers<[1], [0], [0], [1], [0, 0, 1, 1], [], []>} : vector<16x32xf32>, vector<32x64xf32>, vector<16x64xf32> -> vector<16x64xf32>
    %c1_185 = arith.constant 1 : index
    %c0_186 = arith.constant 0 : index
    %c0_187 = arith.constant 0 : index
    %295 = vector.load %arg16[%c1_185, %c0_186, %c0_187] : memref<2x1x64xf32, #tpu.memory_space<vmem>>, vector<1x1x64xf32>
    %296 = vector.shape_cast %295 : vector<1x1x64xf32> to vector<1x64xf32>
    %297 = vector.broadcast %296 : vector<1x64xf32> to vector<16x64xf32>
    %298 = arith.addf %294, %297 : vector<16x64xf32>
    %299 = arith.mulf %298, %298 : vector<16x64xf32>
    %300 = arith.mulf %298, %299 : vector<16x64xf32>
    %cst_188 = arith.constant 4.471500e-02 : f32
    %301 = vector.broadcast %cst_188 : f32 to vector<16x64xf32>
    %302 = arith.mulf %301, %300 : vector<16x64xf32>
    %303 = arith.addf %298, %302 : vector<16x64xf32>
    %cst_189 = arith.constant 0.797884583 : f32
    %304 = vector.broadcast %cst_189 : f32 to vector<16x64xf32>
    %305 = arith.mulf %304, %303 : vector<16x64xf32>
    %306 = math.tanh %305 : vector<16x64xf32>
    %cst_190 = arith.constant 1.000000e+00 : f32
    %307 = vector.broadcast %cst_190 : f32 to vector<16x64xf32>
    %308 = arith.addf %307, %306 : vector<16x64xf32>
    %cst_191 = arith.constant 5.000000e-01 : f32
    %309 = vector.broadcast %cst_191 : f32 to vector<16x64xf32>
    %310 = arith.mulf %309, %308 : vector<16x64xf32>
    %311 = arith.mulf %298, %310 : vector<16x64xf32>
    %c1_192 = arith.constant 1 : index
    %c0_193 = arith.constant 0 : index
    %c0_194 = arith.constant 0 : index
    %312 = vector.load %arg17[%c1_192, %c0_193, %c0_194] : memref<2x64x32xf32, #tpu.memory_space<vmem>>, vector<1x64x32xf32>
    %313 = vector.shape_cast %312 : vector<1x64x32xf32> to vector<64x32xf32>
    %cst_195 = arith.constant dense<0.000000e+00> : vector<16x32xf32>
    %314 = tpu.matmul %311, %313, %cst_195 {dimension_numbers = #tpu.dot_dimension_numbers<[1], [0], [0], [1], [0, 0, 1, 1], [], []>} : vector<16x64xf32>, vector<64x32xf32>, vector<16x32xf32> -> vector<16x32xf32>
    %c1_196 = arith.constant 1 : index
    %c0_197 = arith.constant 0 : index
    %c0_198 = arith.constant 0 : index
    %315 = vector.load %arg18[%c1_196, %c0_197, %c0_198] : memref<2x1x32xf32, #tpu.memory_space<vmem>>, vector<1x1x32xf32>
    %316 = vector.shape_cast %315 : vector<1x1x32xf32> to vector<1x32xf32>
    %317 = vector.broadcast %316 : vector<1x32xf32> to vector<16x32xf32>
    %318 = arith.addf %314, %317 : vector<16x32xf32>
    %319 = arith.addf %291, %318 : vector<16x32xf32>
    %c1_199 = arith.constant 1 : index
    %c0_200 = arith.constant 0 : index
    %c0_201 = arith.constant 0 : index
    %320 = vector.load %arg19[%c1_199, %c0_200, %c0_201] : memref<2x1x32xf32, #tpu.memory_space<vmem>>, vector<1x1x32xf32>
    %321 = vector.shape_cast %320 : vector<1x1x32xf32> to vector<1x32xf32>
    %c1_202 = arith.constant 1 : index
    %c0_203 = arith.constant 0 : index
    %c0_204 = arith.constant 0 : index
    %322 = vector.load %arg20[%c1_202, %c0_203, %c0_204] : memref<2x1x32xf32, #tpu.memory_space<vmem>>, vector<1x1x32xf32>
    %323 = vector.shape_cast %322 : vector<1x1x32xf32> to vector<1x32xf32>
    %cst_205 = arith.constant dense<0.000000e+00> : vector<16xf32>
    %324 = vector.multi_reduction <add>, %319, %cst_205 [1] : vector<16x32xf32> to vector<16xf32>
    %325 = vector.shape_cast %324 : vector<16xf32> to vector<16x1xf32>
    %cst_206 = arith.constant 3.200000e+01 : f32
    %326 = vector.broadcast %cst_206 : f32 to vector<16x1xf32>
    %327 = arith.divf %325, %326 : vector<16x1xf32>
    %328 = vector.broadcast %327 : vector<16x1xf32> to vector<16x32xf32>
    %329 = arith.subf %319, %328 : vector<16x32xf32>
    %330 = arith.mulf %329, %329 : vector<16x32xf32>
    %cst_207 = arith.constant dense<0.000000e+00> : vector<16xf32>
    %331 = vector.multi_reduction <add>, %330, %cst_207 [1] : vector<16x32xf32> to vector<16xf32>
    %332 = vector.shape_cast %331 : vector<16xf32> to vector<16x1xf32>
    %cst_208 = arith.constant 3.200000e+01 : f32
    %333 = vector.broadcast %cst_208 : f32 to vector<16x1xf32>
    %334 = arith.divf %332, %333 : vector<16x1xf32>
    %335 = vector.broadcast %327 : vector<16x1xf32> to vector<16x32xf32>
    %336 = arith.subf %319, %335 : vector<16x32xf32>
    %cst_209 = arith.constant 9.99999996E-13 : f32
    %337 = vector.broadcast %cst_209 : f32 to vector<16x1xf32>
    %338 = arith.addf %334, %337 : vector<16x1xf32>
    %339 = math.rsqrt %338 : vector<16x1xf32>
    %340 = vector.broadcast %339 : vector<16x1xf32> to vector<16x32xf32>
    %341 = arith.mulf %336, %340 : vector<16x32xf32>
    %342 = vector.broadcast %321 : vector<1x32xf32> to vector<16x32xf32>
    %343 = arith.mulf %341, %342 : vector<16x32xf32>
    %344 = vector.broadcast %323 : vector<1x32xf32> to vector<16x32xf32>
    %345 = arith.addf %343, %344 : vector<16x32xf32>
    %c0_210 = arith.constant 0 : index
    %c0_211 = arith.constant 0 : index
    %346 = vector.load %arg2[%c0_210, %c0_211] : memref<2x16xf32, #tpu.memory_space<vmem>>, vector<2x16xf32>
    %cst_212 = arith.constant dense<0.000000e+00> : vector<2x32xf32>
    %347 = tpu.matmul %346, %345, %cst_212 {dimension_numbers = #tpu.dot_dimension_numbers<[1], [0], [0], [1], [0, 0, 1, 1], [], []>} : vector<2x16xf32>, vector<16x32xf32>, vector<2x32xf32> -> vector<2x32xf32>
    %c0_213 = arith.constant 0 : index
    %c0_214 = arith.constant 0 : index
    %348 = vector.load %arg21[%c0_213, %c0_214] : memref<32x32xf32, #tpu.memory_space<vmem>>, vector<32x32xf32>
    %cst_215 = arith.constant dense<0.000000e+00> : vector<2x32xf32>
    %349 = tpu.matmul %347, %348, %cst_215 {dimension_numbers = #tpu.dot_dimension_numbers<[1], [0], [0], [1], [0, 0, 1, 1], [], []>} : vector<2x32xf32>, vector<32x32xf32>, vector<2x32xf32> -> vector<2x32xf32>
    %c0_216 = arith.constant 0 : index
    %c0_217 = arith.constant 0 : index
    %350 = vector.load %arg22[%c0_216, %c0_217] : memref<1x32xf32, #tpu.memory_space<vmem>>, vector<1x32xf32>
    %351 = vector.broadcast %350 : vector<1x32xf32> to vector<2x32xf32>
    %352 = arith.addf %349, %351 : vector<2x32xf32>
    %353 = math.tanh %352 : vector<2x32xf32>
    %c0_218 = arith.constant 0 : index
    %c0_219 = arith.constant 0 : index
    %354 = vector.load %arg23[%c0_218, %c0_219] : memref<1x32xf32, #tpu.memory_space<vmem>>, vector<1x32xf32>
    %355 = vector.broadcast %354 : vector<1x32xf32> to vector<2x32xf32>
    %356 = arith.mulf %353, %355 : vector<2x32xf32>
    %cst_220 = arith.constant dense<0.000000e+00> : vector<2xf32>
    %357 = vector.multi_reduction <add>, %356, %cst_220 [1] : vector<2x32xf32> to vector<2xf32>
    %358 = vector.shape_cast %357 : vector<2xf32> to vector<2x1xf32>
    %c0_221 = arith.constant 0 : index
    %c0_222 = arith.constant 0 : index
    %359 = vector.load %arg24[%c0_221, %c0_222] : memref<1x1xf32, #tpu.memory_space<vmem>>, vector<1x1xf32>
    %360 = vector.broadcast %359 : vector<1x1xf32> to vector<2x1xf32>
    %361 = arith.addf %358, %360 : vector<2x1xf32>
    %362 = arith.negf %361 : vector<2x1xf32>
    %363 = math.exp %362 : vector<2x1xf32>
    %cst_223 = arith.constant 1.000000e+00 : f32
    %364 = vector.broadcast %cst_223 : f32 to vector<2x1xf32>
    %365 = arith.addf %364, %363 : vector<2x1xf32>
    %366 = arith.divf %364, %365 : vector<2x1xf32>
    %c0_224 = arith.constant 0 : index
    %c0_225 = arith.constant 0 : index
    %367 = vector.load %arg25[%c0_224, %c0_225] : memref<2x1xf32, #tpu.memory_space<vmem>>, vector<2x1xf32>
    tpu.vector_store %arg25[%c0_224, %c0_225], %366 {strides = array<i32>} : memref<2x1xf32, #tpu.memory_space<vmem>>, vector<2x1xf32>,
    return
  }
}

</mosaic_0001>

<llo_original>
// kernel: legal_model_forward.1
$region0: #{legal_model_forward.1}
  #allocation0 [shape = 'u32[]', space=smem, size = 0x4, offset = 0x4, fixed_abs, tag = 'smem constant byte address 0x4 - core index']
  #allocation1 [shape = 'u32[144,128]{1,0:T(1,128)}', space=vmem, size = 0x12000, scoped, tag = 'internal scratch']
  #allocation2 [shape = 'f32[1,1]{1,0:T(1,128)S(1)}', space=vmem, size = 0x200, scoped, tag = 'scoped memory for legal_model_forward.1']
  %s0 = inlined_call_operand.vmem [shape: f32[16,32], index: 0, kind: input, shape index: {}]
  %s1 = inlined_call_operand.vmem [shape: f32[16,16], index: 1, kind: input, shape index: {}]
  %s2 = inlined_call_operand.vmem [shape: f32[2,16], index: 2, kind: input, shape index: {}]
  %s3 = inlined_call_operand.vmem [shape: f32[1,32], index: 3, kind: input, shape index: {}]
  %s4 = inlined_call_operand.vmem [shape: f32[1,32], index: 4, kind: input, shape index: {}]
  %s5 = inlined_call_operand.vmem [shape: f32[4,32,16], index: 5, kind: input, shape index: {}]
  %s6 = inlined_call_operand.vmem [shape: f32[4,1,16], index: 6, kind: input, shape index: {}]
  %s7 = inlined_call_operand.vmem [shape: f32[4,32,16], index: 7, kind: input, shape index: {}]
  %s8 = inlined_call_operand.vmem [shape: f32[4,1,16], index: 8, kind: input, shape index: {}]
  %s9 = inlined_call_operand.vmem [shape: f32[4,32,16], index: 9, kind: input, shape index: {}]
  %s10 = inlined_call_operand.vmem [shape: f32[4,1,16], index: 10, kind: input, shape index: {}]
  %s11 = inlined_call_operand.vmem [shape: f32[4,16,32], index: 11, kind: input, shape index: {}]
  %s12 = inlined_call_operand.vmem [shape: f32[2,1,32], index: 12, kind: input, shape index: {}]
  %s13 = inlined_call_operand.vmem [shape: f32[2,1,32], index: 13, kind: input, shape index: {}]
  %s14 = inlined_call_operand.vmem [shape: f32[2,1,32], index: 14, kind: input, shape index: {}]
  %s15 = inlined_call_operand.vmem [shape: f32[2,32,64], index: 15, kind: input, shape index: {}]
  %s16 = inlined_call_operand.vmem [shape: f32[2,1,64], index: 16, kind: input, shape index: {}]
  %s17 = inlined_call_operand.vmem [shape: f32[2,64,32], index: 17, kind: input, shape index: {}]
  %s18 = inlined_call_operand.vmem [shape: f32[2,1,32], index: 18, kind: input, shape index: {}]
  %s19 = inlined_call_operand.vmem [shape: f32[2,1,32], index: 19, kind: input, shape index: {}]
  %s20 = inlined_call_operand.vmem [shape: f32[2,1,32], index: 20, kind: input, shape index: {}]
  %s21 = inlined_call_operand.vmem [shape: f32[32,32], index: 21, kind: input, shape index: {}]
  %s22 = inlined_call_operand.vmem [shape: f32[1,32], index: 22, kind: input, shape index: {}]
  %s23 = inlined_call_operand.vmem [shape: f32[1,32], index: 23, kind: input, shape index: {}]
  %s24 = inlined_call_operand.<no memory space> [shape: f32[1,1], index: 24, kind: input, shape index: {}]
  %s25 = inlined_call_operand.vmem [shape: f32[2,1], index: 25, kind: output, shape index: {}]
  %s26 = sld [smem:[#allocation0]]
  $region110: #{legal_model_forward.1} parent=0
    _
  %s28 = ssub.s32 1, %s26
  %s29 = scalar_select 0, %s28, %s26
  %v30 = vstv %s24
  %31 = vst [vmem:[#allocation2] sm:$0x1] %v30
  // Predicated region
  $region2: #{legal_model_forward.1} parent=0 // pred_check
    _
  $region3: #{legal_model_forward.1} parent=0 // pred_check_branch
    %33 = sbr.rel (0) target = $region5
  $region4: #{legal_model_forward.1} parent=0 // pred_region
    _
  $region5: #{legal_model_forward.1} parent=0 // pred_fallthru
    _
  // Predicated region
  $region6: #{legal_model_forward.1} parent=0 // pred_check
    _
  $region7: #{legal_model_forward.1} parent=0 // pred_check_branch
    %35 = sbr.rel (0) target = $region9
  $region8: #{legal_model_forward.1} parent=0 // pred_region
    _
  $region9: #{legal_model_forward.1} parent=0 // pred_fallthru
    _
  // Predicated region
  $region10: #{legal_model_forward.1} parent=0 // pred_check
    _
  $region11: #{legal_model_forward.1} parent=0 // pred_check_branch
    %37 = sbr.rel (0) target = $region13
  $region12: #{legal_model_forward.1} parent=0 // pred_region
    _
  $region13: #{legal_model_forward.1} parent=0 // pred_fallthru
    _
  // Predicated region
  $region14: #{legal_model_forward.1} parent=0 // pred_check
    _
  $region15: #{legal_model_forward.1} parent=0 // pred_check_branch
    %39 = sbr.rel (0) target = $region17
  $region16: #{legal_model_forward.1} parent=0 // pred_region
    _
  $region17: #{legal_model_forward.1} parent=0 // pred_fallthru
    _
  // Predicated region
  $region18: #{legal_model_forward.1} parent=0 // pred_check
    _
  $region19: #{legal_model_forward.1} parent=0 // pred_check_branch
    %41 = sbr.rel (0) target = $region21
  $region20: #{legal_model_forward.1} parent=0 // pred_region
    _
  $region21: #{legal_model_forward.1} parent=0 // pred_fallthru
    _
  // Predicated region
  $region22: #{legal_model_forward.1} parent=0 // pred_check
    _
  $region23: #{legal_model_forward.1} parent=0 // pred_check_branch
    %43 = sbr.rel (0) target = $region25
  $region24: #{legal_model_forward.1} parent=0 // pred_region
    _
  $region25: #{legal_model_forward.1} parent=0 // pred_fallthru
    _
  // Predicated region
  $region26: #{legal_model_forward.1} parent=0 // pred_check
    _
  $region27: #{legal_model_forward.1} parent=0 // pred_check_branch
    %45 = sbr.rel (0) target = $region29
  $region28: #{legal_model_forward.1} parent=0 // pred_region
    _
  $region29: #{legal_model_forward.1} parent=0 // pred_fallthru
    _
  // Predicated region
  $region30: #{legal_model_forward.1} parent=0 // pred_check
    _
  $region31: #{legal_model_forward.1} parent=0 // pred_check_branch
    %47 = sbr.rel (0) target = $region33
  $region32: #{legal_model_forward.1} parent=0 // pred_region
    _
  $region33: #{legal_model_forward.1} parent=0 // pred_fallthru
    _
  // Predicated region
  $region34: #{legal_model_forward.1} parent=0 // pred_check
    _
  $region35: #{legal_model_forward.1} parent=0 // pred_check_branch
    %49 = sbr.rel (0) target = $region37
  $region36: #{legal_model_forward.1} parent=0 // pred_region
    _
  $region37: #{legal_model_forward.1} parent=0 // pred_fallthru
    _
  // Predicated region
  $region38: #{legal_model_forward.1} parent=0 // pred_check
    _
  $region39: #{legal_model_forward.1} parent=0 // pred_check_branch
    %51 = sbr.rel (0) target = $region41
  $region40: #{legal_model_forward.1} parent=0 // pred_region
    _
  $region41: #{legal_model_forward.1} parent=0 // pred_fallthru
    _
  // Predicated region
  $region42: #{legal_model_forward.1} parent=0 // pred_check
    _
  $region43: #{legal_model_forward.1} parent=0 // pred_check_branch
    %53 = sbr.rel (0) target = $region45
  $region44: #{legal_model_forward.1} parent=0 // pred_region
    _
  $region45: #{legal_model_forward.1} parent=0 // pred_fallthru
    _
  // Predicated region
  $region46: #{legal_model_forward.1} parent=0 // pred_check
    _
  $region47: #{legal_model_forward.1} parent=0 // pred_check_branch
    %55 = sbr.rel (0) target = $region49
  $region48: #{legal_model_forward.1} parent=0 // pred_region
    _
  $region49: #{legal_model_forward.1} parent=0 // pred_fallthru
    _
  // Predicated region
  $region50: #{legal_model_forward.1} parent=0 // pred_check
    _
  $region51: #{legal_model_forward.1} parent=0 // pred_check_branch
    %57 = sbr.rel (0) target = $region53
  $region52: #{legal_model_forward.1} parent=0 // pred_region
    _
  $region53: #{legal_model_forward.1} parent=0 // pred_fallthru
    _
  // Predicated region
  $region54: #{legal_model_forward.1} parent=0 // pred_check
    _
  $region55: #{legal_model_forward.1} parent=0 // pred_check_branch
    %59 = sbr.rel (0) target = $region57
  $region56: #{legal_model_forward.1} parent=0 // pred_region
    _
  $region57: #{legal_model_forward.1} parent=0 // pred_fallthru
    _
  // Predicated region
  $region58: #{legal_model_forward.1} parent=0 // pred_check
    _
  $region59: #{legal_model_forward.1} parent=0 // pred_check_branch
    %61 = sbr.rel (0) target = $region61
  $region60: #{legal_model_forward.1} parent=0 // pred_region
    _
  $region61: #{legal_model_forward.1} parent=0 // pred_fallthru
    _
  // Predicated region
  $region62: #{legal_model_forward.1} parent=0 // pred_check
    _
  $region63: #{legal_model_forward.1} parent=0 // pred_check_branch
    %63 = sbr.rel (0) target = $region65
  $region64: #{legal_model_forward.1} parent=0 // pred_region
    _
  $region65: #{legal_model_forward.1} parent=0 // pred_fallthru
    _
  // Predicated region
  $region66: #{legal_model_forward.1} parent=0 // pred_check
    _
  $region67: #{legal_model_forward.1} parent=0 // pred_check_branch
    %65 = sbr.rel (0) target = $region69
  $region68: #{legal_model_forward.1} parent=0 // pred_region
    _
  $region69: #{legal_model_forward.1} parent=0 // pred_fallthru
    _
  // Predicated region
  $region70: #{legal_model_forward.1} parent=0 // pred_check
    _
  $region71: #{legal_model_forward.1} parent=0 // pred_check_branch
    %67 = sbr.rel (0) target = $region73
  $region72: #{legal_model_forward.1} parent=0 // pred_region
    _
  $region73: #{legal_model_forward.1} parent=0 // pred_fallthru
    _
  // Predicated region
  $region74: #{legal_model_forward.1} parent=0 // pred_check
    _
  $region75: #{legal_model_forward.1} parent=0 // pred_check_branch
    %69 = sbr.rel (0) target = $region77
  $region76: #{legal_model_forward.1} parent=0 // pred_region
    _
  $region77: #{legal_model_forward.1} parent=0 // pred_fallthru
    _
  // Predicated region
  $region78: #{legal_model_forward.1} parent=0 // pred_check
    _
  $region79: #{legal_model_forward.1} parent=0 // pred_check_branch
    %71 = sbr.rel (0) target = $region81
  $region80: #{legal_model_forward.1} parent=0 // pred_region
    _
  $region81: #{legal_model_forward.1} parent=0 // pred_fallthru
    _
  // Predicated region
  $region82: #{legal_model_forward.1} parent=0 // pred_check
    _
  $region83: #{legal_model_forward.1} parent=0 // pred_check_branch
    %73 = sbr.rel (0) target = $region85
  $region84: #{legal_model_forward.1} parent=0 // pred_region
    _
  $region85: #{legal_model_forward.1} parent=0 // pred_fallthru
    _
  // Predicated region
  $region86: #{legal_model_forward.1} parent=0 // pred_check
    _
  $region87: #{legal_model_forward.1} parent=0 // pred_check_branch
    %75 = sbr.rel (0) target = $region89
  $region88: #{legal_model_forward.1} parent=0 // pred_region
    _
  $region89: #{legal_model_forward.1} parent=0 // pred_fallthru
    _
  // Predicated region
  $region90: #{legal_model_forward.1} parent=0 // pred_check
    _
  $region91: #{legal_model_forward.1} parent=0 // pred_check_branch
    %77 = sbr.rel (0) target = $region93
  $region92: #{legal_model_forward.1} parent=0 // pred_region
    _
  $region93: #{legal_model_forward.1} parent=0 // pred_fallthru
    _
  // Predicated region
  $region94: #{legal_model_forward.1} parent=0 // pred_check
    _
  $region95: #{legal_model_forward.1} parent=0 // pred_check_branch
    %79 = sbr.rel (0) target = $region97
  $region96: #{legal_model_forward.1} parent=0 // pred_region
    _
  $region97: #{legal_model_forward.1} parent=0 // pred_fallthru
    _
  // Predicated region
  $region98: #{legal_model_forward.1} parent=0 // pred_check
    _
  $region99: #{legal_model_forward.1} parent=0 // pred_check_branch
    %81 = sbr.rel (0) target = $region101
  $region100: #{legal_model_forward.1} parent=0 // pred_region
    _
  $region101: #{legal_model_forward.1} parent=0 // pred_fallthru
    _
  %v82 = vld [vmem:[%s1] sm:$0xff]
  %v83 = vld [vmem:[%s1 + $0x8] sm:$0xff]
  %v84 = vld [vmem:[%s0] sm:$0xff]
  %v85 = vld [vmem:[%s0 + $0x8] sm:$0xff]
  %v86 = vld [vmem:[%s3] sm:$0x1]
  %v87 = vld [vmem:[%s4] sm:$0x1]
  %vm88 = vcmask 261120
  %v89 = vsel %vm88, %v84, 0.0
  %90 = vadd.xlane.f32.xlu0 %v89
  %v91 = vpop.xlane.xlu0 %90
  %v92 = vsel %vm88, %v85, 0.0
  %93 = vadd.xlane.f32.xlu0 %v92
  %v94 = vpop.xlane.xlu0 %93
  %v95 = vrcp.pop 32.0
  %v96 = vmul.f32 %v91, %v95
  %v97 = vmul.f32 %v94, %v95
  %v98 = vsub.f32 %v84, %v96
  %v99 = vsub.f32 %v85, %v97
  %v100 = vmul.f32 %v98, %v98
  %v101 = vmul.f32 %v99, %v99
  %v102 = vsel %vm88, %v100, 0.0
  %103 = vadd.xlane.f32.xlu0 %v102
  %v104 = vpop.xlane.xlu0 %103
  %v105 = vsel %vm88, %v101, 0.0
  %106 = vadd.xlane.f32.xlu0 %v105
  %v107 = vpop.xlane.xlu0 %106
  %v108 = vmul.f32 %v104, %v95
  %v109 = vmul.f32 %v107, %v95
  %v110 = vadd.f32 %v108, 1e-12
  %v111 = vadd.f32 %v109, 1e-12
  %v112 = vrsqrt.pop %v110
  %v113 = vrsqrt.pop %v111
  %v114 = vmul.f32 %v98, %v112
  %v115 = vmul.f32 %v99, %v113
  %v117 = vlaneseq
  %v118 = vshrl.u32 %v117, 7
  %v119 = vsub.s32 0, %v118
  %v120 = vrot.slane %v86, %v119
  %v122 = vmul.f32 %v114, %v120
  %v123 = vmul.f32 %v115, %v120
  %v125 = vlaneseq
  %v126 = vshrl.u32 %v125, 7
  %v127 = vsub.s32 0, %v126
  %v128 = vrot.slane %v87, %v127
  %v130 = vadd.f32 %v122, %v128
  %v131 = vadd.f32 %v123, %v128
  %v132 = vld [vmem:[%s5] sm:$0xff]
  %v133 = vld [vmem:[%s5 + $0x8] sm:$0xff]
  %v134 = vld [vmem:[%s5 + $0x10] sm:$0xff]
  %v135 = vld [vmem:[%s5 + $0x18] sm:$0xff]
  %v136 = vld [vmem:[%s6] sm:$0x1]
  %v138 = vlaneseq
  %v139 = vshrl.u32 %v138, 7
  %v140 = vsub.s32 0, %v139
  %v141 = vrot.slane %v136, %v140
  %v144 = vsel %vm88, %v130, 0
  %v147 = vsel %vm88, %v131, 0
  %149 = vmatprep.subr.mxu0 0.0
  %150 = vmatpush1.msra.mxu0 %v132
  %151 = vmatprep.subr.mxu0 0.0
  %152 = vmatpush1.msra.mxu0 %v133
  %153 = vmatprep.subr.mxu0 0.0
  %154 = vmatpush1.msra.mxu0 %v134
  %155 = vmatprep.subr.mxu0 0.0
  %156 = vmatpush1.msra.mxu0 %v135
  %157 = vmatprep.subr.mxu0 0.0
  %158 = vmatpush1.msra.mxu0 0.0
  %159 = vmatprep.subr.mxu0 0.0
  %160 = vmatpush1.msra.mxu0 0.0
  %161 = vmatprep.subr.mxu0 0.0
  %162 = vmatpush1.msra.mxu0 0.0
  %163 = vmatprep.subr.mxu0 0.0
  %164 = vmatpush1.msra.mxu0 0.0
  %165 = vmatprep.subr.mxu0 0.0
  %166 = vmatpush1.msra.mxu0 0.0
  %167 = vmatprep.subr.mxu0 0.0
  %168 = vmatpush1.msra.mxu0 0.0
  %169 = vmatprep.subr.mxu0 0.0
  %170 = vmatpush1.msra.mxu0 0.0
  %171 = vmatprep.subr.mxu0 0.0
  %172 = vmatpush1.msra.mxu0 0.0
  %173 = vmatprep.subr.mxu0 0.0
  %174 = vmatpush1.msra.mxu0 0.0
  %175 = vmatprep.subr.mxu0 0.0
  %176 = vmatpush1.msra.mxu0 0.0
  %177 = vmatprep.subr.mxu0 0.0
  %178 = vmatpush1.msra.mxu0 0.0
  %179 = vmatprep.subr.mxu0 0.0
  %180 = vmatpush1.msra.mxu0 0.0
  %181 = vmatprep.subr.mxu0 0.0
  %182 = vmatpush1.msra.mxu0 0.0
  %183 = vmatprep.subr.mxu0 0.0
  %184 = vmatpush1.msra.mxu0 0.0
  %185 = vmatprep.subr.mxu0 0.0
  %186 = vmatpush1.msra.mxu0 0.0
  %187 = vmatprep.subr.mxu0 0.0
  %188 = vmatpush1.msra.mxu0 0.0
  %189 = vmatprep.subr.mxu0 0.0
  %190 = vmatpush1.msra.mxu0 0.0
  %191 = vmatprep.subr.mxu0 0.0
  %192 = vmatpush1.msra.mxu0 0.0
  %193 = vmatprep.subr.mxu0 0.0
  %194 = vmatpush1.msra.mxu0 0.0
  %195 = vmatprep.subr.mxu0 0.0
  %196 = vmatpush1.msra.mxu0 0.0
  %197 = vmatprep.subr.mxu0 0.0
  %198 = vmatpush1.msra.mxu0 0.0
  %199 = vmatprep.subr.mxu0 0.0
  %200 = vmatpush1.msra.mxu0 0.0
  %201 = vmatprep.subr.mxu0 0.0
  %202 = vmatpush1.msra.mxu0 0.0
  %203 = vmatprep.subr.mxu0 0.0
  %204 = vmatpush1.msra.mxu0 0.0
  %205 = vmatprep.subr.mxu0 0.0
  %206 = vmatpush1.msra.mxu0 0.0
  %207 = vmatprep.subr.mxu0 0.0
  %208 = vmatpush1.msra.mxu0 0.0
  %209 = vmatprep.subr.mxu0 0.0
  %210 = vmatpush1.msra.mxu0 0.0
  %211 = vmatprep.subr.mxu0 0.0
  %212 = vmatpush1.msra.mxu0 0.0
  %213 = vmatprep.mubr.f32.mxu0 0.0
  %214 = vmatmul.mubr.f32.gmra.mrb[0].mxu0 %v144
  %v215 = vpop.f32.mrb[0].mxu0
  %v216 = vadd.f32 %v141, %v215
  %v217 = vpop.f32.mrb[0].mxu0
  %218 = vmatprep.mubr.f32.mxu0 0.0
  %219 = vmatmul.mubr.f32.gmra.mrb[0].mxu0 %v147
  %v220 = vpop.f32.mrb[0].mxu0
  %v221 = vadd.f32 %v141, %v220
  %v222 = vpop.f32.mrb[0].mxu0
  %223 = vdwg.mxu0
  %v224 = vld [vmem:[%s7] sm:$0xff]
  %v225 = vld [vmem:[%s7 + $0x8] sm:$0xff]
  %v226 = vld [vmem:[%s7 + $0x10] sm:$0xff]
  %v227 = vld [vmem:[%s7 + $0x18] sm:$0xff]
  %v228 = vld [vmem:[%s8] sm:$0x1]
  %v230 = vlaneseq
  %v231 = vshrl.u32 %v230, 7
  %v232 = vsub.s32 0, %v231
  %v233 = vrot.slane %v228, %v232
  %235 = vmatprep.subr.mxu0 0.0
  %236 = vmatpush1.msra.mxu0 %v224
  %237 = vmatprep.subr.mxu0 0.0
  %238 = vmatpush1.msra.mxu0 %v225
  %239 = vmatprep.subr.mxu0 0.0
  %240 = vmatpush1.msra.mxu0 %v226
  %241 = vmatprep.subr.mxu0 0.0
  %242 = vmatpush1.msra.mxu0 %v227
  %243 = vmatprep.subr.mxu0 0.0
  %244 = vmatpush1.msra.mxu0 0.0
  %245 = vmatprep.subr.mxu0 0.0
  %246 = vmatpush1.msra.mxu0 0.0
  %247 = vmatprep.subr.mxu0 0.0
  %248 = vmatpush1.msra.mxu0 0.0
  %249 = vmatprep.subr.mxu0 0.0
  %250 = vmatpush1.msra.mxu0 0.0
  %251 = vmatprep.subr.mxu0 0.0
  %252 = vmatpush1.msra.mxu0 0.0
  %253 = vmatprep.subr.mxu0 0.0
  %254 = vmatpush1.msra.mxu0 0.0
  %255 = vmatprep.subr.mxu0 0.0
  %256 = vmatpush1.msra.mxu0 0.0
  %257 = vmatprep.subr.mxu0 0.0
  %258 = vmatpush1.msra.mxu0 0.0
  %259 = vmatprep.subr.mxu0 0.0
  %260 = vmatpush1.msra.mxu0 0.0
  %261 = vmatprep.subr.mxu0 0.0
  %262 = vmatpush1.msra.mxu0 0.0
  %263 = vmatprep.subr.mxu0 0.0
  %264 = vmatpush1.msra.mxu0 0.0
  %265 = vmatprep.subr.mxu0 0.0
  %266 = vmatpush1.msra.mxu0 0.0
  %267 = vmatprep.subr.mxu0 0.0
  %268 = vmatpush1.msra.mxu0 0.0
  %269 = vmatprep.subr.mxu0 0.0
  %270 = vmatpush1.msra.mxu0 0.0
  %271 = vmatprep.subr.mxu0 0.0
  %272 = vmatpush1.msra.mxu0 0.0
  %273 = vmatprep.subr.mxu0 0.0
  %274 = vmatpush1.msra.mxu0 0.0
  %275 = vmatprep.subr.mxu0 0.0
  %276 = vmatpush1.msra.mxu0 0.0
  %277 = vmatprep.subr.mxu0 0.0
  %278 = vmatpush1.msra.mxu0 0.0
  %279 = vmatprep.subr.mxu0 0.0
  %280 = vmatpush1.msra.mxu0 0.0
  %281 = vmatprep.subr.mxu0 0.0
  %282 = vmatpush1.msra.mxu0 0.0
  %283 = vmatprep.subr.mxu0 0.0
  %284 = vmatpush1.msra.mxu0 0.0
  %285 = vmatprep.subr.mxu0 0.0
  %286 = vmatpush1.msra.mxu0 0.0
  %287 = vmatprep.subr.mxu0 0.0
  %288 = vmatpush1.msra.mxu0 0.0
  %289 = vmatprep.subr.mxu0 0.0
  %290 = vmatpush1.msra.mxu0 0.0
  %291 = vmatprep.subr.mxu0 0.0
  %292 = vmatpush1.msra.mxu0 0.0
  %293 = vmatprep.subr.mxu0 0.0
  %294 = vmatpush1.msra.mxu0 0.0
  %295 = vmatprep.subr.mxu0 0.0
  %296 = vmatpush1.msra.mxu0 0.0
  %297 = vmatprep.subr.mxu0 0.0
  %298 = vmatpush1.msra.mxu0 0.0
  %299 = vmatprep.mubr.f32.mxu0 0.0
  %300 = vmatmul.mubr.f32.gmra.mrb[0].mxu0 %v144
  %v301 = vpop.f32.mrb[0].mxu0
  %v302 = vadd.f32 %v233, %v301
  %v303 = vpop.f32.mrb[0].mxu0
  %304 = vmatprep.mubr.f32.mxu0 0.0
  %305 = vmatmul.mubr.f32.gmra.mrb[0].mxu0 %v147
  %v306 = vpop.f32.mrb[0].mxu0
  %v307 = vadd.f32 %v233, %v306
  %v308 = vpop.f32.mrb[0].mxu0
  %309 = vdwg.mxu0
  %v310 = vld [vmem:[%s9] sm:$0xff]
  %v311 = vld [vmem:[%s9 + $0x8] sm:$0xff]
  %v312 = vld [vmem:[%s9 + $0x10] sm:$0xff]
  %v313 = vld [vmem:[%s9 + $0x18] sm:$0xff]
  %v314 = vld [vmem:[%s10] sm:$0x1]
  %v316 = vlaneseq
  %v317 = vshrl.u32 %v316, 7
  %v318 = vsub.s32 0, %v317
  %v319 = vrot.slane %v314, %v318
  %321 = vmatprep.subr.mxu0 0.0
  %322 = vmatpush1.msra.mxu0 %v310
  %323 = vmatprep.subr.mxu0 0.0
  %324 = vmatpush1.msra.mxu0 %v311
  %325 = vmatprep.subr.mxu0 0.0
  %326 = vmatpush1.msra.mxu0 %v312
  %327 = vmatprep.subr.mxu0 0.0
  %328 = vmatpush1.msra.mxu0 %v313
  %329 = vmatprep.subr.mxu0 0.0
  %330 = vmatpush1.msra.mxu0 0.0
  %331 = vmatprep.subr.mxu0 0.0
  %332 = vmatpush1.msra.mxu0 0.0
  %333 = vmatprep.subr.mxu0 0.0
  %334 = vmatpush1.msra.mxu0 0.0
  %335 = vmatprep.subr.mxu0 0.0
  %336 = vmatpush1.msra.mxu0 0.0
  %337 = vmatprep.subr.mxu0 0.0
  %338 = vmatpush1.msra.mxu0 0.0
  %339 = vmatprep.subr.mxu0 0.0
  %340 = vmatpush1.msra.mxu0 0.0
  %341 = vmatprep.subr.mxu0 0.0
  %342 = vmatpush1.msra.mxu0 0.0
  %343 = vmatprep.subr.mxu0 0.0
  %344 = vmatpush1.msra.mxu0 0.0
  %345 = vmatprep.subr.mxu0 0.0
  %346 = vmatpush1.msra.mxu0 0.0
  %347 = vmatprep.subr.mxu0 0.0
  %348 = vmatpush1.msra.mxu0 0.0
  %349 = vmatprep.subr.mxu0 0.0
  %350 = vmatpush1.msra.mxu0 0.0
  %351 = vmatprep.subr.mxu0 0.0
  %352 = vmatpush1.msra.mxu0 0.0
  %353 = vmatprep.subr.mxu0 0.0
  %354 = vmatpush1.msra.mxu0 0.0
  %355 = vmatprep.subr.mxu0 0.0
  %356 = vmatpush1.msra.mxu0 0.0
  %357 = vmatprep.subr.mxu0 0.0
  %358 = vmatpush1.msra.mxu0 0.0
  %359 = vmatprep.subr.mxu0 0.0
  %360 = vmatpush1.msra.mxu0 0.0
  %361 = vmatprep.subr.mxu0 0.0
  %362 = vmatpush1.msra.mxu0 0.0
  %363 = vmatprep.subr.mxu0 0.0
  %364 = vmatpush1.msra.mxu0 0.0
  %365 = vmatprep.subr.mxu0 0.0
  %366 = vmatpush1.msra.mxu0 0.0
  %367 = vmatprep.subr.mxu0 0.0
  %368 = vmatpush1.msra.mxu0 0.0
  %369 = vmatprep.subr.mxu0 0.0
  %370 = vmatpush1.msra.mxu0 0.0
  %371 = vmatprep.subr.mxu0 0.0
  %372 = vmatpush1.msra.mxu0 0.0
  %373 = vmatprep.subr.mxu0 0.0
  %374 = vmatpush1.msra.mxu0 0.0
  %375 = vmatprep.subr.mxu0 0.0
  %376 = vmatpush1.msra.mxu0 0.0
  %377 = vmatprep.subr.mxu0 0.0
  %378 = vmatpush1.msra.mxu0 0.0
  %379 = vmatprep.subr.mxu0 0.0
  %380 = vmatpush1.msra.mxu0 0.0
  %381 = vmatprep.subr.mxu0 0.0
  %382 = vmatpush1.msra.mxu0 0.0
  %383 = vmatprep.subr.mxu0 0.0
  %384 = vmatpush1.msra.mxu0 0.0
  %385 = vmatprep.mubr.f32.mxu0 0.0
  %386 = vmatmul.mubr.f32.gmra.mrb[0].mxu0 %v144
  %v387 = vpop.f32.mrb[0].mxu0
  %v388 = vadd.f32 %v319, %v387
  %v389 = vpop.f32.mrb[0].mxu0
  %390 = vmatprep.mubr.f32.mxu0 0.0
  %391 = vmatmul.mubr.f32.gmra.mrb[0].mxu0 %v147
  %v392 = vpop.f32.mrb[0].mxu0
  %v393 = vadd.f32 %v319, %v392
  %v394 = vpop.f32.mrb[0].mxu0
  %395 = vdwg.mxu0
  %vm396 = vcmask 130048
  %v398 = vsel %vm396, %v216, 0
  %v401 = vsel %vm396, %v221, 0
  %v404 = vsel %vm396, %v302, 0
  %v407 = vsel %vm396, %v307, 0
  %409 = vmatprep.subr.mxu0 0.0
  %410 = vmatpush1.xpose.msra.mxu0 %v404
  %411 = vmatprep.subr.mxu0 0.0
  %412 = vmatpush1.xpose.msra.mxu0 %v407
  %413 = vmatprep.subr.mxu0 0.0
  %414 = vmatpush1.xpose.msra.mxu0 0.0
  %415 = vmatprep.subr.mxu0 0.0
  %416 = vmatpush1.xpose.msra.mxu0 0.0
  %417 = vmatprep.subr.mxu0 0.0
  %418 = vmatpush1.xpose.msra.mxu0 0.0
  %419 = vmatprep.subr.mxu0 0.0
  %420 = vmatpush1.xpose.msra.mxu0 0.0
  %421 = vmatprep.subr.mxu0 0.0
  %422 = vmatpush1.xpose.msra.mxu0 0.0
  %423 = vmatprep.subr.mxu0 0.0
  %424 = vmatpush1.xpose.msra.mxu0 0.0
  %425 = vmatprep.subr.mxu0 0.0
  %426 = vmatpush1.xpose.msra.mxu0 0.0
  %427 = vmatprep.subr.mxu0 0.0
  %428 = vmatpush1.xpose.msra.mxu0 0.0
  %429 = vmatprep.subr.mxu0 0.0
  %430 = vmatpush1.xpose.msra.mxu0 0.0
  %431 = vmatprep.subr.mxu0 0.0
  %432 = vmatpush1.xpose.msra.mxu0 0.0
  %433 = vmatprep.subr.mxu0 0.0
  %434 = vmatpush1.xpose.msra.mxu0 0.0
  %435 = vmatprep.subr.mxu0 0.0
  %436 = vmatpush1.xpose.msra.mxu0 0.0
  %437 = vmatprep.subr.mxu0 0.0
  %438 = vmatpush1.xpose.msra.mxu0 0.0
  %439 = vmatprep.subr.mxu0 0.0
  %440 = vmatpush1.xpose.msra.mxu0 0.0
  %441 = vmatprep.subr.mxu0 0.0
  %442 = vmatpush1.xpose.msra.mxu0 0.0
  %443 = vmatprep.subr.mxu0 0.0
  %444 = vmatpush1.xpose.msra.mxu0 0.0
  %445 = vmatprep.subr.mxu0 0.0
  %446 = vmatpush1.xpose.msra.mxu0 0.0
  %447 = vmatprep.subr.mxu0 0.0
  %448 = vmatpush1.xpose.msra.mxu0 0.0
  %449 = vmatprep.subr.mxu0 0.0
  %450 = vmatpush1.xpose.msra.mxu0 0.0
  %451 = vmatprep.subr.mxu0 0.0
  %452 = vmatpush1.xpose.msra.mxu0 0.0
  %453 = vmatprep.subr.mxu0 0.0
  %454 = vmatpush1.xpose.msra.mxu0 0.0
  %455 = vmatprep.subr.mxu0 0.0
  %456 = vmatpush1.xpose.msra.mxu0 0.0
  %457 = vmatprep.subr.mxu0 0.0
  %458 = vmatpush1.xpose.msra.mxu0 0.0
  %459 = vmatprep.subr.mxu0 0.0
  %460 = vmatpush1.xpose.msra.mxu0 0.0
  %461 = vmatprep.subr.mxu0 0.0
  %462 = vmatpush1.xpose.msra.mxu0 0.0
  %463 = vmatprep.subr.mxu0 0.0
  %464 = vmatpush1.xpose.msra.mxu0 0.0
  %465 = vmatprep.subr.mxu0 0.0
  %466 = vmatpush1.xpose.msra.mxu0 0.0
  %467 = vmatprep.subr.mxu0 0.0
  %468 = vmatpush1.xpose.msra.mxu0 0.0
  %469 = vmatprep.subr.mxu0 0.0
  %470 = vmatpush1.xpose.msra.mxu0 0.0
  %471 = vmatprep.subr.mxu0 0.0
  %472 = vmatpush1.xpose.msra.mxu0 0.0
  %473 = vmatprep.mubr.f32.mxu0 0.0
  %474 = vmatmul.mubr.f32.gmra.mrb[0].mxu0 %v398
  %v475 = vpop.f32.mrb[0].mxu0
  %v476 = vadd.f32 %v82, %v475
  %v477 = vpop.f32.mrb[0].mxu0
  %478 = vmatprep.mubr.f32.mxu0 0.0
  %479 = vmatmul.mubr.f32.gmra.mrb[0].mxu0 %v401
  %v480 = vpop.f32.mrb[0].mxu0
  %v481 = vadd.f32 %v83, %v480
  %v482 = vpop.f32.mrb[0].mxu0
  %483 = vdwg.mxu0
  %v484 = vsel %vm396, %v476, -inf
  %485 = vmax.xlane.f32.xlu0 %v484
  %v486 = vpop.xlane.xlu0 %485
  %v487 = vsel %vm396, %v481, -inf
  %488 = vmax.xlane.f32.xlu0 %v487
  %v489 = vpop.xlane.xlu0 %488
  %v490 = vsub.f32 %v476, %v486
  %v491 = vsub.f32 %v481, %v489
  %v492 = vmul.f32 %v490, 1.442695
  %v493 = vpow.pop %v492
  %v494 = vmul.f32 %v491, 1.442695
  %v495 = vpow.pop %v494
  %v496 = vsel %vm396, %v493, 0.0
  %497 = vadd.xlane.f32.xlu0 %v496
  %v498 = vpop.xlane.xlu0 %497
  %v499 = vsel %vm396, %v495, 0.0
  %500 = vadd.xlane.f32.xlu0 %v499
  %v501 = vpop.xlane.xlu0 %500
  %v502 = vrcp.pop %v498
  %v503 = vrcp.pop %v501
  %v504 = vmul.f32 %v493, %v502
  %v505 = vmul.f32 %v495, %v503
  %v507 = vsel %vm396, %v504, 0
  %v510 = vsel %vm396, %v505, 0
  %512 = vmatprep.subr.mxu0 0.0
  %513 = vmatpush1.msra.mxu0 %v388
  %514 = vmatprep.subr.mxu0 0.0
  %515 = vmatpush1.msra.mxu0 %v393
  %516 = vmatprep.subr.mxu0 0.0
  %517 = vmatpush1.msra.mxu0 0.0
  %518 = vmatprep.subr.mxu0 0.0
  %519 = vmatpush1.msra.mxu0 0.0
  %520 = vmatprep.subr.mxu0 0.0
  %521 = vmatpush1.msra.mxu0 0.0
  %522 = vmatprep.subr.mxu0 0.0
  %523 = vmatpush1.msra.mxu0 0.0
  %524 = vmatprep.subr.mxu0 0.0
  %525 = vmatpush1.msra.mxu0 0.0
  %526 = vmatprep.subr.mxu0 0.0
  %527 = vmatpush1.msra.mxu0 0.0
  %528 = vmatprep.subr.mxu0 0.0
  %529 = vmatpush1.msra.mxu0 0.0
  %530 = vmatprep.subr.mxu0 0.0
  %531 = vmatpush1.msra.mxu0 0.0
  %532 = vmatprep.subr.mxu0 0.0
  %533 = vmatpush1.msra.mxu0 0.0
  %534 = vmatprep.subr.mxu0 0.0
  %535 = vmatpush1.msra.mxu0 0.0
  %536 = vmatprep.subr.mxu0 0.0
  %537 = vmatpush1.msra.mxu0 0.0
  %538 = vmatprep.subr.mxu0 0.0
  %539 = vmatpush1.msra.mxu0 0.0
  %540 = vmatprep.subr.mxu0 0.0
  %541 = vmatpush1.msra.mxu0 0.0
  %542 = vmatprep.subr.mxu0 0.0
  %543 = vmatpush1.msra.mxu0 0.0
  %544 = vmatprep.subr.mxu0 0.0
  %545 = vmatpush1.msra.mxu0 0.0
  %546 = vmatprep.subr.mxu0 0.0
  %547 = vmatpush1.msra.mxu0 0.0
  %548 = vmatprep.subr.mxu0 0.0
  %549 = vmatpush1.msra.mxu0 0.0
  %550 = vmatprep.subr.mxu0 0.0
  %551 = vmatpush1.msra.mxu0 0.0
  %552 = vmatprep.subr.mxu0 0.0
  %553 = vmatpush1.msra.mxu0 0.0
  %554 = vmatprep.subr.mxu0 0.0
  %555 = vmatpush1.msra.mxu0 0.0
  %556 = vmatprep.subr.mxu0 0.0
  %557 = vmatpush1.msra.mxu0 0.0
  %558 = vmatprep.subr.mxu0 0.0
  %559 = vmatpush1.msra.mxu0 0.0
  %560 = vmatprep.subr.mxu0 0.0
  %561 = vmatpush1.msra.mxu0 0.0
  %562 = vmatprep.subr.mxu0 0.0
  %563 = vmatpush1.msra.mxu0 0.0
  %564 = vmatprep.subr.mxu0 0.0
  %565 = vmatpush1.msra.mxu0 0.0
  %566 = vmatprep.subr.mxu0 0.0
  %567 = vmatpush1.msra.mxu0 0.0
  %568 = vmatprep.subr.mxu0 0.0
  %569 = vmatpush1.msra.mxu0 0.0
  %570 = vmatprep.subr.mxu0 0.0
  %571 = vmatpush1.msra.mxu0 0.0
  %572 = vmatprep.subr.mxu0 0.0
  %573 = vmatpush1.msra.mxu0 0.0
  %574 = vmatprep.subr.mxu0 0.0
  %575 = vmatpush1.msra.mxu0 0.0
  %576 = vmatprep.mubr.f32.mxu0 0.0
  %577 = vmatmul.mubr.f32.gmra.mrb[0].mxu0 %v507
  %v578 = vpop.f32.mrb[0].mxu0
  %v579 = vadd.f32 0.0, %v578
  %v580 = vpop.f32.mrb[0].mxu0
  %581 = vmatprep.mubr.f32.mxu0 0.0
  %582 = vmatmul.mubr.f32.gmra.mrb[0].mxu0 %v510
  %v583 = vpop.f32.mrb[0].mxu0
  %v584 = vadd.f32 0.0, %v583
  %v585 = vpop.f32.mrb[0].mxu0
  %586 = vdwg.mxu0
  %v587 = vld [vmem:[%s11] sm:$0xff]
  %v588 = vld [vmem:[%s11 + $0x8] sm:$0xff]
  %s589 = scalar_lea.vmem %s5, 32
  %v590 = vld [vmem:[%s589] sm:$0xff]
  %v591 = vld [vmem:[%s589 + $0x8] sm:$0xff]
  %v592 = vld [vmem:[%s589 + $0x10] sm:$0xff]
  %v593 = vld [vmem:[%s589 + $0x18] sm:$0xff]
  %s594 = scalar_lea.vmem %s6, 1
  %v595 = vld [vmem:[%s594] sm:$0x1]
  %v597 = vlaneseq
  %v598 = vshrl.u32 %v597, 7
  %v599 = vsub.s32 0, %v598
  %v600 = vrot.slane %v595, %v599
  %602 = vmatprep.subr.mxu0 0.0
  %603 = vmatpush1.msra.mxu0 %v590
  %604 = vmatprep.subr.mxu0 0.0
  %605 = vmatpush1.msra.mxu0 %v591
  %606 = vmatprep.subr.mxu0 0.0
  %607 = vmatpush1.msra.mxu0 %v592
  %608 = vmatprep.subr.mxu0 0.0
  %609 = vmatpush1.msra.mxu0 %v593
  %610 = vmatprep.subr.mxu0 0.0
  %611 = vmatpush1.msra.mxu0 0.0
  %612 = vmatprep.subr.mxu0 0.0
  %613 = vmatpush1.msra.mxu0 0.0
  %614 = vmatprep.subr.mxu0 0.0
  %615 = vmatpush1.msra.mxu0 0.0
  %616 = vmatprep.subr.mxu0 0.0
  %617 = vmatpush1.msra.mxu0 0.0
  %618 = vmatprep.subr.mxu0 0.0
  %619 = vmatpush1.msra.mxu0 0.0
  %620 = vmatprep.subr.mxu0 0.0
  %621 = vmatpush1.msra.mxu0 0.0
  %622 = vmatprep.subr.mxu0 0.0
  %623 = vmatpush1.msra.mxu0 0.0
  %624 = vmatprep.subr.mxu0 0.0
  %625 = vmatpush1.msra.mxu0 0.0
  %626 = vmatprep.subr.mxu0 0.0
  %627 = vmatpush1.msra.mxu0 0.0
  %628 = vmatprep.subr.mxu0 0.0
  %629 = vmatpush1.msra.mxu0 0.0
  %630 = vmatprep.subr.mxu0 0.0
  %631 = vmatpush1.msra.mxu0 0.0
  %632 = vmatprep.subr.mxu0 0.0
  %633 = vmatpush1.msra.mxu0 0.0
  %634 = vmatprep.subr.mxu0 0.0
  %635 = vmatpush1.msra.mxu0 0.0
  %636 = vmatprep.subr.mxu0 0.0
  %637 = vmatpush1.msra.mxu0 0.0
  %638 = vmatprep.subr.mxu0 0.0
  %639 = vmatpush1.msra.mxu0 0.0
  %640 = vmatprep.subr.mxu0 0.0
  %641 = vmatpush1.msra.mxu0 0.0
  %642 = vmatprep.subr.mxu0 0.0
  %643 = vmatpush1.msra.mxu0 0.0
  %644 = vmatprep.subr.mxu0 0.0
  %645 = vmatpush1.msra.mxu0 0.0
  %646 = vmatprep.subr.mxu0 0.0
  %647 = vmatpush1.msra.mxu0 0.0
  %648 = vmatprep.subr.mxu0 0.0
  %649 = vmatpush1.msra.mxu0 0.0
  %650 = vmatprep.subr.mxu0 0.0
  %651 = vmatpush1.msra.mxu0 0.0
  %652 = vmatprep.subr.mxu0 0.0
  %653 = vmatpush1.msra.mxu0 0.0
  %654 = vmatprep.subr.mxu0 0.0
  %655 = vmatpush1.msra.mxu0 0.0
  %656 = vmatprep.subr.mxu0 0.0
  %657 = vmatpush1.msra.mxu0 0.0
  %658 = vmatprep.subr.mxu0 0.0
  %659 = vmatpush1.msra.mxu0 0.0
  %660 = vmatprep.subr.mxu0 0.0
  %661 = vmatpush1.msra.mxu0 0.0
  %662 = vmatprep.subr.mxu0 0.0
  %663 = vmatpush1.msra.mxu0 0.0
  %664 = vmatprep.subr.mxu0 0.0
  %665 = vmatpush1.msra.mxu0 0.0
  %666 = vmatprep.mubr.f32.mxu0 0.0
  %667 = vmatmul.mubr.f32.gmra.mrb[0].mxu0 %v144
  %v668 = vpop.f32.mrb[0].mxu0
  %v669 = vadd.f32 %v600, %v668
  %v670 = vpop.f32.mrb[0].mxu0
  %671 = vmatprep.mubr.f32.mxu0 0.0
  %672 = vmatmul.mubr.f32.gmra.mrb[0].mxu0 %v147
  %v673 = vpop.f32.mrb[0].mxu0
  %v674 = vadd.f32 %v600, %v673
  %v675 = vpop.f32.mrb[0].mxu0
  %676 = vdwg.mxu0
  %s677 = scalar_lea.vmem %s7, 32
  %v678 = vld [vmem:[%s677] sm:$0xff]
  %v679 = vld [vmem:[%s677 + $0x8] sm:$0xff]
  %v680 = vld [vmem:[%s677 + $0x10] sm:$0xff]
  %v681 = vld [vmem:[%s677 + $0x18] sm:$0xff]
  %s682 = scalar_lea.vmem %s8, 1
  %v683 = vld [vmem:[%s682] sm:$0x1]
  %v685 = vlaneseq
  %v686 = vshrl.u32 %v685, 7
  %v687 = vsub.s32 0, %v686
  %v688 = vrot.slane %v683, %v687
  %690 = vmatprep.subr.mxu0 0.0
  %691 = vmatpush1.msra.mxu0 %v678
  %692 = vmatprep.subr.mxu0 0.0
  %693 = vmatpush1.msra.mxu0 %v679
  %694 = vmatprep.subr.mxu0 0.0
  %695 = vmatpush1.msra.mxu0 %v680
  %696 = vmatprep.subr.mxu0 0.0
  %697 = vmatpush1.msra.mxu0 %v681
  %698 = vmatprep.subr.mxu0 0.0
  %699 = vmatpush1.msra.mxu0 0.0
  %700 = vmatprep.subr.mxu0 0.0
  %701 = vmatpush1.msra.mxu0 0.0
  %702 = vmatprep.subr.mxu0 0.0
  %703 = vmatpush1.msra.mxu0 0.0
  %704 = vmatprep.subr.mxu0 0.0
  %705 = vmatpush1.msra.mxu0 0.0
  %706 = vmatprep.subr.mxu0 0.0
  %707 = vmatpush1.msra.mxu0 0.0
  %708 = vmatprep.subr.mxu0 0.0
  %709 = vmatpush1.msra.mxu0 0.0
  %710 = vmatprep.subr.mxu0 0.0
  %711 = vmatpush1.msra.mxu0 0.0
  %712 = vmatprep.subr.mxu0 0.0
  %713 = vmatpush1.msra.mxu0 0.0
  %714 = vmatprep.subr.mxu0 0.0
  %715 = vmatpush1.msra.mxu0 0.0
  %716 = vmatprep.subr.mxu0 0.0
  %717 = vmatpush1.msra.mxu0 0.0
  %718 = vmatprep.subr.mxu0 0.0
  %719 = vmatpush1.msra.mxu0 0.0
  %720 = vmatprep.subr.mxu0 0.0
  %721 = vmatpush1.msra.mxu0 0.0
  %722 = vmatprep.subr.mxu0 0.0
  %723 = vmatpush1.msra.mxu0 0.0
  %724 = vmatprep.subr.mxu0 0.0
  %725 = vmatpush1.msra.mxu0 0.0
  %726 = vmatprep.subr.mxu0 0.0
  %727 = vmatpush1.msra.mxu0 0.0
  %728 = vmatprep.subr.mxu0 0.0
  %729 = vmatpush1.msra.mxu0 0.0
  %730 = vmatprep.subr.mxu0 0.0
  %731 = vmatpush1.msra.mxu0 0.0
  %732 = vmatprep.subr.mxu0 0.0
  %733 = vmatpush1.msra.mxu0 0.0
  %734 = vmatprep.subr.mxu0 0.0
  %735 = vmatpush1.msra.mxu0 0.0
  %736 = vmatprep.subr.mxu0 0.0
  %737 = vmatpush1.msra.mxu0 0.0
  %738 = vmatprep.subr.mxu0 0.0
  %739 = vmatpush1.msra.mxu0 0.0
  %740 = vmatprep.subr.mxu0 0.0
  %741 = vmatpush1.msra.mxu0 0.0
  %742 = vmatprep.subr.mxu0 0.0
  %743 = vmatpush1.msra.mxu0 0.0
  %744 = vmatprep.subr.mxu0 0.0
  %745 = vmatpush1.msra.mxu0 0.0
  %746 = vmatprep.subr.mxu0 0.0
  %747 = vmatpush1.msra.mxu0 0.0
  %748 = vmatprep.subr.mxu0 0.0
  %749 = vmatpush1.msra.mxu0 0.0
  %750 = vmatprep.subr.mxu0 0.0
  %751 = vmatpush1.msra.mxu0 0.0
  %752 = vmatprep.subr.mxu0 0.0
  %753 = vmatpush1.msra.mxu0 0.0
  %754 = vmatprep.mubr.f32.mxu0 0.0
  %755 = vmatmul.mubr.f32.gmra.mrb[0].mxu0 %v144
  %v756 = vpop.f32.mrb[0].mxu0
  %v757 = vadd.f32 %v688, %v756
  %v758 = vpop.f32.mrb[0].mxu0
  %759 = vmatprep.mubr.f32.mxu0 0.0
  %760 = vmatmul.mubr.f32.gmra.mrb[0].mxu0 %v147
  %v761 = vpop.f32.mrb[0].mxu0
  %v762 = vadd.f32 %v688, %v761
  %v763 = vpop.f32.mrb[0].mxu0
  %764 = vdwg.mxu0
  %s765 = scalar_lea.vmem %s9, 32
  %v766 = vld [vmem:[%s765] sm:$0xff]
  %v767 = vld [vmem:[%s765 + $0x8] sm:$0xff]
  %v768 = vld [vmem:[%s765 + $0x10] sm:$0xff]
  %v769 = vld [vmem:[%s765 + $0x18] sm:$0xff]
  %s770 = scalar_lea.vmem %s10, 1
  %v771 = vld [vmem:[%s770] sm:$0x1]
  %v773 = vlaneseq
  %v774 = vshrl.u32 %v773, 7
  %v775 = vsub.s32 0, %v774
  %v776 = vrot.slane %v771, %v775
  %778 = vmatprep.subr.mxu0 0.0
  %779 = vmatpush1.msra.mxu0 %v766
  %780 = vmatprep.subr.mxu0 0.0
  %781 = vmatpush1.msra.mxu0 %v767
  %782 = vmatprep.subr.mxu0 0.0
  %783 = vmatpush1.msra.mxu0 %v768
  %784 = vmatprep.subr.mxu0 0.0
  %785 = vmatpush1.msra.mxu0 %v769
  %786 = vmatprep.subr.mxu0 0.0
  %787 = vmatpush1.msra.mxu0 0.0
  %788 = vmatprep.subr.mxu0 0.0
  %789 = vmatpush1.msra.mxu0 0.0
  %790 = vmatprep.subr.mxu0 0.0
  %791 = vmatpush1.msra.mxu0 0.0
  %792 = vmatprep.subr.mxu0 0.0
  %793 = vmatpush1.msra.mxu0 0.0
  %794 = vmatprep.subr.mxu0 0.0
  %795 = vmatpush1.msra.mxu0 0.0
  %796 = vmatprep.subr.mxu0 0.0
  %797 = vmatpush1.msra.mxu0 0.0
  %798 = vmatprep.subr.mxu0 0.0
  %799 = vmatpush1.msra.mxu0 0.0
  %800 = vmatprep.subr.mxu0 0.0
  %801 = vmatpush1.msra.mxu0 0.0
  %802 = vmatprep.subr.mxu0 0.0
  %803 = vmatpush1.msra.mxu0 0.0
  %804 = vmatprep.subr.mxu0 0.0
  %805 = vmatpush1.msra.mxu0 0.0
  %806 = vmatprep.subr.mxu0 0.0
  %807 = vmatpush1.msra.mxu0 0.0
  %808 = vmatprep.subr.mxu0 0.0
  %809 = vmatpush1.msra.mxu0 0.0
  %810 = vmatprep.subr.mxu0 0.0
  %811 = vmatpush1.msra.mxu0 0.0
  %812 = vmatprep.subr.mxu0 0.0
  %813 = vmatpush1.msra.mxu0 0.0
  %814 = vmatprep.subr.mxu0 0.0
  %815 = vmatpush1.msra.mxu0 0.0
  %816 = vmatprep.subr.mxu0 0.0
  %817 = vmatpush1.msra.mxu0 0.0
  %818 = vmatprep.subr.mxu0 0.0
  %819 = vmatpush1.msra.mxu0 0.0
  %820 = vmatprep.subr.mxu0 0.0
  %821 = vmatpush1.msra.mxu0 0.0
  %822 = vmatprep.subr.mxu0 0.0
  %823 = vmatpush1.msra.mxu0 0.0
  %824 = vmatprep.subr.mxu0 0.0
  %825 = vmatpush1.msra.mxu0 0.0
  %826 = vmatprep.subr.mxu0 0.0
  %827 = vmatpush1.msra.mxu0 0.0
  %828 = vmatprep.subr.mxu0 0.0
  %829 = vmatpush1.msra.mxu0 0.0
  %830 = vmatprep.subr.mxu0 0.0
  %831 = vmatpush1.msra.mxu0 0.0
  %832 = vmatprep.subr.mxu0 0.0
  %833 = vmatpush1.msra.mxu0 0.0
  %834 = vmatprep.subr.mxu0 0.0
  %835 = vmatpush1.msra.mxu0 0.0
  %836 = vmatprep.subr.mxu0 0.0
  %837 = vmatpush1.msra.mxu0 0.0
  %838 = vmatprep.subr.mxu0 0.0
  %839 = vmatpush1.msra.mxu0 0.0
  %840 = vmatprep.subr.mxu0 0.0
  %841 = vmatpush1.msra.mxu0 0.0
  %842 = vmatprep.mubr.f32.mxu0 0.0
  %843 = vmatmul.mubr.f32.gmra.mrb[0].mxu0 %v144
  %v844 = vpop.f32.mrb[0].mxu0
  %v845 = vadd.f32 %v776, %v844
  %v846 = vpop.f32.mrb[0].mxu0
  %847 = vmatprep.mubr.f32.mxu0 0.0
  %848 = vmatmul.mubr.f32.gmra.mrb[0].mxu0 %v147
  %v849 = vpop.f32.mrb[0].mxu0
  %v850 = vadd.f32 %v776, %v849
  %v851 = vpop.f32.mrb[0].mxu0
  %852 = vdwg.mxu0
  %v854 = vsel %vm396, %v669, 0
  %v857 = vsel %vm396, %v674, 0
  %v860 = vsel %vm396, %v757, 0
  %v863 = vsel %vm396, %v762, 0
  %865 = vmatprep.subr.mxu0 0.0
  %866 = vmatpush1.xpose.msra.mxu0 %v860
  %867 = vmatprep.subr.mxu0 0.0
  %868 = vmatpush1.xpose.msra.mxu0 %v863
  %869 = vmatprep.subr.mxu0 0.0
  %870 = vmatpush1.xpose.msra.mxu0 0.0
  %871 = vmatprep.subr.mxu0 0.0
  %872 = vmatpush1.xpose.msra.mxu0 0.0
  %873 = vmatprep.subr.mxu0 0.0
  %874 = vmatpush1.xpose.msra.mxu0 0.0
  %875 = vmatprep.subr.mxu0 0.0
  %876 = vmatpush1.xpose.msra.mxu0 0.0
  %877 = vmatprep.subr.mxu0 0.0
  %878 = vmatpush1.xpose.msra.mxu0 0.0
  %879 = vmatprep.subr.mxu0 0.0
  %880 = vmatpush1.xpose.msra.mxu0 0.0
  %881 = vmatprep.subr.mxu0 0.0
  %882 = vmatpush1.xpose.msra.mxu0 0.0
  %883 = vmatprep.subr.mxu0 0.0
  %884 = vmatpush1.xpose.msra.mxu0 0.0
  %885 = vmatprep.subr.mxu0 0.0
  %886 = vmatpush1.xpose.msra.mxu0 0.0
  %887 = vmatprep.subr.mxu0 0.0
  %888 = vmatpush1.xpose.msra.mxu0 0.0
  %889 = vmatprep.subr.mxu0 0.0
  %890 = vmatpush1.xpose.msra.mxu0 0.0
  %891 = vmatprep.subr.mxu0 0.0
  %892 = vmatpush1.xpose.msra.mxu0 0.0
  %893 = vmatprep.subr.mxu0 0.0
  %894 = vmatpush1.xpose.msra.mxu0 0.0
  %895 = vmatprep.subr.mxu0 0.0
  %896 = vmatpush1.xpose.msra.mxu0 0.0
  %897 = vmatprep.subr.mxu0 0.0
  %898 = vmatpush1.xpose.msra.mxu0 0.0
  %899 = vmatprep.subr.mxu0 0.0
  %900 = vmatpush1.xpose.msra.mxu0 0.0
  %901 = vmatprep.subr.mxu0 0.0
  %902 = vmatpush1.xpose.msra.mxu0 0.0
  %903 = vmatprep.subr.mxu0 0.0
  %904 = vmatpush1.xpose.msra.mxu0 0.0
  %905 = vmatprep.subr.mxu0 0.0
  %906 = vmatpush1.xpose.msra.mxu0 0.0
  %907 = vmatprep.subr.mxu0 0.0
  %908 = vmatpush1.xpose.msra.mxu0 0.0
  %909 = vmatprep.subr.mxu0 0.0
  %910 = vmatpush1.xpose.msra.mxu0 0.0
  %911 = vmatprep.subr.mxu0 0.0
  %912 = vmatpush1.xpose.msra.mxu0 0.0
  %913 = vmatprep.subr.mxu0 0.0
  %914 = vmatpush1.xpose.msra.mxu0 0.0
  %915 = vmatprep.subr.mxu0 0.0
  %916 = vmatpush1.xpose.msra.mxu0 0.0
  %917 = vmatprep.subr.mxu0 0.0
  %918 = vmatpush1.xpose.msra.mxu0 0.0
  %919 = vmatprep.subr.mxu0 0.0
  %920 = vmatpush1.xpose.msra.mxu0 0.0
  %921 = vmatprep.subr.mxu0 0.0
  %922 = vmatpush1.xpose.msra.mxu0 0.0
  %923 = vmatprep.subr.mxu0 0.0
  %924 = vmatpush1.xpose.msra.mxu0 0.0
  %925 = vmatprep.subr.mxu0 0.0
  %926 = vmatpush1.xpose.msra.mxu0 0.0
  %927 = vmatprep.subr.mxu0 0.0
  %928 = vmatpush1.xpose.msra.mxu0 0.0
  %929 = vmatprep.mubr.f32.mxu0 0.0
  %930 = vmatmul.mubr.f32.gmra.mrb[0].mxu0 %v854
  %v931 = vpop.f32.mrb[0].mxu0
  %v932 = vadd.f32 %v82, %v931
  %v933 = vpop.f32.mrb[0].mxu0
  %934 = vmatprep.mubr.f32.mxu0 0.0
  %935 = vmatmul.mubr.f32.gmra.mrb[0].mxu0 %v857
  %v936 = vpop.f32.mrb[0].mxu0
  %v937 = vadd.f32 %v83, %v936
  %v938 = vpop.f32.mrb[0].mxu0
  %939 = vdwg.mxu0
  %v940 = vsel %vm396, %v932, -inf
  %941 = vmax.xlane.f32.xlu0 %v940
  %v942 = vpop.xlane.xlu0 %941
  %v943 = vsel %vm396, %v937, -inf
  %944 = vmax.xlane.f32.xlu0 %v943
  %v945 = vpop.xlane.xlu0 %944
  %v946 = vsub.f32 %v932, %v942
  %v947 = vsub.f32 %v937, %v945
  %v948 = vmul.f32 %v946, 1.442695
  %v949 = vpow.pop %v948
  %v950 = vmul.f32 %v947, 1.442695
  %v951 = vpow.pop %v950
  %v952 = vsel %vm396, %v949, 0.0
  %953 = vadd.xlane.f32.xlu0 %v952
  %v954 = vpop.xlane.xlu0 %953
  %v955 = vsel %vm396, %v951, 0.0
  %956 = vadd.xlane.f32.xlu0 %v955
  %v957 = vpop.xlane.xlu0 %956
  %v958 = vrcp.pop %v954
  %v959 = vrcp.pop %v957
  %v960 = vmul.f32 %v949, %v958
  %v961 = vmul.f32 %v951, %v959
  %v963 = vsel %vm396, %v960, 0
  %v966 = vsel %vm396, %v961, 0
  %968 = vmatprep.subr.mxu0 0.0
  %969 = vmatpush1.msra.mxu0 %v845
  %970 = vmatprep.subr.mxu0 0.0
  %971 = vmatpush1.msra.mxu0 %v850
  %972 = vmatprep.subr.mxu0 0.0
  %973 = vmatpush1.msra.mxu0 0.0
  %974 = vmatprep.subr.mxu0 0.0
  %975 = vmatpush1.msra.mxu0 0.0
  %976 = vmatprep.subr.mxu0 0.0
  %977 = vmatpush1.msra.mxu0 0.0
  %978 = vmatprep.subr.mxu0 0.0
  %979 = vmatpush1.msra.mxu0 0.0
  %980 = vmatprep.subr.mxu0 0.0
  %981 = vmatpush1.msra.mxu0 0.0
  %982 = vmatprep.subr.mxu0 0.0
  %983 = vmatpush1.msra.mxu0 0.0
  %984 = vmatprep.subr.mxu0 0.0
  %985 = vmatpush1.msra.mxu0 0.0
  %986 = vmatprep.subr.mxu0 0.0
  %987 = vmatpush1.msra.mxu0 0.0
  %988 = vmatprep.subr.mxu0 0.0
  %989 = vmatpush1.msra.mxu0 0.0
  %990 = vmatprep.subr.mxu0 0.0
  %991 = vmatpush1.msra.mxu0 0.0
  %992 = vmatprep.subr.mxu0 0.0
  %993 = vmatpush1.msra.mxu0 0.0
  %994 = vmatprep.subr.mxu0 0.0
  %995 = vmatpush1.msra.mxu0 0.0
  %996 = vmatprep.subr.mxu0 0.0
  %997 = vmatpush1.msra.mxu0 0.0
  %998 = vmatprep.subr.mxu0 0.0
  %999 = vmatpush1.msra.mxu0 0.0
  %1000 = vmatprep.subr.mxu0 0.0
  %1001 = vmatpush1.msra.mxu0 0.0
  %1002 = vmatprep.subr.mxu0 0.0
  %1003 = vmatpush1.msra.mxu0 0.0
  %1004 = vmatprep.subr.mxu0 0.0
  %1005 = vmatpush1.msra.mxu0 0.0
  %1006 = vmatprep.subr.mxu0 0.0
  %1007 = vmatpush1.msra.mxu0 0.0
  %1008 = vmatprep.subr.mxu0 0.0
  %1009 = vmatpush1.msra.mxu0 0.0
  %1010 = vmatprep.subr.mxu0 0.0
  %1011 = vmatpush1.msra.mxu0 0.0
  %1012 = vmatprep.subr.mxu0 0.0
  %1013 = vmatpush1.msra.mxu0 0.0
  %1014 = vmatprep.subr.mxu0 0.0
  %1015 = vmatpush1.msra.mxu0 0.0
  %1016 = vmatprep.subr.mxu0 0.0
  %1017 = vmatpush1.msra.mxu0 0.0
  %1018 = vmatprep.subr.mxu0 0.0
  %1019 = vmatpush1.msra.mxu0 0.0
  %1020 = vmatprep.subr.mxu0 0.0
  %1021 = vmatpush1.msra.mxu0 0.0
  %1022 = vmatprep.subr.mxu0 0.0
  %1023 = vmatpush1.msra.mxu0 0.0
  %1024 = vmatprep.subr.mxu0 0.0
  %1025 = vmatpush1.msra.mxu0 0.0
  %1026 = vmatprep.subr.mxu0 0.0
  %1027 = vmatpush1.msra.mxu0 0.0
  %1028 = vmatprep.subr.mxu0 0.0
  %1029 = vmatpush1.msra.mxu0 0.0
  %1030 = vmatprep.subr.mxu0 0.0
  %1031 = vmatpush1.msra.mxu0 0.0
  %1032 = vmatprep.mubr.f32.mxu0 0.0
  %1033 = vmatmul.mubr.f32.gmra.mrb[0].mxu0 %v963
  %v1034 = vpop.f32.mrb[0].mxu0
  %v1035 = vadd.f32 0.0, %v1034
  %v1036 = vpop.f32.mrb[0].mxu0
  %1037 = vmatprep.mubr.f32.mxu0 0.0
  %1038 = vmatmul.mubr.f32.gmra.mrb[0].mxu0 %v966
  %v1039 = vpop.f32.mrb[0].mxu0
  %v1040 = vadd.f32 0.0, %v1039
  %v1041 = vpop.f32.mrb[0].mxu0
  %1042 = vdwg.mxu0
  %s1043 = scalar_lea.vmem %s11, 16
  %v1044 = vld [vmem:[%s1043] sm:$0xff]
  %v1045 = vld [vmem:[%s1043 + $0x8] sm:$0xff]
  %v1047 = vsel %vm396, %v1035, 0
  %v1050 = vsel %vm396, %v1040, 0
  %1052 = vmatprep.subr.mxu0 0.0
  %1053 = vmatpush1.msra.mxu0 %v1044
  %1054 = vmatprep.subr.mxu0 0.0
  %1055 = vmatpush1.msra.mxu0 %v1045
  %1056 = vmatprep.subr.mxu0 0.0
  %1057 = vmatpush1.msra.mxu0 0.0
  %1058 = vmatprep.subr.mxu0 0.0
  %1059 = vmatpush1.msra.mxu0 0.0
  %1060 = vmatprep.subr.mxu0 0.0
  %1061 = vmatpush1.msra.mxu0 0.0
  %1062 = vmatprep.subr.mxu0 0.0
  %1063 = vmatpush1.msra.mxu0 0.0
  %1064 = vmatprep.subr.mxu0 0.0
  %1065 = vmatpush1.msra.mxu0 0.0
  %1066 = vmatprep.subr.mxu0 0.0
  %1067 = vmatpush1.msra.mxu0 0.0
  %1068 = vmatprep.subr.mxu0 0.0
  %1069 = vmatpush1.msra.mxu0 0.0
  %1070 = vmatprep.subr.mxu0 0.0
  %1071 = vmatpush1.msra.mxu0 0.0
  %1072 = vmatprep.subr.mxu0 0.0
  %1073 = vmatpush1.msra.mxu0 0.0
  %1074 = vmatprep.subr.mxu0 0.0
  %1075 = vmatpush1.msra.mxu0 0.0
  %1076 = vmatprep.subr.mxu0 0.0
  %1077 = vmatpush1.msra.mxu0 0.0
  %1078 = vmatprep.subr.mxu0 0.0
  %1079 = vmatpush1.msra.mxu0 0.0
  %1080 = vmatprep.subr.mxu0 0.0
  %1081 = vmatpush1.msra.mxu0 0.0
  %1082 = vmatprep.subr.mxu0 0.0
  %1083 = vmatpush1.msra.mxu0 0.0
  %1084 = vmatprep.subr.mxu0 0.0
  %1085 = vmatpush1.msra.mxu0 0.0
  %1086 = vmatprep.subr.mxu0 0.0
  %1087 = vmatpush1.msra.mxu0 0.0
  %1088 = vmatprep.subr.mxu0 0.0
  %1089 = vmatpush1.msra.mxu0 0.0
  %1090 = vmatprep.subr.mxu0 0.0
  %1091 = vmatpush1.msra.mxu0 0.0
  %1092 = vmatprep.subr.mxu0 0.0
  %1093 = vmatpush1.msra.mxu0 0.0
  %1094 = vmatprep.subr.mxu0 0.0
  %1095 = vmatpush1.msra.mxu0 0.0
  %1096 = vmatprep.subr.mxu0 0.0
  %1097 = vmatpush1.msra.mxu0 0.0
  %1098 = vmatprep.subr.mxu0 0.0
  %1099 = vmatpush1.msra.mxu0 0.0
  %1100 = vmatprep.subr.mxu0 0.0
  %1101 = vmatpush1.msra.mxu0 0.0
  %1102 = vmatprep.subr.mxu0 0.0
  %1103 = vmatpush1.msra.mxu0 0.0
  %1104 = vmatprep.subr.mxu0 0.0
  %1105 = vmatpush1.msra.mxu0 0.0
  %1106 = vmatprep.subr.mxu0 0.0
  %1107 = vmatpush1.msra.mxu0 0.0
  %1108 = vmatprep.subr.mxu0 0.0
  %1109 = vmatpush1.msra.mxu0 0.0
  %1110 = vmatprep.subr.mxu0 0.0
  %1111 = vmatpush1.msra.mxu0 0.0
  %1112 = vmatprep.subr.mxu0 0.0
  %1113 = vmatpush1.msra.mxu0 0.0
  %1114 = vmatprep.subr.mxu0 0.0
  %1115 = vmatpush1.msra.mxu0 0.0
  %1116 = vmatprep.mubr.f32.mxu0 0.0
  %1117 = vmatmul.mubr.f32.gmra.mrb[0].mxu0 %v1047
  %v1118 = vpop.f32.mrb[0].mxu0
  %v1119 = vadd.f32 0.0, %v1118
  %v1120 = vpop.f32.mrb[0].mxu0
  %1121 = vmatprep.mubr.f32.mxu0 0.0
  %1122 = vmatmul.mubr.f32.gmra.mrb[0].mxu0 %v1050
  %v1123 = vpop.f32.mrb[0].mxu0
  %v1124 = vadd.f32 0.0, %v1123
  %v1125 = vpop.f32.mrb[0].mxu0
  %1126 = vdwg.mxu0
  %v1128 = vsel %vm396, %v579, 0
  %v1131 = vsel %vm396, %v584, 0
  %1133 = vmatprep.subr.mxu0 0.0
  %1134 = vmatpush1.msra.mxu0 %v587
  %1135 = vmatprep.subr.mxu0 0.0
  %1136 = vmatpush1.msra.mxu0 %v588
  %1137 = vmatprep.subr.mxu0 0.0
  %1138 = vmatpush1.msra.mxu0 0.0
  %1139 = vmatprep.subr.mxu0 0.0
  %1140 = vmatpush1.msra.mxu0 0.0
  %1141 = vmatprep.subr.mxu0 0.0
  %1142 = vmatpush1.msra.mxu0 0.0
  %1143 = vmatprep.subr.mxu0 0.0
  %1144 = vmatpush1.msra.mxu0 0.0
  %1145 = vmatprep.subr.mxu0 0.0
  %1146 = vmatpush1.msra.mxu0 0.0
  %1147 = vmatprep.subr.mxu0 0.0
  %1148 = vmatpush1.msra.mxu0 0.0
  %1149 = vmatprep.subr.mxu0 0.0
  %1150 = vmatpush1.msra.mxu0 0.0
  %1151 = vmatprep.subr.mxu0 0.0
  %1152 = vmatpush1.msra.mxu0 0.0
  %1153 = vmatprep.subr.mxu0 0.0
  %1154 = vmatpush1.msra.mxu0 0.0
  %1155 = vmatprep.subr.mxu0 0.0
  %1156 = vmatpush1.msra.mxu0 0.0
  %1157 = vmatprep.subr.mxu0 0.0
  %1158 = vmatpush1.msra.mxu0 0.0
  %1159 = vmatprep.subr.mxu0 0.0
  %1160 = vmatpush1.msra.mxu0 0.0
  %1161 = vmatprep.subr.mxu0 0.0
  %1162 = vmatpush1.msra.mxu0 0.0
  %1163 = vmatprep.subr.mxu0 0.0
  %1164 = vmatpush1.msra.mxu0 0.0
  %1165 = vmatprep.subr.mxu0 0.0
  %1166 = vmatpush1.msra.mxu0 0.0
  %1167 = vmatprep.subr.mxu0 0.0
  %1168 = vmatpush1.msra.mxu0 0.0
  %1169 = vmatprep.subr.mxu0 0.0
  %1170 = vmatpush1.msra.mxu0 0.0
  %1171 = vmatprep.subr.mxu0 0.0
  %1172 = vmatpush1.msra.mxu0 0.0
  %1173 = vmatprep.subr.mxu0 0.0
  %1174 = vmatpush1.msra.mxu0 0.0
  %1175 = vmatprep.subr.mxu0 0.0
  %1176 = vmatpush1.msra.mxu0 0.0
  %1177 = vmatprep.subr.mxu0 0.0
  %1178 = vmatpush1.msra.mxu0 0.0
  %1179 = vmatprep.subr.mxu0 0.0
  %1180 = vmatpush1.msra.mxu0 0.0
  %1181 = vmatprep.subr.mxu0 0.0
  %1182 = vmatpush1.msra.mxu0 0.0
  %1183 = vmatprep.subr.mxu0 0.0
  %1184 = vmatpush1.msra.mxu0 0.0
  %1185 = vmatprep.subr.mxu0 0.0
  %1186 = vmatpush1.msra.mxu0 0.0
  %1187 = vmatprep.subr.mxu0 0.0
  %1188 = vmatpush1.msra.mxu0 0.0
  %1189 = vmatprep.subr.mxu0 0.0
  %1190 = vmatpush1.msra.mxu0 0.0
  %1191 = vmatprep.subr.mxu0 0.0
  %1192 = vmatpush1.msra.mxu0 0.0
  %1193 = vmatprep.subr.mxu0 0.0
  %1194 = vmatpush1.msra.mxu0 0.0
  %1195 = vmatprep.subr.mxu0 0.0
  %1196 = vmatpush1.msra.mxu0 0.0
  %1197 = vmatprep.mubr.f32.mxu0 0.0
  %1198 = vmatmul.mubr.f32.gmra.mrb[0].mxu0 %v1128
  %v1199 = vpop.f32.mrb[0].mxu0
  %v1200 = vadd.f32 %v1119, %v1199
  %v1201 = vpop.f32.mrb[0].mxu0
  %1202 = vmatprep.mubr.f32.mxu0 0.0
  %1203 = vmatmul.mubr.f32.gmra.mrb[0].mxu0 %v1131
  %v1204 = vpop.f32.mrb[0].mxu0
  %v1205 = vadd.f32 %v1124, %v1204
  %v1206 = vpop.f32.mrb[0].mxu0
  %1207 = vdwg.mxu0
  %v1208 = vadd.f32 %v130, %v1200
  %v1209 = vadd.f32 %v131, %v1205
  %v1210 = vld [vmem:[%s12] sm:$0x1]
  %v1212 = vlaneseq
  %v1213 = vshrl.u32 %v1212, 7
  %v1214 = vsub.s32 0, %v1213
  %v1215 = vrot.slane %v1210, %v1214
  %v1217 = vadd.f32 %v1208, %v1215
  %v1218 = vadd.f32 %v1209, %v1215
  %v1219 = vld [vmem:[%s13] sm:$0x1]
  %v1220 = vld [vmem:[%s14] sm:$0x1]
  %v1221 = vsel %vm88, %v1217, 0.0
  %1222 = vadd.xlane.f32.xlu0 %v1221
  %v1223 = vpop.xlane.xlu0 %1222
  %v1224 = vsel %vm88, %v1218, 0.0
  %1225 = vadd.xlane.f32.xlu0 %v1224
  %v1226 = vpop.xlane.xlu0 %1225
  %v1227 = vmul.f32 %v1223, %v95
  %v1228 = vmul.f32 %v1226, %v95
  %v1229 = vsub.f32 %v1217, %v1227
  %v1230 = vsub.f32 %v1218, %v1228
  %v1231 = vmul.f32 %v1229, %v1229
  %v1232 = vmul.f32 %v1230, %v1230
  %v1233 = vsel %vm88, %v1231, 0.0
  %1234 = vadd.xlane.f32.xlu0 %v1233
  %v1235 = vpop.xlane.xlu0 %1234
  %v1236 = vsel %vm88, %v1232, 0.0
  %1237 = vadd.xlane.f32.xlu0 %v1236
  %v1238 = vpop.xlane.xlu0 %1237
  %v1239 = vmul.f32 %v1235, %v95
  %v1240 = vmul.f32 %v1238, %v95
  %v1241 = vadd.f32 %v1239, 1e-12
  %v1242 = vadd.f32 %v1240, 1e-12
  %v1243 = vrsqrt.pop %v1241
  %v1244 = vrsqrt.pop %v1242
  %v1245 = vmul.f32 %v1229, %v1243
  %v1246 = vmul.f32 %v1230, %v1244
  %v1248 = vlaneseq
  %v1249 = vshrl.u32 %v1248, 7
  %v1250 = vsub.s32 0, %v1249
  %v1251 = vrot.slane %v1219, %v1250
  %v1253 = vmul.f32 %v1245, %v1251
  %v1254 = vmul.f32 %v1246, %v1251
  %v1256 = vlaneseq
  %v1257 = vshrl.u32 %v1256, 7
  %v1258 = vsub.s32 0, %v1257
  %v1259 = vrot.slane %v1220, %v1258
  %v1261 = vadd.f32 %v1253, %v1259
  %v1262 = vadd.f32 %v1254, %v1259
  %v1263 = vld [vmem:[%s15] sm:$0xff]
  %v1264 = vld [vmem:[%s15 + $0x8] sm:$0xff]
  %v1265 = vld [vmem:[%s15 + $0x10] sm:$0xff]
  %v1266 = vld [vmem:[%s15 + $0x18] sm:$0xff]
  %v1267 = vld [vmem:[%s16] sm:$0x1]
  %v1269 = vlaneseq
  %v1270 = vshrl.u32 %v1269, 7
  %v1271 = vsub.s32 0, %v1270
  %v1272 = vrot.slane %v1267, %v1271
  %v1275 = vsel %vm88, %v1261, 0
  %v1278 = vsel %vm88, %v1262, 0
  %1280 = vmatprep.subr.mxu0 0.0
  %1281 = vmatpush1.msra.mxu0 %v1263
  %1282 = vmatprep.subr.mxu0 0.0
  %1283 = vmatpush1.msra.mxu0 %v1264
  %1284 = vmatprep.subr.mxu0 0.0
  %1285 = vmatpush1.msra.mxu0 %v1265
  %1286 = vmatprep.subr.mxu0 0.0
  %1287 = vmatpush1.msra.mxu0 %v1266
  %1288 = vmatprep.subr.mxu0 0.0
  %1289 = vmatpush1.msra.mxu0 0.0
  %1290 = vmatprep.subr.mxu0 0.0
  %1291 = vmatpush1.msra.mxu0 0.0
  %1292 = vmatprep.subr.mxu0 0.0
  %1293 = vmatpush1.msra.mxu0 0.0
  %1294 = vmatprep.subr.mxu0 0.0
  %1295 = vmatpush1.msra.mxu0 0.0
  %1296 = vmatprep.subr.mxu0 0.0
  %1297 = vmatpush1.msra.mxu0 0.0
  %1298 = vmatprep.subr.mxu0 0.0
  %1299 = vmatpush1.msra.mxu0 0.0
  %1300 = vmatprep.subr.mxu0 0.0
  %1301 = vmatpush1.msra.mxu0 0.0
  %1302 = vmatprep.subr.mxu0 0.0
  %1303 = vmatpush1.msra.mxu0 0.0
  %1304 = vmatprep.subr.mxu0 0.0
  %1305 = vmatpush1.msra.mxu0 0.0
  %1306 = vmatprep.subr.mxu0 0.0
  %1307 = vmatpush1.msra.mxu0 0.0
  %1308 = vmatprep.subr.mxu0 0.0
  %1309 = vmatpush1.msra.mxu0 0.0
  %1310 = vmatprep.subr.mxu0 0.0
  %1311 = vmatpush1.msra.mxu0 0.0
  %1312 = vmatprep.subr.mxu0 0.0
  %1313 = vmatpush1.msra.mxu0 0.0
  %1314 = vmatprep.subr.mxu0 0.0
  %1315 = vmatpush1.msra.mxu0 0.0
  %1316 = vmatprep.subr.mxu0 0.0
  %1317 = vmatpush1.msra.mxu0 0.0
  %1318 = vmatprep.subr.mxu0 0.0
  %1319 = vmatpush1.msra.mxu0 0.0
  %1320 = vmatprep.subr.mxu0 0.0
  %1321 = vmatpush1.msra.mxu0 0.0
  %1322 = vmatprep.subr.mxu0 0.0
  %1323 = vmatpush1.msra.mxu0 0.0
  %1324 = vmatprep.subr.mxu0 0.0
  %1325 = vmatpush1.msra.mxu0 0.0
  %1326 = vmatprep.subr.mxu0 0.0
  %1327 = vmatpush1.msra.mxu0 0.0
  %1328 = vmatprep.subr.mxu0 0.0
  %1329 = vmatpush1.msra.mxu0 0.0
  %1330 = vmatprep.subr.mxu0 0.0
  %1331 = vmatpush1.msra.mxu0 0.0
  %1332 = vmatprep.subr.mxu0 0.0
  %1333 = vmatpush1.msra.mxu0 0.0
  %1334 = vmatprep.subr.mxu0 0.0
  %1335 = vmatpush1.msra.mxu0 0.0
  %1336 = vmatprep.subr.mxu0 0.0
  %1337 = vmatpush1.msra.mxu0 0.0
  %1338 = vmatprep.subr.mxu0 0.0
  %1339 = vmatpush1.msra.mxu0 0.0
  %1340 = vmatprep.subr.mxu0 0.0
  %1341 = vmatpush1.msra.mxu0 0.0
  %1342 = vmatprep.subr.mxu0 0.0
  %1343 = vmatpush1.msra.mxu0 0.0
  %1344 = vmatprep.mubr.f32.mxu0 0.0
  %1345 = vmatmul.mubr.f32.gmra.mrb[0].mxu0 %v1275
  %v1346 = vpop.f32.mrb[0].mxu0
  %v1347 = vadd.f32 %v1272, %v1346
  %v1348 = vpop.f32.mrb[0].mxu0
  %1349 = vmatprep.mubr.f32.mxu0 0.0
  %1350 = vmatmul.mubr.f32.gmra.mrb[0].mxu0 %v1278
  %v1351 = vpop.f32.mrb[0].mxu0
  %v1352 = vadd.f32 %v1272, %v1351
  %v1353 = vpop.f32.mrb[0].mxu0
  %1354 = vdwg.mxu0
  %v1355 = vmul.f32 %v1347, %v1347
  %v1356 = vmul.f32 %v1352, %v1352
  %v1357 = vmul.f32 %v1347, %v1355
  %v1358 = vmul.f32 %v1352, %v1356
  %v1359 = vmul.f32 %v1357, 0.044715
  %v1360 = vmul.f32 %v1358, 0.044715
  %v1361 = vadd.f32 %v1347, %v1359
  %v1362 = vadd.f32 %v1352, %v1360
  %v1363 = vmul.f32 %v1361, 0.7978846
  %v1364 = vmul.f32 %v1362, 0.7978846
  %v1365 = vtanh.pop %v1363
  %v1366 = vtanh.pop %v1364
  %v1367 = vadd.f32 %v1365, 1.0
  %v1368 = vadd.f32 %v1366, 1.0
  %v1369 = vmul.f32 %v1367, 0.5
  %v1370 = vmul.f32 %v1368, 0.5
  %v1371 = vmul.f32 %v1347, %v1369
  %v1372 = vmul.f32 %v1352, %v1370
  %v1373 = vld [vmem:[%s17] sm:$0xff]
  %v1374 = vld [vmem:[%s17 + $0x8] sm:$0xff]
  %v1375 = vld [vmem:[%s17 + $0x10] sm:$0xff]
  %v1376 = vld [vmem:[%s17 + $0x18] sm:$0xff]
  %v1377 = vld [vmem:[%s17 + $0x20] sm:$0xff]
  %v1378 = vld [vmem:[%s17 + $0x28] sm:$0xff]
  %v1379 = vld [vmem:[%s17 + $0x30] sm:$0xff]
  %v1380 = vld [vmem:[%s17 + $0x38] sm:$0xff]
  %v1381 = vld [vmem:[%s18] sm:$0x1]
  %v1383 = vlaneseq
  %v1384 = vshrl.u32 %v1383, 7
  %v1385 = vsub.s32 0, %v1384
  %v1386 = vrot.slane %v1381, %v1385
  %vm1388 = vcmask 523264
  %v1390 = vsel %vm1388, %v1371, 0
  %v1393 = vsel %vm1388, %v1372, 0
  %1395 = vmatprep.subr.mxu0 0.0
  %1396 = vmatpush1.msra.mxu0 %v1373
  %1397 = vmatprep.subr.mxu0 0.0
  %1398 = vmatpush1.msra.mxu0 %v1374
  %1399 = vmatprep.subr.mxu0 0.0
  %1400 = vmatpush1.msra.mxu0 %v1375
  %1401 = vmatprep.subr.mxu0 0.0
  %1402 = vmatpush1.msra.mxu0 %v1376
  %1403 = vmatprep.subr.mxu0 0.0
  %1404 = vmatpush1.msra.mxu0 %v1377
  %1405 = vmatprep.subr.mxu0 0.0
  %1406 = vmatpush1.msra.mxu0 %v1378
  %1407 = vmatprep.subr.mxu0 0.0
  %1408 = vmatpush1.msra.mxu0 %v1379
  %1409 = vmatprep.subr.mxu0 0.0
  %1410 = vmatpush1.msra.mxu0 %v1380
  %1411 = vmatprep.subr.mxu0 0.0
  %1412 = vmatpush1.msra.mxu0 0.0
  %1413 = vmatprep.subr.mxu0 0.0
  %1414 = vmatpush1.msra.mxu0 0.0
  %1415 = vmatprep.subr.mxu0 0.0
  %1416 = vmatpush1.msra.mxu0 0.0
  %1417 = vmatprep.subr.mxu0 0.0
  %1418 = vmatpush1.msra.mxu0 0.0
  %1419 = vmatprep.subr.mxu0 0.0
  %1420 = vmatpush1.msra.mxu0 0.0
  %1421 = vmatprep.subr.mxu0 0.0
  %1422 = vmatpush1.msra.mxu0 0.0
  %1423 = vmatprep.subr.mxu0 0.0
  %1424 = vmatpush1.msra.mxu0 0.0
  %1425 = vmatprep.subr.mxu0 0.0
  %1426 = vmatpush1.msra.mxu0 0.0
  %1427 = vmatprep.subr.mxu0 0.0
  %1428 = vmatpush1.msra.mxu0 0.0
  %1429 = vmatprep.subr.mxu0 0.0
  %1430 = vmatpush1.msra.mxu0 0.0
  %1431 = vmatprep.subr.mxu0 0.0
  %1432 = vmatpush1.msra.mxu0 0.0
  %1433 = vmatprep.subr.mxu0 0.0
  %1434 = vmatpush1.msra.mxu0 0.0
  %1435 = vmatprep.subr.mxu0 0.0
  %1436 = vmatpush1.msra.mxu0 0.0
  %1437 = vmatprep.subr.mxu0 0.0
  %1438 = vmatpush1.msra.mxu0 0.0
  %1439 = vmatprep.subr.mxu0 0.0
  %1440 = vmatpush1.msra.mxu0 0.0
  %1441 = vmatprep.subr.mxu0 0.0
  %1442 = vmatpush1.msra.mxu0 0.0
  %1443 = vmatprep.subr.mxu0 0.0
  %1444 = vmatpush1.msra.mxu0 0.0
  %1445 = vmatprep.subr.mxu0 0.0
  %1446 = vmatpush1.msra.mxu0 0.0
  %1447 = vmatprep.subr.mxu0 0.0
  %1448 = vmatpush1.msra.mxu0 0.0
  %1449 = vmatprep.subr.mxu0 0.0
  %1450 = vmatpush1.msra.mxu0 0.0
  %1451 = vmatprep.subr.mxu0 0.0
  %1452 = vmatpush1.msra.mxu0 0.0
  %1453 = vmatprep.subr.mxu0 0.0
  %1454 = vmatpush1.msra.mxu0 0.0
  %1455 = vmatprep.subr.mxu0 0.0
  %1456 = vmatpush1.msra.mxu0 0.0
  %1457 = vmatprep.subr.mxu0 0.0
  %1458 = vmatpush1.msra.mxu0 0.0
  %1459 = vmatprep.mubr.f32.mxu0 0.0
  %1460 = vmatmul.mubr.f32.gmra.mrb[0].mxu0 %v1390
  %v1461 = vpop.f32.mrb[0].mxu0
  %v1462 = vadd.f32 %v1386, %v1461
  %v1463 = vpop.f32.mrb[0].mxu0
  %1464 = vmatprep.mubr.f32.mxu0 0.0
  %1465 = vmatmul.mubr.f32.gmra.mrb[0].mxu0 %v1393
  %v1466 = vpop.f32.mrb[0].mxu0
  %v1467 = vadd.f32 %v1386, %v1466
  %v1468 = vpop.f32.mrb[0].mxu0
  %1469 = vdwg.mxu0
  %v1470 = vadd.f32 %v1261, %v1462
  %v1471 = vadd.f32 %v1262, %v1467
  %v1472 = vld [vmem:[%s19] sm:$0x1]
  %v1473 = vld [vmem:[%s20] sm:$0x1]
  %v1474 = vsel %vm88, %v1470, 0.0
  %1475 = vadd.xlane.f32.xlu0 %v1474
  %v1476 = vpop.xlane.xlu0 %1475
  %v1477 = vsel %vm88, %v1471, 0.0
  %1478 = vadd.xlane.f32.xlu0 %v1477
  %v1479 = vpop.xlane.xlu0 %1478
  %v1480 = vmul.f32 %v1476, %v95
  %v1481 = vmul.f32 %v1479, %v95
  %v1482 = vsub.f32 %v1470, %v1480
  %v1483 = vsub.f32 %v1471, %v1481
  %v1484 = vmul.f32 %v1482, %v1482
  %v1485 = vmul.f32 %v1483, %v1483
  %v1486 = vsel %vm88, %v1484, 0.0
  %1487 = vadd.xlane.f32.xlu0 %v1486
  %v1488 = vpop.xlane.xlu0 %1487
  %v1489 = vsel %vm88, %v1485, 0.0
  %1490 = vadd.xlane.f32.xlu0 %v1489
  %v1491 = vpop.xlane.xlu0 %1490
  %v1492 = vmul.f32 %v1488, %v95
  %v1493 = vmul.f32 %v1491, %v95
  %v1494 = vadd.f32 %v1492, 1e-12
  %v1495 = vadd.f32 %v1493, 1e-12
  %v1496 = vrsqrt.pop %v1494
  %v1497 = vrsqrt.pop %v1495
  %v1498 = vmul.f32 %v1482, %v1496
  %v1499 = vmul.f32 %v1483, %v1497
  %v1501 = vlaneseq
  %v1502 = vshrl.u32 %v1501, 7
  %v1503 = vsub.s32 0, %v1502
  %v1504 = vrot.slane %v1472, %v1503
  %v1506 = vmul.f32 %v1498, %v1504
  %v1507 = vmul.f32 %v1499, %v1504
  %v1509 = vlaneseq
  %v1510 = vshrl.u32 %v1509, 7
  %v1511 = vsub.s32 0, %v1510
  %v1512 = vrot.slane %v1473, %v1511
  %v1514 = vadd.f32 %v1506, %v1512
  %v1515 = vadd.f32 %v1507, %v1512
  %s1516 = scalar_lea.vmem %s5, 64
  %v1517 = vld [vmem:[%s1516] sm:$0xff]
  %v1518 = vld [vmem:[%s1516 + $0x8] sm:$0xff]
  %v1519 = vld [vmem:[%s1516 + $0x10] sm:$0xff]
  %v1520 = vld [vmem:[%s1516 + $0x18] sm:$0xff]
  %s1521 = scalar_lea.vmem %s6, 2
  %v1522 = vld [vmem:[%s1521] sm:$0x1]
  %v1524 = vlaneseq
  %v1525 = vshrl.u32 %v1524, 7
  %v1526 = vsub.s32 0, %v1525
  %v1527 = vrot.slane %v1522, %v1526
  %v1530 = vsel %vm88, %v1514, 0
  %v1533 = vsel %vm88, %v1515, 0
  %1535 = vmatprep.subr.mxu0 0.0
  %1536 = vmatpush1.msra.mxu0 %v1517
  %1537 = vmatprep.subr.mxu0 0.0
  %1538 = vmatpush1.msra.mxu0 %v1518
  %1539 = vmatprep.subr.mxu0 0.0
  %1540 = vmatpush1.msra.mxu0 %v1519
  %1541 = vmatprep.subr.mxu0 0.0
  %1542 = vmatpush1.msra.mxu0 %v1520
  %1543 = vmatprep.subr.mxu0 0.0
  %1544 = vmatpush1.msra.mxu0 0.0
  %1545 = vmatprep.subr.mxu0 0.0
  %1546 = vmatpush1.msra.mxu0 0.0
  %1547 = vmatprep.subr.mxu0 0.0
  %1548 = vmatpush1.msra.mxu0 0.0
  %1549 = vmatprep.subr.mxu0 0.0
  %1550 = vmatpush1.msra.mxu0 0.0
  %1551 = vmatprep.subr.mxu0 0.0
  %1552 = vmatpush1.msra.mxu0 0.0
  %1553 = vmatprep.subr.mxu0 0.0
  %1554 = vmatpush1.msra.mxu0 0.0
  %1555 = vmatprep.subr.mxu0 0.0
  %1556 = vmatpush1.msra.mxu0 0.0
  %1557 = vmatprep.subr.mxu0 0.0
  %1558 = vmatpush1.msra.mxu0 0.0
  %1559 = vmatprep.subr.mxu0 0.0
  %1560 = vmatpush1.msra.mxu0 0.0
  %1561 = vmatprep.subr.mxu0 0.0
  %1562 = vmatpush1.msra.mxu0 0.0
  %1563 = vmatprep.subr.mxu0 0.0
  %1564 = vmatpush1.msra.mxu0 0.0
  %1565 = vmatprep.subr.mxu0 0.0
  %1566 = vmatpush1.msra.mxu0 0.0
  %1567 = vmatprep.subr.mxu0 0.0
  %1568 = vmatpush1.msra.mxu0 0.0
  %1569 = vmatprep.subr.mxu0 0.0
  %1570 = vmatpush1.msra.mxu0 0.0
  %1571 = vmatprep.subr.mxu0 0.0
  %1572 = vmatpush1.msra.mxu0 0.0
  %1573 = vmatprep.subr.mxu0 0.0
  %1574 = vmatpush1.msra.mxu0 0.0
  %1575 = vmatprep.subr.mxu0 0.0
  %1576 = vmatpush1.msra.mxu0 0.0
  %1577 = vmatprep.subr.mxu0 0.0
  %1578 = vmatpush1.msra.mxu0 0.0
  %1579 = vmatprep.subr.mxu0 0.0
  %1580 = vmatpush1.msra.mxu0 0.0
  %1581 = vmatprep.subr.mxu0 0.0
  %1582 = vmatpush1.msra.mxu0 0.0
  %1583 = vmatprep.subr.mxu0 0.0
  %1584 = vmatpush1.msra.mxu0 0.0
  %1585 = vmatprep.subr.mxu0 0.0
  %1586 = vmatpush1.msra.mxu0 0.0
  %1587 = vmatprep.subr.mxu0 0.0
  %1588 = vmatpush1.msra.mxu0 0.0
  %1589 = vmatprep.subr.mxu0 0.0
  %1590 = vmatpush1.msra.mxu0 0.0
  %1591 = vmatprep.subr.mxu0 0.0
  %1592 = vmatpush1.msra.mxu0 0.0
  %1593 = vmatprep.subr.mxu0 0.0
  %1594 = vmatpush1.msra.mxu0 0.0
  %1595 = vmatprep.subr.mxu0 0.0
  %1596 = vmatpush1.msra.mxu0 0.0
  %1597 = vmatprep.subr.mxu0 0.0
  %1598 = vmatpush1.msra.mxu0 0.0
  %1599 = vmatprep.mubr.f32.mxu0 0.0
  %1600 = vmatmul.mubr.f32.gmra.mrb[0].mxu0 %v1530
  %v1601 = vpop.f32.mrb[0].mxu0
  %v1602 = vadd.f32 %v1527, %v1601
  %v1603 = vpop.f32.mrb[0].mxu0
  %1604 = vmatprep.mubr.f32.mxu0 0.0
  %1605 = vmatmul.mubr.f32.gmra.mrb[0].mxu0 %v1533
  %v1606 = vpop.f32.mrb[0].mxu0
  %v1607 = vadd.f32 %v1527, %v1606
  %v1608 = vpop.f32.mrb[0].mxu0
  %1609 = vdwg.mxu0
  %s1610 = scalar_lea.vmem %s7, 64
  %v1611 = vld [vmem:[%s1610] sm:$0xff]
  %v1612 = vld [vmem:[%s1610 + $0x8] sm:$0xff]
  %v1613 = vld [vmem:[%s1610 + $0x10] sm:$0xff]
  %v1614 = vld [vmem:[%s1610 + $0x18] sm:$0xff]
  %s1615 = scalar_lea.vmem %s8, 2
  %v1616 = vld [vmem:[%s1615] sm:$0x1]
  %v1618 = vlaneseq
  %v1619 = vshrl.u32 %v1618, 7
  %v1620 = vsub.s32 0, %v1619
  %v1621 = vrot.slane %v1616, %v1620
  %1623 = vmatprep.subr.mxu0 0.0
  %1624 = vmatpush1.msra.mxu0 %v1611
  %1625 = vmatprep.subr.mxu0 0.0
  %1626 = vmatpush1.msra.mxu0 %v1612
  %1627 = vmatprep.subr.mxu0 0.0
  %1628 = vmatpush1.msra.mxu0 %v1613
  %1629 = vmatprep.subr.mxu0 0.0
  %1630 = vmatpush1.msra.mxu0 %v1614
  %1631 = vmatprep.subr.mxu0 0.0
  %1632 = vmatpush1.msra.mxu0 0.0
  %1633 = vmatprep.subr.mxu0 0.0
  %1634 = vmatpush1.msra.mxu0 0.0
  %1635 = vmatprep.subr.mxu0 0.0
  %1636 = vmatpush1.msra.mxu0 0.0
  %1637 = vmatprep.subr.mxu0 0.0
  %1638 = vmatpush1.msra.mxu0 0.0
  %1639 = vmatprep.subr.mxu0 0.0
  %1640 = vmatpush1.msra.mxu0 0.0
  %1641 = vmatprep.subr.mxu0 0.0
  %1642 = vmatpush1.msra.mxu0 0.0
  %1643 = vmatprep.subr.mxu0 0.0
  %1644 = vmatpush1.msra.mxu0 0.0
  %1645 = vmatprep.subr.mxu0 0.0
  %1646 = vmatpush1.msra.mxu0 0.0
  %1647 = vmatprep.subr.mxu0 0.0
  %1648 = vmatpush1.msra.mxu0 0.0
  %1649 = vmatprep.subr.mxu0 0.0
  %1650 = vmatpush1.msra.mxu0 0.0
  %1651 = vmatprep.subr.mxu0 0.0
  %1652 = vmatpush1.msra.mxu0 0.0
  %1653 = vmatprep.subr.mxu0 0.0
  %1654 = vmatpush1.msra.mxu0 0.0
  %1655 = vmatprep.subr.mxu0 0.0
  %1656 = vmatpush1.msra.mxu0 0.0
  %1657 = vmatprep.subr.mxu0 0.0
  %1658 = vmatpush1.msra.mxu0 0.0
  %1659 = vmatprep.subr.mxu0 0.0
  %1660 = vmatpush1.msra.mxu0 0.0
  %1661 = vmatprep.subr.mxu0 0.0
  %1662 = vmatpush1.msra.mxu0 0.0
  %1663 = vmatprep.subr.mxu0 0.0
  %1664 = vmatpush1.msra.mxu0 0.0
  %1665 = vmatprep.subr.mxu0 0.0
  %1666 = vmatpush1.msra.mxu0 0.0
  %1667 = vmatprep.subr.mxu0 0.0
  %1668 = vmatpush1.msra.mxu0 0.0
  %1669 = vmatprep.subr.mxu0 0.0
  %1670 = vmatpush1.msra.mxu0 0.0
  %1671 = vmatprep.subr.mxu0 0.0
  %1672 = vmatpush1.msra.mxu0 0.0
  %1673 = vmatprep.subr.mxu0 0.0
  %1674 = vmatpush1.msra.mxu0 0.0
  %1675 = vmatprep.subr.mxu0 0.0
  %1676 = vmatpush1.msra.mxu0 0.0
  %1677 = vmatprep.subr.mxu0 0.0
  %1678 = vmatpush1.msra.mxu0 0.0
  %1679 = vmatprep.subr.mxu0 0.0
  %1680 = vmatpush1.msra.mxu0 0.0
  %1681 = vmatprep.subr.mxu0 0.0
  %1682 = vmatpush1.msra.mxu0 0.0
  %1683 = vmatprep.subr.mxu0 0.0
  %1684 = vmatpush1.msra.mxu0 0.0
  %1685 = vmatprep.subr.mxu0 0.0
  %1686 = vmatpush1.msra.mxu0 0.0
  %1687 = vmatprep.mubr.f32.mxu0 0.0
  %1688 = vmatmul.mubr.f32.gmra.mrb[0].mxu0 %v1530
  %v1689 = vpop.f32.mrb[0].mxu0
  %v1690 = vadd.f32 %v1621, %v1689
  %v1691 = vpop.f32.mrb[0].mxu0
  %1692 = vmatprep.mubr.f32.mxu0 0.0
  %1693 = vmatmul.mubr.f32.gmra.mrb[0].mxu0 %v1533
  %v1694 = vpop.f32.mrb[0].mxu0
  %v1695 = vadd.f32 %v1621, %v1694
  %v1696 = vpop.f32.mrb[0].mxu0
  %1697 = vdwg.mxu0
  %s1698 = scalar_lea.vmem %s9, 64
  %v1699 = vld [vmem:[%s1698] sm:$0xff]
  %v1700 = vld [vmem:[%s1698 + $0x8] sm:$0xff]
  %v1701 = vld [vmem:[%s1698 + $0x10] sm:$0xff]
  %v1702 = vld [vmem:[%s1698 + $0x18] sm:$0xff]
  %s1703 = scalar_lea.vmem %s10, 2
  %v1704 = vld [vmem:[%s1703] sm:$0x1]
  %v1706 = vlaneseq
  %v1707 = vshrl.u32 %v1706, 7
  %v1708 = vsub.s32 0, %v1707
  %v1709 = vrot.slane %v1704, %v1708
  %1711 = vmatprep.subr.mxu0 0.0
  %1712 = vmatpush1.msra.mxu0 %v1699
  %1713 = vmatprep.subr.mxu0 0.0
  %1714 = vmatpush1.msra.mxu0 %v1700
  %1715 = vmatprep.subr.mxu0 0.0
  %1716 = vmatpush1.msra.mxu0 %v1701
  %1717 = vmatprep.subr.mxu0 0.0
  %1718 = vmatpush1.msra.mxu0 %v1702
  %1719 = vmatprep.subr.mxu0 0.0
  %1720 = vmatpush1.msra.mxu0 0.0
  %1721 = vmatprep.subr.mxu0 0.0
  %1722 = vmatpush1.msra.mxu0 0.0
  %1723 = vmatprep.subr.mxu0 0.0
  %1724 = vmatpush1.msra.mxu0 0.0
  %1725 = vmatprep.subr.mxu0 0.0
  %1726 = vmatpush1.msra.mxu0 0.0
  %1727 = vmatprep.subr.mxu0 0.0
  %1728 = vmatpush1.msra.mxu0 0.0
  %1729 = vmatprep.subr.mxu0 0.0
  %1730 = vmatpush1.msra.mxu0 0.0
  %1731 = vmatprep.subr.mxu0 0.0
  %1732 = vmatpush1.msra.mxu0 0.0
  %1733 = vmatprep.subr.mxu0 0.0
  %1734 = vmatpush1.msra.mxu0 0.0
  %1735 = vmatprep.subr.mxu0 0.0
  %1736 = vmatpush1.msra.mxu0 0.0
  %1737 = vmatprep.subr.mxu0 0.0
  %1738 = vmatpush1.msra.mxu0 0.0
  %1739 = vmatprep.subr.mxu0 0.0
  %1740 = vmatpush1.msra.mxu0 0.0
  %1741 = vmatprep.subr.mxu0 0.0
  %1742 = vmatpush1.msra.mxu0 0.0
  %1743 = vmatprep.subr.mxu0 0.0
  %1744 = vmatpush1.msra.mxu0 0.0
  %1745 = vmatprep.subr.mxu0 0.0
  %1746 = vmatpush1.msra.mxu0 0.0
  %1747 = vmatprep.subr.mxu0 0.0
  %1748 = vmatpush1.msra.mxu0 0.0
  %1749 = vmatprep.subr.mxu0 0.0
  %1750 = vmatpush1.msra.mxu0 0.0
  %1751 = vmatprep.subr.mxu0 0.0
  %1752 = vmatpush1.msra.mxu0 0.0
  %1753 = vmatprep.subr.mxu0 0.0
  %1754 = vmatpush1.msra.mxu0 0.0
  %1755 = vmatprep.subr.mxu0 0.0
  %1756 = vmatpush1.msra.mxu0 0.0
  %1757 = vmatprep.subr.mxu0 0.0
  %1758 = vmatpush1.msra.mxu0 0.0
  %1759 = vmatprep.subr.mxu0 0.0
  %1760 = vmatpush1.msra.mxu0 0.0
  %1761 = vmatprep.subr.mxu0 0.0
  %1762 = vmatpush1.msra.mxu0 0.0
  %1763 = vmatprep.subr.mxu0 0.0
  %1764 = vmatpush1.msra.mxu0 0.0
  %1765 = vmatprep.subr.mxu0 0.0
  %1766 = vmatpush1.msra.mxu0 0.0
  %1767 = vmatprep.subr.mxu0 0.0
  %1768 = vmatpush1.msra.mxu0 0.0
  %1769 = vmatprep.subr.mxu0 0.0
  %1770 = vmatpush1.msra.mxu0 0.0
  %1771 = vmatprep.subr.mxu0 0.0
  %1772 = vmatpush1.msra.mxu0 0.0
  %1773 = vmatprep.subr.mxu0 0.0
  %1774 = vmatpush1.msra.mxu0 0.0
  %1775 = vmatprep.mubr.f32.mxu0 0.0
  %1776 = vmatmul.mubr.f32.gmra.mrb[0].mxu0 %v1530
  %v1777 = vpop.f32.mrb[0].mxu0
  %v1778 = vadd.f32 %v1709, %v1777
  %v1779 = vpop.f32.mrb[0].mxu0
  %1780 = vmatprep.mubr.f32.mxu0 0.0
  %1781 = vmatmul.mubr.f32.gmra.mrb[0].mxu0 %v1533
  %v1782 = vpop.f32.mrb[0].mxu0
  %v1783 = vadd.f32 %v1709, %v1782
  %v1784 = vpop.f32.mrb[0].mxu0
  %1785 = vdwg.mxu0
  %v1787 = vsel %vm396, %v1602, 0
  %v1790 = vsel %vm396, %v1607, 0
  %v1793 = vsel %vm396, %v1690, 0
  %v1796 = vsel %vm396, %v1695, 0
  %1798 = vmatprep.subr.mxu0 0.0
  %1799 = vmatpush1.xpose.msra.mxu0 %v1793
  %1800 = vmatprep.subr.mxu0 0.0
  %1801 = vmatpush1.xpose.msra.mxu0 %v1796
  %1802 = vmatprep.subr.mxu0 0.0
  %1803 = vmatpush1.xpose.msra.mxu0 0.0
  %1804 = vmatprep.subr.mxu0 0.0
  %1805 = vmatpush1.xpose.msra.mxu0 0.0
  %1806 = vmatprep.subr.mxu0 0.0
  %1807 = vmatpush1.xpose.msra.mxu0 0.0
  %1808 = vmatprep.subr.mxu0 0.0
  %1809 = vmatpush1.xpose.msra.mxu0 0.0
  %1810 = vmatprep.subr.mxu0 0.0
  %1811 = vmatpush1.xpose.msra.mxu0 0.0
  %1812 = vmatprep.subr.mxu0 0.0
  %1813 = vmatpush1.xpose.msra.mxu0 0.0
  %1814 = vmatprep.subr.mxu0 0.0
  %1815 = vmatpush1.xpose.msra.mxu0 0.0
  %1816 = vmatprep.subr.mxu0 0.0
  %1817 = vmatpush1.xpose.msra.mxu0 0.0
  %1818 = vmatprep.subr.mxu0 0.0
  %1819 = vmatpush1.xpose.msra.mxu0 0.0
  %1820 = vmatprep.subr.mxu0 0.0
  %1821 = vmatpush1.xpose.msra.mxu0 0.0
  %1822 = vmatprep.subr.mxu0 0.0
  %1823 = vmatpush1.xpose.msra.mxu0 0.0
  %1824 = vmatprep.subr.mxu0 0.0
  %1825 = vmatpush1.xpose.msra.mxu0 0.0
  %1826 = vmatprep.subr.mxu0 0.0
  %1827 = vmatpush1.xpose.msra.mxu0 0.0
  %1828 = vmatprep.subr.mxu0 0.0
  %1829 = vmatpush1.xpose.msra.mxu0 0.0
  %1830 = vmatprep.subr.mxu0 0.0
  %1831 = vmatpush1.xpose.msra.mxu0 0.0
  %1832 = vmatprep.subr.mxu0 0.0
  %1833 = vmatpush1.xpose.msra.mxu0 0.0
  %1834 = vmatprep.subr.mxu0 0.0
  %1835 = vmatpush1.xpose.msra.mxu0 0.0
  %1836 = vmatprep.subr.mxu0 0.0
  %1837 = vmatpush1.xpose.msra.mxu0 0.0
  %1838 = vmatprep.subr.mxu0 0.0
  %1839 = vmatpush1.xpose.msra.mxu0 0.0
  %1840 = vmatprep.subr.mxu0 0.0
  %1841 = vmatpush1.xpose.msra.mxu0 0.0
  %1842 = vmatprep.subr.mxu0 0.0
  %1843 = vmatpush1.xpose.msra.mxu0 0.0
  %1844 = vmatprep.subr.mxu0 0.0
  %1845 = vmatpush1.xpose.msra.mxu0 0.0
  %1846 = vmatprep.subr.mxu0 0.0
  %1847 = vmatpush1.xpose.msra.mxu0 0.0
  %1848 = vmatprep.subr.mxu0 0.0
  %1849 = vmatpush1.xpose.msra.mxu0 0.0
  %1850 = vmatprep.subr.mxu0 0.0
  %1851 = vmatpush1.xpose.msra.mxu0 0.0
  %1852 = vmatprep.subr.mxu0 0.0
  %1853 = vmatpush1.xpose.msra.mxu0 0.0
  %1854 = vmatprep.subr.mxu0 0.0
  %1855 = vmatpush1.xpose.msra.mxu0 0.0
  %1856 = vmatprep.subr.mxu0 0.0
  %1857 = vmatpush1.xpose.msra.mxu0 0.0
  %1858 = vmatprep.subr.mxu0 0.0
  %1859 = vmatpush1.xpose.msra.mxu0 0.0
  %1860 = vmatprep.subr.mxu0 0.0
  %1861 = vmatpush1.xpose.msra.mxu0 0.0
  %1862 = vmatprep.mubr.f32.mxu0 0.0
  %1863 = vmatmul.mubr.f32.gmra.mrb[0].mxu0 %v1787
  %v1864 = vpop.f32.mrb[0].mxu0
  %v1865 = vadd.f32 %v82, %v1864
  %v1866 = vpop.f32.mrb[0].mxu0
  %1867 = vmatprep.mubr.f32.mxu0 0.0
  %1868 = vmatmul.mubr.f32.gmra.mrb[0].mxu0 %v1790
  %v1869 = vpop.f32.mrb[0].mxu0
  %v1870 = vadd.f32 %v83, %v1869
  %v1871 = vpop.f32.mrb[0].mxu0
  %1872 = vdwg.mxu0
  %v1873 = vsel %vm396, %v1865, -inf
  %1874 = vmax.xlane.f32.xlu0 %v1873
  %v1875 = vpop.xlane.xlu0 %1874
  %v1876 = vsel %vm396, %v1870, -inf
  %1877 = vmax.xlane.f32.xlu0 %v1876
  %v1878 = vpop.xlane.xlu0 %1877
  %v1879 = vsub.f32 %v1865, %v1875
  %v1880 = vsub.f32 %v1870, %v1878
  %v1881 = vmul.f32 %v1879, 1.442695
  %v1882 = vpow.pop %v1881
  %v1883 = vmul.f32 %v1880, 1.442695
  %v1884 = vpow.pop %v1883
  %v1885 = vsel %vm396, %v1882, 0.0
  %1886 = vadd.xlane.f32.xlu0 %v1885
  %v1887 = vpop.xlane.xlu0 %1886
  %v1888 = vsel %vm396, %v1884, 0.0
  %1889 = vadd.xlane.f32.xlu0 %v1888
  %v1890 = vpop.xlane.xlu0 %1889
  %v1891 = vrcp.pop %v1887
  %v1892 = vrcp.pop %v1890
  %v1893 = vmul.f32 %v1882, %v1891
  %v1894 = vmul.f32 %v1884, %v1892
  %v1896 = vsel %vm396, %v1893, 0
  %v1899 = vsel %vm396, %v1894, 0
  %1901 = vmatprep.subr.mxu0 0.0
  %1902 = vmatpush1.msra.mxu0 %v1778
  %1903 = vmatprep.subr.mxu0 0.0
  %1904 = vmatpush1.msra.mxu0 %v1783
  %1905 = vmatprep.subr.mxu0 0.0
  %1906 = vmatpush1.msra.mxu0 0.0
  %1907 = vmatprep.subr.mxu0 0.0
  %1908 = vmatpush1.msra.mxu0 0.0
  %1909 = vmatprep.subr.mxu0 0.0
  %1910 = vmatpush1.msra.mxu0 0.0
  %1911 = vmatprep.subr.mxu0 0.0
  %1912 = vmatpush1.msra.mxu0 0.0
  %1913 = vmatprep.subr.mxu0 0.0
  %1914 = vmatpush1.msra.mxu0 0.0
  %1915 = vmatprep.subr.mxu0 0.0
  %1916 = vmatpush1.msra.mxu0 0.0
  %1917 = vmatprep.subr.mxu0 0.0
  %1918 = vmatpush1.msra.mxu0 0.0
  %1919 = vmatprep.subr.mxu0 0.0
  %1920 = vmatpush1.msra.mxu0 0.0
  %1921 = vmatprep.subr.mxu0 0.0
  %1922 = vmatpush1.msra.mxu0 0.0
  %1923 = vmatprep.subr.mxu0 0.0
  %1924 = vmatpush1.msra.mxu0 0.0
  %1925 = vmatprep.subr.mxu0 0.0
  %1926 = vmatpush1.msra.mxu0 0.0
  %1927 = vmatprep.subr.mxu0 0.0
  %1928 = vmatpush1.msra.mxu0 0.0
  %1929 = vmatprep.subr.mxu0 0.0
  %1930 = vmatpush1.msra.mxu0 0.0
  %1931 = vmatprep.subr.mxu0 0.0
  %1932 = vmatpush1.msra.mxu0 0.0
  %1933 = vmatprep.subr.mxu0 0.0
  %1934 = vmatpush1.msra.mxu0 0.0
  %1935 = vmatprep.subr.mxu0 0.0
  %1936 = vmatpush1.msra.mxu0 0.0
  %1937 = vmatprep.subr.mxu0 0.0
  %1938 = vmatpush1.msra.mxu0 0.0
  %1939 = vmatprep.subr.mxu0 0.0
  %1940 = vmatpush1.msra.mxu0 0.0
  %1941 = vmatprep.subr.mxu0 0.0
  %1942 = vmatpush1.msra.mxu0 0.0
  %1943 = vmatprep.subr.mxu0 0.0
  %1944 = vmatpush1.msra.mxu0 0.0
  %1945 = vmatprep.subr.mxu0 0.0
  %1946 = vmatpush1.msra.mxu0 0.0
  %1947 = vmatprep.subr.mxu0 0.0
  %1948 = vmatpush1.msra.mxu0 0.0
  %1949 = vmatprep.subr.mxu0 0.0
  %1950 = vmatpush1.msra.mxu0 0.0
  %1951 = vmatprep.subr.mxu0 0.0
  %1952 = vmatpush1.msra.mxu0 0.0
  %1953 = vmatprep.subr.mxu0 0.0
  %1954 = vmatpush1.msra.mxu0 0.0
  %1955 = vmatprep.subr.mxu0 0.0
  %1956 = vmatpush1.msra.mxu0 0.0
  %1957 = vmatprep.subr.mxu0 0.0
  %1958 = vmatpush1.msra.mxu0 0.0
  %1959 = vmatprep.subr.mxu0 0.0
  %1960 = vmatpush1.msra.mxu0 0.0
  %1961 = vmatprep.subr.mxu0 0.0
  %1962 = vmatpush1.msra.mxu0 0.0
  %1963 = vmatprep.subr.mxu0 0.0
  %1964 = vmatpush1.msra.mxu0 0.0
  %1965 = vmatprep.mubr.f32.mxu0 0.0
  %1966 = vmatmul.mubr.f32.gmra.mrb[0].mxu0 %v1896
  %v1967 = vpop.f32.mrb[0].mxu0
  %v1968 = vadd.f32 0.0, %v1967
  %v1969 = vpop.f32.mrb[0].mxu0
  %1970 = vmatprep.mubr.f32.mxu0 0.0
  %1971 = vmatmul.mubr.f32.gmra.mrb[0].mxu0 %v1899
  %v1972 = vpop.f32.mrb[0].mxu0
  %v1973 = vadd.f32 0.0, %v1972
  %v1974 = vpop.f32.mrb[0].mxu0
  %1975 = vdwg.mxu0
  %s1976 = scalar_lea.vmem %s11, 32
  %v1977 = vld [vmem:[%s1976] sm:$0xff]
  %v1978 = vld [vmem:[%s1976 + $0x8] sm:$0xff]
  %s1979 = scalar_lea.vmem %s5, 96
  %v1980 = vld [vmem:[%s1979] sm:$0xff]
  %v1981 = vld [vmem:[%s1979 + $0x8] sm:$0xff]
  %v1982 = vld [vmem:[%s1979 + $0x10] sm:$0xff]
  %v1983 = vld [vmem:[%s1979 + $0x18] sm:$0xff]
  %s1984 = scalar_lea.vmem %s6, 3
  %v1985 = vld [vmem:[%s1984] sm:$0x1]
  %v1987 = vlaneseq
  %v1988 = vshrl.u32 %v1987, 7
  %v1989 = vsub.s32 0, %v1988
  %v1990 = vrot.slane %v1985, %v1989
  %1992 = vmatprep.subr.mxu0 0.0
  %1993 = vmatpush1.msra.mxu0 %v1980
  %1994 = vmatprep.subr.mxu0 0.0
  %1995 = vmatpush1.msra.mxu0 %v1981
  %1996 = vmatprep.subr.mxu0 0.0
  %1997 = vmatpush1.msra.mxu0 %v1982
  %1998 = vmatprep.subr.mxu0 0.0
  %1999 = vmatpush1.msra.mxu0 %v1983
  %2000 = vmatprep.subr.mxu0 0.0
  %2001 = vmatpush1.msra.mxu0 0.0
  %2002 = vmatprep.subr.mxu0 0.0
  %2003 = vmatpush1.msra.mxu0 0.0
  %2004 = vmatprep.subr.mxu0 0.0
  %2005 = vmatpush1.msra.mxu0 0.0
  %2006 = vmatprep.subr.mxu0 0.0
  %2007 = vmatpush1.msra.mxu0 0.0
  %2008 = vmatprep.subr.mxu0 0.0
  %2009 = vmatpush1.msra.mxu0 0.0
  %2010 = vmatprep.subr.mxu0 0.0
  %2011 = vmatpush1.msra.mxu0 0.0
  %2012 = vmatprep.subr.mxu0 0.0
  %2013 = vmatpush1.msra.mxu0 0.0
  %2014 = vmatprep.subr.mxu0 0.0
  %2015 = vmatpush1.msra.mxu0 0.0
  %2016 = vmatprep.subr.mxu0 0.0
  %2017 = vmatpush1.msra.mxu0 0.0
  %2018 = vmatprep.subr.mxu0 0.0
  %2019 = vmatpush1.msra.mxu0 0.0
  %2020 = vmatprep.subr.mxu0 0.0
  %2021 = vmatpush1.msra.mxu0 0.0
  %2022 = vmatprep.subr.mxu0 0.0
  %2023 = vmatpush1.msra.mxu0 0.0
  %2024 = vmatprep.subr.mxu0 0.0
  %2025 = vmatpush1.msra.mxu0 0.0
  %2026 = vmatprep.subr.mxu0 0.0
  %2027 = vmatpush1.msra.mxu0 0.0
  %2028 = vmatprep.subr.mxu0 0.0
  %2029 = vmatpush1.msra.mxu0 0.0
  %2030 = vmatprep.subr.mxu0 0.0
  %2031 = vmatpush1.msra.mxu0 0.0
  %2032 = vmatprep.subr.mxu0 0.0
  %2033 = vmatpush1.msra.mxu0 0.0
  %2034 = vmatprep.subr.mxu0 0.0
  %2035 = vmatpush1.msra.mxu0 0.0
  %2036 = vmatprep.subr.mxu0 0.0
  %2037 = vmatpush1.msra.mxu0 0.0
  %2038 = vmatprep.subr.mxu0 0.0
  %2039 = vmatpush1.msra.mxu0 0.0
  %2040 = vmatprep.subr.mxu0 0.0
  %2041 = vmatpush1.msra.mxu0 0.0
  %2042 = vmatprep.subr.mxu0 0.0
  %2043 = vmatpush1.msra.mxu0 0.0
  %2044 = vmatprep.subr.mxu0 0.0
  %2045 = vmatpush1.msra.mxu0 0.0
  %2046 = vmatprep.subr.mxu0 0.0
  %2047 = vmatpush1.msra.mxu0 0.0
  %2048 = vmatprep.subr.mxu0 0.0
  %2049 = vmatpush1.msra.mxu0 0.0
  %2050 = vmatprep.subr.mxu0 0.0
  %2051 = vmatpush1.msra.mxu0 0.0
  %2052 = vmatprep.subr.mxu0 0.0
  %2053 = vmatpush1.msra.mxu0 0.0
  %2054 = vmatprep.subr.mxu0 0.0
  %2055 = vmatpush1.msra.mxu0 0.0
  %2056 = vmatprep.mubr.f32.mxu0 0.0
  %2057 = vmatmul.mubr.f32.gmra.mrb[0].mxu0 %v1530
  %v2058 = vpop.f32.mrb[0].mxu0
  %v2059 = vadd.f32 %v1990, %v2058
  %v2060 = vpop.f32.mrb[0].mxu0
  %2061 = vmatprep.mubr.f32.mxu0 0.0
  %2062 = vmatmul.mubr.f32.gmra.mrb[0].mxu0 %v1533
  %v2063 = vpop.f32.mrb[0].mxu0
  %v2064 = vadd.f32 %v1990, %v2063
  %v2065 = vpop.f32.mrb[0].mxu0
  %2066 = vdwg.mxu0
  %s2067 = scalar_lea.vmem %s7, 96
  %v2068 = vld [vmem:[%s2067] sm:$0xff]
  %v2069 = vld [vmem:[%s2067 + $0x8] sm:$0xff]
  %v2070 = vld [vmem:[%s2067 + $0x10] sm:$0xff]
  %v2071 = vld [vmem:[%s2067 + $0x18] sm:$0xff]
  %s2072 = scalar_lea.vmem %s8, 3
  %v2073 = vld [vmem:[%s2072] sm:$0x1]
  %v2075 = vlaneseq
  %v2076 = vshrl.u32 %v2075, 7
  %v2077 = vsub.s32 0, %v2076
  %v2078 = vrot.slane %v2073, %v2077
  %2080 = vmatprep.subr.mxu0 0.0
  %2081 = vmatpush1.msra.mxu0 %v2068
  %2082 = vmatprep.subr.mxu0 0.0
  %2083 = vmatpush1.msra.mxu0 %v2069
  %2084 = vmatprep.subr.mxu0 0.0
  %2085 = vmatpush1.msra.mxu0 %v2070
  %2086 = vmatprep.subr.mxu0 0.0
  %2087 = vmatpush1.msra.mxu0 %v2071
  %2088 = vmatprep.subr.mxu0 0.0
  %2089 = vmatpush1.msra.mxu0 0.0
  %2090 = vmatprep.subr.mxu0 0.0
  %2091 = vmatpush1.msra.mxu0 0.0
  %2092 = vmatprep.subr.mxu0 0.0
  %2093 = vmatpush1.msra.mxu0 0.0
  %2094 = vmatprep.subr.mxu0 0.0
  %2095 = vmatpush1.msra.mxu0 0.0
  %2096 = vmatprep.subr.mxu0 0.0
  %2097 = vmatpush1.msra.mxu0 0.0
  %2098 = vmatprep.subr.mxu0 0.0
  %2099 = vmatpush1.msra.mxu0 0.0
  %2100 = vmatprep.subr.mxu0 0.0
  %2101 = vmatpush1.msra.mxu0 0.0
  %2102 = vmatprep.subr.mxu0 0.0
  %2103 = vmatpush1.msra.mxu0 0.0
  %2104 = vmatprep.subr.mxu0 0.0
  %2105 = vmatpush1.msra.mxu0 0.0
  %2106 = vmatprep.subr.mxu0 0.0
  %2107 = vmatpush1.msra.mxu0 0.0
  %2108 = vmatprep.subr.mxu0 0.0
  %2109 = vmatpush1.msra.mxu0 0.0
  %2110 = vmatprep.subr.mxu0 0.0
  %2111 = vmatpush1.msra.mxu0 0.0
  %2112 = vmatprep.subr.mxu0 0.0
  %2113 = vmatpush1.msra.mxu0 0.0
  %2114 = vmatprep.subr.mxu0 0.0
  %2115 = vmatpush1.msra.mxu0 0.0
  %2116 = vmatprep.subr.mxu0 0.0
  %2117 = vmatpush1.msra.mxu0 0.0
  %2118 = vmatprep.subr.mxu0 0.0
  %2119 = vmatpush1.msra.mxu0 0.0
  %2120 = vmatprep.subr.mxu0 0.0
  %2121 = vmatpush1.msra.mxu0 0.0
  %2122 = vmatprep.subr.mxu0 0.0
  %2123 = vmatpush1.msra.mxu0 0.0
  %2124 = vmatprep.subr.mxu0 0.0
  %2125 = vmatpush1.msra.mxu0 0.0
  %2126 = vmatprep.subr.mxu0 0.0
  %2127 = vmatpush1.msra.mxu0 0.0
  %2128 = vmatprep.subr.mxu0 0.0
  %2129 = vmatpush1.msra.mxu0 0.0
  %2130 = vmatprep.subr.mxu0 0.0
  %2131 = vmatpush1.msra.mxu0 0.0
  %2132 = vmatprep.subr.mxu0 0.0
  %2133 = vmatpush1.msra.mxu0 0.0
  %2134 = vmatprep.subr.mxu0 0.0
  %2135 = vmatpush1.msra.mxu0 0.0
  %2136 = vmatprep.subr.mxu0 0.0
  %2137 = vmatpush1.msra.mxu0 0.0
  %2138 = vmatprep.subr.mxu0 0.0
  %2139 = vmatpush1.msra.mxu0 0.0
  %2140 = vmatprep.subr.mxu0 0.0
  %2141 = vmatpush1.msra.mxu0 0.0
  %2142 = vmatprep.subr.mxu0 0.0
  %2143 = vmatpush1.msra.mxu0 0.0
  %2144 = vmatprep.mubr.f32.mxu0 0.0
  %2145 = vmatmul.mubr.f32.gmra.mrb[0].mxu0 %v1530
  %v2146 = vpop.f32.mrb[0].mxu0
  %v2147 = vadd.f32 %v2078, %v2146
  %v2148 = vpop.f32.mrb[0].mxu0
  %2149 = vmatprep.mubr.f32.mxu0 0.0
  %2150 = vmatmul.mubr.f32.gmra.mrb[0].mxu0 %v1533
  %v2151 = vpop.f32.mrb[0].mxu0
  %v2152 = vadd.f32 %v2078, %v2151
  %v2153 = vpop.f32.mrb[0].mxu0
  %2154 = vdwg.mxu0
  %s2155 = scalar_lea.vmem %s9, 96
  %v2156 = vld [vmem:[%s2155] sm:$0xff]
  %v2157 = vld [vmem:[%s2155 + $0x8] sm:$0xff]
  %v2158 = vld [vmem:[%s2155 + $0x10] sm:$0xff]
  %v2159 = vld [vmem:[%s2155 + $0x18] sm:$0xff]
  %s2160 = scalar_lea.vmem %s10, 3
  %v2161 = vld [vmem:[%s2160] sm:$0x1]
  %v2163 = vlaneseq
  %v2164 = vshrl.u32 %v2163, 7
  %v2165 = vsub.s32 0, %v2164
  %v2166 = vrot.slane %v2161, %v2165
  %2168 = vmatprep.subr.mxu0 0.0
  %2169 = vmatpush1.msra.mxu0 %v2156
  %2170 = vmatprep.subr.mxu0 0.0
  %2171 = vmatpush1.msra.mxu0 %v2157
  %2172 = vmatprep.subr.mxu0 0.0
  %2173 = vmatpush1.msra.mxu0 %v2158
  %2174 = vmatprep.subr.mxu0 0.0
  %2175 = vmatpush1.msra.mxu0 %v2159
  %2176 = vmatprep.subr.mxu0 0.0
  %2177 = vmatpush1.msra.mxu0 0.0
  %2178 = vmatprep.subr.mxu0 0.0
  %2179 = vmatpush1.msra.mxu0 0.0
  %2180 = vmatprep.subr.mxu0 0.0
  %2181 = vmatpush1.msra.mxu0 0.0
  %2182 = vmatprep.subr.mxu0 0.0
  %2183 = vmatpush1.msra.mxu0 0.0
  %2184 = vmatprep.subr.mxu0 0.0
  %2185 = vmatpush1.msra.mxu0 0.0
  %2186 = vmatprep.subr.mxu0 0.0
  %2187 = vmatpush1.msra.mxu0 0.0
  %2188 = vmatprep.subr.mxu0 0.0
  %2189 = vmatpush1.msra.mxu0 0.0
  %2190 = vmatprep.subr.mxu0 0.0
  %2191 = vmatpush1.msra.mxu0 0.0
  %2192 = vmatprep.subr.mxu0 0.0
  %2193 = vmatpush1.msra.mxu0 0.0
  %2194 = vmatprep.subr.mxu0 0.0
  %2195 = vmatpush1.msra.mxu0 0.0
  %2196 = vmatprep.subr.mxu0 0.0
  %2197 = vmatpush1.msra.mxu0 0.0
  %2198 = vmatprep.subr.mxu0 0.0
  %2199 = vmatpush1.msra.mxu0 0.0
  %2200 = vmatprep.subr.mxu0 0.0
  %2201 = vmatpush1.msra.mxu0 0.0
  %2202 = vmatprep.subr.mxu0 0.0
  %2203 = vmatpush1.msra.mxu0 0.0
  %2204 = vmatprep.subr.mxu0 0.0
  %2205 = vmatpush1.msra.mxu0 0.0
  %2206 = vmatprep.subr.mxu0 0.0
  %2207 = vmatpush1.msra.mxu0 0.0
  %2208 = vmatprep.subr.mxu0 0.0
  %2209 = vmatpush1.msra.mxu0 0.0
  %2210 = vmatprep.subr.mxu0 0.0
  %2211 = vmatpush1.msra.mxu0 0.0
  %2212 = vmatprep.subr.mxu0 0.0
  %2213 = vmatpush1.msra.mxu0 0.0
  %2214 = vmatprep.subr.mxu0 0.0
  %2215 = vmatpush1.msra.mxu0 0.0
  %2216 = vmatprep.subr.mxu0 0.0
  %2217 = vmatpush1.msra.mxu0 0.0
  %2218 = vmatprep.subr.mxu0 0.0
  %2219 = vmatpush1.msra.mxu0 0.0
  %2220 = vmatprep.subr.mxu0 0.0
  %2221 = vmatpush1.msra.mxu0 0.0
  %2222 = vmatprep.subr.mxu0 0.0
  %2223 = vmatpush1.msra.mxu0 0.0
  %2224 = vmatprep.subr.mxu0 0.0
  %2225 = vmatpush1.msra.mxu0 0.0
  %2226 = vmatprep.subr.mxu0 0.0
  %2227 = vmatpush1.msra.mxu0 0.0
  %2228 = vmatprep.subr.mxu0 0.0
  %2229 = vmatpush1.msra.mxu0 0.0
  %2230 = vmatprep.subr.mxu0 0.0
  %2231 = vmatpush1.msra.mxu0 0.0
  %2232 = vmatprep.mubr.f32.mxu0 0.0
  %2233 = vmatmul.mubr.f32.gmra.mrb[0].mxu0 %v1530
  %v2234 = vpop.f32.mrb[0].mxu0
  %v2235 = vadd.f32 %v2166, %v2234
  %v2236 = vpop.f32.mrb[0].mxu0
  %2237 = vmatprep.mubr.f32.mxu0 0.0
  %2238 = vmatmul.mubr.f32.gmra.mrb[0].mxu0 %v1533
  %v2239 = vpop.f32.mrb[0].mxu0
  %v2240 = vadd.f32 %v2166, %v2239
  %v2241 = vpop.f32.mrb[0].mxu0
  %2242 = vdwg.mxu0
  %v2244 = vsel %vm396, %v2059, 0
  %v2247 = vsel %vm396, %v2064, 0
  %v2250 = vsel %vm396, %v2147, 0
  %v2253 = vsel %vm396, %v2152, 0
  %2255 = vmatprep.subr.mxu0 0.0
  %2256 = vmatpush1.xpose.msra.mxu0 %v2250
  %2257 = vmatprep.subr.mxu0 0.0
  %2258 = vmatpush1.xpose.msra.mxu0 %v2253
  %2259 = vmatprep.subr.mxu0 0.0
  %2260 = vmatpush1.xpose.msra.mxu0 0.0
  %2261 = vmatprep.subr.mxu0 0.0
  %2262 = vmatpush1.xpose.msra.mxu0 0.0
  %2263 = vmatprep.subr.mxu0 0.0
  %2264 = vmatpush1.xpose.msra.mxu0 0.0
  %2265 = vmatprep.subr.mxu0 0.0
  %2266 = vmatpush1.xpose.msra.mxu0 0.0
  %2267 = vmatprep.subr.mxu0 0.0
  %2268 = vmatpush1.xpose.msra.mxu0 0.0
  %2269 = vmatprep.subr.mxu0 0.0
  %2270 = vmatpush1.xpose.msra.mxu0 0.0
  %2271 = vmatprep.subr.mxu0 0.0
  %2272 = vmatpush1.xpose.msra.mxu0 0.0
  %2273 = vmatprep.subr.mxu0 0.0
  %2274 = vmatpush1.xpose.msra.mxu0 0.0
  %2275 = vmatprep.subr.mxu0 0.0
  %2276 = vmatpush1.xpose.msra.mxu0 0.0
  %2277 = vmatprep.subr.mxu0 0.0
  %2278 = vmatpush1.xpose.msra.mxu0 0.0
  %2279 = vmatprep.subr.mxu0 0.0
  %2280 = vmatpush1.xpose.msra.mxu0 0.0
  %2281 = vmatprep.subr.mxu0 0.0
  %2282 = vmatpush1.xpose.msra.mxu0 0.0
  %2283 = vmatprep.subr.mxu0 0.0
  %2284 = vmatpush1.xpose.msra.mxu0 0.0
  %2285 = vmatprep.subr.mxu0 0.0
  %2286 = vmatpush1.xpose.msra.mxu0 0.0
  %2287 = vmatprep.subr.mxu0 0.0
  %2288 = vmatpush1.xpose.msra.mxu0 0.0
  %2289 = vmatprep.subr.mxu0 0.0
  %2290 = vmatpush1.xpose.msra.mxu0 0.0
  %2291 = vmatprep.subr.mxu0 0.0
  %2292 = vmatpush1.xpose.msra.mxu0 0.0
  %2293 = vmatprep.subr.mxu0 0.0
  %2294 = vmatpush1.xpose.msra.mxu0 0.0
  %2295 = vmatprep.subr.mxu0 0.0
  %2296 = vmatpush1.xpose.msra.mxu0 0.0
  %2297 = vmatprep.subr.mxu0 0.0
  %2298 = vmatpush1.xpose.msra.mxu0 0.0
  %2299 = vmatprep.subr.mxu0 0.0
  %2300 = vmatpush1.xpose.msra.mxu0 0.0
  %2301 = vmatprep.subr.mxu0 0.0
  %2302 = vmatpush1.xpose.msra.mxu0 0.0
  %2303 = vmatprep.subr.mxu0 0.0
  %2304 = vmatpush1.xpose.msra.mxu0 0.0
  %2305 = vmatprep.subr.mxu0 0.0
  %2306 = vmatpush1.xpose.msra.mxu0 0.0
  %2307 = vmatprep.subr.mxu0 0.0
  %2308 = vmatpush1.xpose.msra.mxu0 0.0
  %2309 = vmatprep.subr.mxu0 0.0
  %2310 = vmatpush1.xpose.msra.mxu0 0.0
  %2311 = vmatprep.subr.mxu0 0.0
  %2312 = vmatpush1.xpose.msra.mxu0 0.0
  %2313 = vmatprep.subr.mxu0 0.0
  %2314 = vmatpush1.xpose.msra.mxu0 0.0
  %2315 = vmatprep.subr.mxu0 0.0
  %2316 = vmatpush1.xpose.msra.mxu0 0.0
  %2317 = vmatprep.subr.mxu0 0.0
  %2318 = vmatpush1.xpose.msra.mxu0 0.0
  %2319 = vmatprep.mubr.f32.mxu0 0.0
  %2320 = vmatmul.mubr.f32.gmra.mrb[0].mxu0 %v2244
  %v2321 = vpop.f32.mrb[0].mxu0
  %v2322 = vadd.f32 %v82, %v2321
  %v2323 = vpop.f32.mrb[0].mxu0
  %2324 = vmatprep.mubr.f32.mxu0 0.0
  %2325 = vmatmul.mubr.f32.gmra.mrb[0].mxu0 %v2247
  %v2326 = vpop.f32.mrb[0].mxu0
  %v2327 = vadd.f32 %v83, %v2326
  %v2328 = vpop.f32.mrb[0].mxu0
  %2329 = vdwg.mxu0
  %v2330 = vsel %vm396, %v2322, -inf
  %2331 = vmax.xlane.f32.xlu0 %v2330
  %v2332 = vpop.xlane.xlu0 %2331
  %v2333 = vsel %vm396, %v2327, -inf
  %2334 = vmax.xlane.f32.xlu0 %v2333
  %v2335 = vpop.xlane.xlu0 %2334
  %v2336 = vsub.f32 %v2322, %v2332
  %v2337 = vsub.f32 %v2327, %v2335
  %v2338 = vmul.f32 %v2336, 1.442695
  %v2339 = vpow.pop %v2338
  %v2340 = vmul.f32 %v2337, 1.442695
  %v2341 = vpow.pop %v2340
  %v2342 = vsel %vm396, %v2339, 0.0
  %2343 = vadd.xlane.f32.xlu0 %v2342
  %v2344 = vpop.xlane.xlu0 %2343
  %v2345 = vsel %vm396, %v2341, 0.0
  %2346 = vadd.xlane.f32.xlu0 %v2345
  %v2347 = vpop.xlane.xlu0 %2346
  %v2348 = vrcp.pop %v2344
  %v2349 = vrcp.pop %v2347
  %v2350 = vmul.f32 %v2339, %v2348
  %v2351 = vmul.f32 %v2341, %v2349
  %v2353 = vsel %vm396, %v2350, 0
  %v2356 = vsel %vm396, %v2351, 0
  %2358 = vmatprep.subr.mxu0 0.0
  %2359 = vmatpush1.msra.mxu0 %v2235
  %2360 = vmatprep.subr.mxu0 0.0
  %2361 = vmatpush1.msra.mxu0 %v2240
  %2362 = vmatprep.subr.mxu0 0.0
  %2363 = vmatpush1.msra.mxu0 0.0
  %2364 = vmatprep.subr.mxu0 0.0
  %2365 = vmatpush1.msra.mxu0 0.0
  %2366 = vmatprep.subr.mxu0 0.0
  %2367 = vmatpush1.msra.mxu0 0.0
  %2368 = vmatprep.subr.mxu0 0.0
  %2369 = vmatpush1.msra.mxu0 0.0
  %2370 = vmatprep.subr.mxu0 0.0
  %2371 = vmatpush1.msra.mxu0 0.0
  %2372 = vmatprep.subr.mxu0 0.0
  %2373 = vmatpush1.msra.mxu0 0.0
  %2374 = vmatprep.subr.mxu0 0.0
  %2375 = vmatpush1.msra.mxu0 0.0
  %2376 = vmatprep.subr.mxu0 0.0
  %2377 = vmatpush1.msra.mxu0 0.0
  %2378 = vmatprep.subr.mxu0 0.0
  %2379 = vmatpush1.msra.mxu0 0.0
  %2380 = vmatprep.subr.mxu0 0.0
  %2381 = vmatpush1.msra.mxu0 0.0
  %2382 = vmatprep.subr.mxu0 0.0
  %2383 = vmatpush1.msra.mxu0 0.0
  %2384 = vmatprep.subr.mxu0 0.0
  %2385 = vmatpush1.msra.mxu0 0.0
  %2386 = vmatprep.subr.mxu0 0.0
  %2387 = vmatpush1.msra.mxu0 0.0
  %2388 = vmatprep.subr.mxu0 0.0
  %2389 = vmatpush1.msra.mxu0 0.0
  %2390 = vmatprep.subr.mxu0 0.0
  %2391 = vmatpush1.msra.mxu0 0.0
  %2392 = vmatprep.subr.mxu0 0.0
  %2393 = vmatpush1.msra.mxu0 0.0
  %2394 = vmatprep.subr.mxu0 0.0
  %2395 = vmatpush1.msra.mxu0 0.0
  %2396 = vmatprep.subr.mxu0 0.0
  %2397 = vmatpush1.msra.mxu0 0.0
  %2398 = vmatprep.subr.mxu0 0.0
  %2399 = vmatpush1.msra.mxu0 0.0
  %2400 = vmatprep.subr.mxu0 0.0
  %2401 = vmatpush1.msra.mxu0 0.0
  %2402 = vmatprep.subr.mxu0 0.0
  %2403 = vmatpush1.msra.mxu0 0.0
  %2404 = vmatprep.subr.mxu0 0.0
  %2405 = vmatpush1.msra.mxu0 0.0
  %2406 = vmatprep.subr.mxu0 0.0
  %2407 = vmatpush1.msra.mxu0 0.0
  %2408 = vmatprep.subr.mxu0 0.0
  %2409 = vmatpush1.msra.mxu0 0.0
  %2410 = vmatprep.subr.mxu0 0.0
  %2411 = vmatpush1.msra.mxu0 0.0
  %2412 = vmatprep.subr.mxu0 0.0
  %2413 = vmatpush1.msra.mxu0 0.0
  %2414 = vmatprep.subr.mxu0 0.0
  %2415 = vmatpush1.msra.mxu0 0.0
  %2416 = vmatprep.subr.mxu0 0.0
  %2417 = vmatpush1.msra.mxu0 0.0
  %2418 = vmatprep.subr.mxu0 0.0
  %2419 = vmatpush1.msra.mxu0 0.0
  %2420 = vmatprep.subr.mxu0 0.0
  %2421 = vmatpush1.msra.mxu0 0.0
  %2422 = vmatprep.mubr.f32.mxu0 0.0
  %2423 = vmatmul.mubr.f32.gmra.mrb[0].mxu0 %v2353
  %v2424 = vpop.f32.mrb[0].mxu0
  %v2425 = vadd.f32 0.0, %v2424
  %v2426 = vpop.f32.mrb[0].mxu0
  %2427 = vmatprep.mubr.f32.mxu0 0.0
  %2428 = vmatmul.mubr.f32.gmra.mrb[0].mxu0 %v2356
  %v2429 = vpop.f32.mrb[0].mxu0
  %v2430 = vadd.f32 0.0, %v2429
  %v2431 = vpop.f32.mrb[0].mxu0
  %2432 = vdwg.mxu0
  %s2433 = scalar_lea.vmem %s11, 48
  %v2434 = vld [vmem:[%s2433] sm:$0xff]
  %v2435 = vld [vmem:[%s2433 + $0x8] sm:$0xff]
  %v2437 = vsel %vm396, %v2425, 0
  %v2440 = vsel %vm396, %v2430, 0
  %2442 = vmatprep.subr.mxu0 0.0
  %2443 = vmatpush1.msra.mxu0 %v2434
  %2444 = vmatprep.subr.mxu0 0.0
  %2445 = vmatpush1.msra.mxu0 %v2435
  %2446 = vmatprep.subr.mxu0 0.0
  %2447 = vmatpush1.msra.mxu0 0.0
  %2448 = vmatprep.subr.mxu0 0.0
  %2449 = vmatpush1.msra.mxu0 0.0
  %2450 = vmatprep.subr.mxu0 0.0
  %2451 = vmatpush1.msra.mxu0 0.0
  %2452 = vmatprep.subr.mxu0 0.0
  %2453 = vmatpush1.msra.mxu0 0.0
  %2454 = vmatprep.subr.mxu0 0.0
  %2455 = vmatpush1.msra.mxu0 0.0
  %2456 = vmatprep.subr.mxu0 0.0
  %2457 = vmatpush1.msra.mxu0 0.0
  %2458 = vmatprep.subr.mxu0 0.0
  %2459 = vmatpush1.msra.mxu0 0.0
  %2460 = vmatprep.subr.mxu0 0.0
  %2461 = vmatpush1.msra.mxu0 0.0
  %2462 = vmatprep.subr.mxu0 0.0
  %2463 = vmatpush1.msra.mxu0 0.0
  %2464 = vmatprep.subr.mxu0 0.0
  %2465 = vmatpush1.msra.mxu0 0.0
  %2466 = vmatprep.subr.mxu0 0.0
  %2467 = vmatpush1.msra.mxu0 0.0
  %2468 = vmatprep.subr.mxu0 0.0
  %2469 = vmatpush1.msra.mxu0 0.0
  %2470 = vmatprep.subr.mxu0 0.0
  %2471 = vmatpush1.msra.mxu0 0.0
  %2472 = vmatprep.subr.mxu0 0.0
  %2473 = vmatpush1.msra.mxu0 0.0
  %2474 = vmatprep.subr.mxu0 0.0
  %2475 = vmatpush1.msra.mxu0 0.0
  %2476 = vmatprep.subr.mxu0 0.0
  %2477 = vmatpush1.msra.mxu0 0.0
  %2478 = vmatprep.subr.mxu0 0.0
  %2479 = vmatpush1.msra.mxu0 0.0
  %2480 = vmatprep.subr.mxu0 0.0
  %2481 = vmatpush1.msra.mxu0 0.0
  %2482 = vmatprep.subr.mxu0 0.0
  %2483 = vmatpush1.msra.mxu0 0.0
  %2484 = vmatprep.subr.mxu0 0.0
  %2485 = vmatpush1.msra.mxu0 0.0
  %2486 = vmatprep.subr.mxu0 0.0
  %2487 = vmatpush1.msra.mxu0 0.0
  %2488 = vmatprep.subr.mxu0 0.0
  %2489 = vmatpush1.msra.mxu0 0.0
  %2490 = vmatprep.subr.mxu0 0.0
  %2491 = vmatpush1.msra.mxu0 0.0
  %2492 = vmatprep.subr.mxu0 0.0
  %2493 = vmatpush1.msra.mxu0 0.0
  %2494 = vmatprep.subr.mxu0 0.0
  %2495 = vmatpush1.msra.mxu0 0.0
  %2496 = vmatprep.subr.mxu0 0.0
  %2497 = vmatpush1.msra.mxu0 0.0
  %2498 = vmatprep.subr.mxu0 0.0
  %2499 = vmatpush1.msra.mxu0 0.0
  %2500 = vmatprep.subr.mxu0 0.0
  %2501 = vmatpush1.msra.mxu0 0.0
  %2502 = vmatprep.subr.mxu0 0.0
  %2503 = vmatpush1.msra.mxu0 0.0
  %2504 = vmatprep.subr.mxu0 0.0
  %2505 = vmatpush1.msra.mxu0 0.0
  %2506 = vmatprep.mubr.f32.mxu0 0.0
  %2507 = vmatmul.mubr.f32.gmra.mrb[0].mxu0 %v2437
  %v2508 = vpop.f32.mrb[0].mxu0
  %v2509 = vadd.f32 0.0, %v2508
  %v2510 = vpop.f32.mrb[0].mxu0
  %2511 = vmatprep.mubr.f32.mxu0 0.0
  %2512 = vmatmul.mubr.f32.gmra.mrb[0].mxu0 %v2440
  %v2513 = vpop.f32.mrb[0].mxu0
  %v2514 = vadd.f32 0.0, %v2513
  %v2515 = vpop.f32.mrb[0].mxu0
  %2516 = vdwg.mxu0
  %v2518 = vsel %vm396, %v1968, 0
  %v2521 = vsel %vm396, %v1973, 0
  %2523 = vmatprep.subr.mxu0 0.0
  %2524 = vmatpush1.msra.mxu0 %v1977
  %2525 = vmatprep.subr.mxu0 0.0
  %2526 = vmatpush1.msra.mxu0 %v1978
  %2527 = vmatprep.subr.mxu0 0.0
  %2528 = vmatpush1.msra.mxu0 0.0
  %2529 = vmatprep.subr.mxu0 0.0
  %2530 = vmatpush1.msra.mxu0 0.0
  %2531 = vmatprep.subr.mxu0 0.0
  %2532 = vmatpush1.msra.mxu0 0.0
  %2533 = vmatprep.subr.mxu0 0.0
  %2534 = vmatpush1.msra.mxu0 0.0
  %2535 = vmatprep.subr.mxu0 0.0
  %2536 = vmatpush1.msra.mxu0 0.0
  %2537 = vmatprep.subr.mxu0 0.0
  %2538 = vmatpush1.msra.mxu0 0.0
  %2539 = vmatprep.subr.mxu0 0.0
  %2540 = vmatpush1.msra.mxu0 0.0
  %2541 = vmatprep.subr.mxu0 0.0
  %2542 = vmatpush1.msra.mxu0 0.0
  %2543 = vmatprep.subr.mxu0 0.0
  %2544 = vmatpush1.msra.mxu0 0.0
  %2545 = vmatprep.subr.mxu0 0.0
  %2546 = vmatpush1.msra.mxu0 0.0
  %2547 = vmatprep.subr.mxu0 0.0
  %2548 = vmatpush1.msra.mxu0 0.0
  %2549 = vmatprep.subr.mxu0 0.0
  %2550 = vmatpush1.msra.mxu0 0.0
  %2551 = vmatprep.subr.mxu0 0.0
  %2552 = vmatpush1.msra.mxu0 0.0
  %2553 = vmatprep.subr.mxu0 0.0
  %2554 = vmatpush1.msra.mxu0 0.0
  %2555 = vmatprep.subr.mxu0 0.0
  %2556 = vmatpush1.msra.mxu0 0.0
  %2557 = vmatprep.subr.mxu0 0.0
  %2558 = vmatpush1.msra.mxu0 0.0
  %2559 = vmatprep.subr.mxu0 0.0
  %2560 = vmatpush1.msra.mxu0 0.0
  %2561 = vmatprep.subr.mxu0 0.0
  %2562 = vmatpush1.msra.mxu0 0.0
  %2563 = vmatprep.subr.mxu0 0.0
  %2564 = vmatpush1.msra.mxu0 0.0
  %2565 = vmatprep.subr.mxu0 0.0
  %2566 = vmatpush1.msra.mxu0 0.0
  %2567 = vmatprep.subr.mxu0 0.0
  %2568 = vmatpush1.msra.mxu0 0.0
  %2569 = vmatprep.subr.mxu0 0.0
  %2570 = vmatpush1.msra.mxu0 0.0
  %2571 = vmatprep.subr.mxu0 0.0
  %2572 = vmatpush1.msra.mxu0 0.0
  %2573 = vmatprep.subr.mxu0 0.0
  %2574 = vmatpush1.msra.mxu0 0.0
  %2575 = vmatprep.subr.mxu0 0.0
  %2576 = vmatpush1.msra.mxu0 0.0
  %2577 = vmatprep.subr.mxu0 0.0
  %2578 = vmatpush1.msra.mxu0 0.0
  %2579 = vmatprep.subr.mxu0 0.0
  %2580 = vmatpush1.msra.mxu0 0.0
  %2581 = vmatprep.subr.mxu0 0.0
  %2582 = vmatpush1.msra.mxu0 0.0
  %2583 = vmatprep.subr.mxu0 0.0
  %2584 = vmatpush1.msra.mxu0 0.0
  %2585 = vmatprep.subr.mxu0 0.0
  %2586 = vmatpush1.msra.mxu0 0.0
  %2587 = vmatprep.mubr.f32.mxu0 0.0
  %2588 = vmatmul.mubr.f32.gmra.mrb[0].mxu0 %v2518
  %v2589 = vpop.f32.mrb[0].mxu0
  %v2590 = vadd.f32 %v2509, %v2589
  %v2591 = vpop.f32.mrb[0].mxu0
  %2592 = vmatprep.mubr.f32.mxu0 0.0
  %2593 = vmatmul.mubr.f32.gmra.mrb[0].mxu0 %v2521
  %v2594 = vpop.f32.mrb[0].mxu0
  %v2595 = vadd.f32 %v2514, %v2594
  %v2596 = vpop.f32.mrb[0].mxu0
  %2597 = vdwg.mxu0
  %v2598 = vadd.f32 %v1514, %v2590
  %v2599 = vadd.f32 %v1515, %v2595
  %s2600 = scalar_lea.vmem %s12, 1
  %v2601 = vld [vmem:[%s2600] sm:$0x1]
  %v2603 = vlaneseq
  %v2604 = vshrl.u32 %v2603, 7
  %v2605 = vsub.s32 0, %v2604
  %v2606 = vrot.slane %v2601, %v2605
  %v2608 = vadd.f32 %v2598, %v2606
  %v2609 = vadd.f32 %v2599, %v2606
  %s2610 = scalar_lea.vmem %s13, 1
  %v2611 = vld [vmem:[%s2610] sm:$0x1]
  %s2612 = scalar_lea.vmem %s14, 1
  %v2613 = vld [vmem:[%s2612] sm:$0x1]
  %v2614 = vsel %vm88, %v2608, 0.0
  %2615 = vadd.xlane.f32.xlu0 %v2614
  %v2616 = vpop.xlane.xlu0 %2615
  %v2617 = vsel %vm88, %v2609, 0.0
  %2618 = vadd.xlane.f32.xlu0 %v2617
  %v2619 = vpop.xlane.xlu0 %2618
  %v2620 = vmul.f32 %v2616, %v95
  %v2621 = vmul.f32 %v2619, %v95
  %v2622 = vsub.f32 %v2608, %v2620
  %v2623 = vsub.f32 %v2609, %v2621
  %v2624 = vmul.f32 %v2622, %v2622
  %v2625 = vmul.f32 %v2623, %v2623
  %v2626 = vsel %vm88, %v2624, 0.0
  %2627 = vadd.xlane.f32.xlu0 %v2626
  %v2628 = vpop.xlane.xlu0 %2627
  %v2629 = vsel %vm88, %v2625, 0.0
  %2630 = vadd.xlane.f32.xlu0 %v2629
  %v2631 = vpop.xlane.xlu0 %2630
  %v2632 = vmul.f32 %v2628, %v95
  %v2633 = vmul.f32 %v2631, %v95
  %v2634 = vadd.f32 %v2632, 1e-12
  %v2635 = vadd.f32 %v2633, 1e-12
  %v2636 = vrsqrt.pop %v2634
  %v2637 = vrsqrt.pop %v2635
  %v2638 = vmul.f32 %v2622, %v2636
  %v2639 = vmul.f32 %v2623, %v2637
  %v2641 = vlaneseq
  %v2642 = vshrl.u32 %v2641, 7
  %v2643 = vsub.s32 0, %v2642
  %v2644 = vrot.slane %v2611, %v2643
  %v2646 = vmul.f32 %v2638, %v2644
  %v2647 = vmul.f32 %v2639, %v2644
  %v2649 = vlaneseq
  %v2650 = vshrl.u32 %v2649, 7
  %v2651 = vsub.s32 0, %v2650
  %v2652 = vrot.slane %v2613, %v2651
  %v2654 = vadd.f32 %v2646, %v2652
  %v2655 = vadd.f32 %v2647, %v2652
  %s2656 = scalar_lea.vmem %s15, 32
  %v2657 = vld [vmem:[%s2656] sm:$0xff]
  %v2658 = vld [vmem:[%s2656 + $0x8] sm:$0xff]
  %v2659 = vld [vmem:[%s2656 + $0x10] sm:$0xff]
  %v2660 = vld [vmem:[%s2656 + $0x18] sm:$0xff]
  %s2661 = scalar_lea.vmem %s16, 1
  %v2662 = vld [vmem:[%s2661] sm:$0x1]
  %v2664 = vlaneseq
  %v2665 = vshrl.u32 %v2664, 7
  %v2666 = vsub.s32 0, %v2665
  %v2667 = vrot.slane %v2662, %v2666
  %v2670 = vsel %vm88, %v2654, 0
  %v2673 = vsel %vm88, %v2655, 0
  %2675 = vmatprep.subr.mxu0 0.0
  %2676 = vmatpush1.msra.mxu0 %v2657
  %2677 = vmatprep.subr.mxu0 0.0
  %2678 = vmatpush1.msra.mxu0 %v2658
  %2679 = vmatprep.subr.mxu0 0.0
  %2680 = vmatpush1.msra.mxu0 %v2659
  %2681 = vmatprep.subr.mxu0 0.0
  %2682 = vmatpush1.msra.mxu0 %v2660
  %2683 = vmatprep.subr.mxu0 0.0
  %2684 = vmatpush1.msra.mxu0 0.0
  %2685 = vmatprep.subr.mxu0 0.0
  %2686 = vmatpush1.msra.mxu0 0.0
  %2687 = vmatprep.subr.mxu0 0.0
  %2688 = vmatpush1.msra.mxu0 0.0
  %2689 = vmatprep.subr.mxu0 0.0
  %2690 = vmatpush1.msra.mxu0 0.0
  %2691 = vmatprep.subr.mxu0 0.0
  %2692 = vmatpush1.msra.mxu0 0.0
  %2693 = vmatprep.subr.mxu0 0.0
  %2694 = vmatpush1.msra.mxu0 0.0
  %2695 = vmatprep.subr.mxu0 0.0
  %2696 = vmatpush1.msra.mxu0 0.0
  %2697 = vmatprep.subr.mxu0 0.0
  %2698 = vmatpush1.msra.mxu0 0.0
  %2699 = vmatprep.subr.mxu0 0.0
  %2700 = vmatpush1.msra.mxu0 0.0
  %2701 = vmatprep.subr.mxu0 0.0
  %2702 = vmatpush1.msra.mxu0 0.0
  %2703 = vmatprep.subr.mxu0 0.0
  %2704 = vmatpush1.msra.mxu0 0.0
  %2705 = vmatprep.subr.mxu0 0.0
  %2706 = vmatpush1.msra.mxu0 0.0
  %2707 = vmatprep.subr.mxu0 0.0
  %2708 = vmatpush1.msra.mxu0 0.0
  %2709 = vmatprep.subr.mxu0 0.0
  %2710 = vmatpush1.msra.mxu0 0.0
  %2711 = vmatprep.subr.mxu0 0.0
  %2712 = vmatpush1.msra.mxu0 0.0
  %2713 = vmatprep.subr.mxu0 0.0
  %2714 = vmatpush1.msra.mxu0 0.0
  %2715 = vmatprep.subr.mxu0 0.0
  %2716 = vmatpush1.msra.mxu0 0.0
  %2717 = vmatprep.subr.mxu0 0.0
  %2718 = vmatpush1.msra.mxu0 0.0
  %2719 = vmatprep.subr.mxu0 0.0
  %2720 = vmatpush1.msra.mxu0 0.0
  %2721 = vmatprep.subr.mxu0 0.0
  %2722 = vmatpush1.msra.mxu0 0.0
  %2723 = vmatprep.subr.mxu0 0.0
  %2724 = vmatpush1.msra.mxu0 0.0
  %2725 = vmatprep.subr.mxu0 0.0
  %2726 = vmatpush1.msra.mxu0 0.0
  %2727 = vmatprep.subr.mxu0 0.0
  %2728 = vmatpush1.msra.mxu0 0.0
  %2729 = vmatprep.subr.mxu0 0.0
  %2730 = vmatpush1.msra.mxu0 0.0
  %2731 = vmatprep.subr.mxu0 0.0
  %2732 = vmatpush1.msra.mxu0 0.0
  %2733 = vmatprep.subr.mxu0 0.0
  %2734 = vmatpush1.msra.mxu0 0.0
  %2735 = vmatprep.subr.mxu0 0.0
  %2736 = vmatpush1.msra.mxu0 0.0
  %2737 = vmatprep.subr.mxu0 0.0
  %2738 = vmatpush1.msra.mxu0 0.0
  %2739 = vmatprep.mubr.f32.mxu0 0.0
  %2740 = vmatmul.mubr.f32.gmra.mrb[0].mxu0 %v2670
  %v2741 = vpop.f32.mrb[0].mxu0
  %v2742 = vadd.f32 %v2667, %v2741
  %v2743 = vpop.f32.mrb[0].mxu0
  %2744 = vmatprep.mubr.f32.mxu0 0.0
  %2745 = vmatmul.mubr.f32.gmra.mrb[0].mxu0 %v2673
  %v2746 = vpop.f32.mrb[0].mxu0
  %v2747 = vadd.f32 %v2667, %v2746
  %v2748 = vpop.f32.mrb[0].mxu0
  %2749 = vdwg.mxu0
  %v2750 = vmul.f32 %v2742, %v2742
  %v2751 = vmul.f32 %v2747, %v2747
  %v2752 = vmul.f32 %v2742, %v2750
  %v2753 = vmul.f32 %v2747, %v2751
  %v2754 = vmul.f32 %v2752, 0.044715
  %v2755 = vmul.f32 %v2753, 0.044715
  %v2756 = vadd.f32 %v2742, %v2754
  %v2757 = vadd.f32 %v2747, %v2755
  %v2758 = vmul.f32 %v2756, 0.7978846
  %v2759 = vmul.f32 %v2757, 0.7978846
  %v2760 = vtanh.pop %v2758
  %v2761 = vtanh.pop %v2759
  %v2762 = vadd.f32 %v2760, 1.0
  %v2763 = vadd.f32 %v2761, 1.0
  %v2764 = vmul.f32 %v2762, 0.5
  %v2765 = vmul.f32 %v2763, 0.5
  %v2766 = vmul.f32 %v2742, %v2764
  %v2767 = vmul.f32 %v2747, %v2765
  %s2768 = scalar_lea.vmem %s17, 64
  %v2769 = vld [vmem:[%s2768] sm:$0xff]
  %v2770 = vld [vmem:[%s2768 + $0x8] sm:$0xff]
  %v2771 = vld [vmem:[%s2768 + $0x10] sm:$0xff]
  %v2772 = vld [vmem:[%s2768 + $0x18] sm:$0xff]
  %v2773 = vld [vmem:[%s2768 + $0x20] sm:$0xff]
  %v2774 = vld [vmem:[%s2768 + $0x28] sm:$0xff]
  %v2775 = vld [vmem:[%s2768 + $0x30] sm:$0xff]
  %v2776 = vld [vmem:[%s2768 + $0x38] sm:$0xff]
  %s2777 = scalar_lea.vmem %s18, 1
  %v2778 = vld [vmem:[%s2777] sm:$0x1]
  %v2780 = vlaneseq
  %v2781 = vshrl.u32 %v2780, 7
  %v2782 = vsub.s32 0, %v2781
  %v2783 = vrot.slane %v2778, %v2782
  %v2786 = vsel %vm1388, %v2766, 0
  %v2789 = vsel %vm1388, %v2767, 0
  %2791 = vmatprep.subr.mxu0 0.0
  %2792 = vmatpush1.msra.mxu0 %v2769
  %2793 = vmatprep.subr.mxu0 0.0
  %2794 = vmatpush1.msra.mxu0 %v2770
  %2795 = vmatprep.subr.mxu0 0.0
  %2796 = vmatpush1.msra.mxu0 %v2771
  %2797 = vmatprep.subr.mxu0 0.0
  %2798 = vmatpush1.msra.mxu0 %v2772
  %2799 = vmatprep.subr.mxu0 0.0
  %2800 = vmatpush1.msra.mxu0 %v2773
  %2801 = vmatprep.subr.mxu0 0.0
  %2802 = vmatpush1.msra.mxu0 %v2774
  %2803 = vmatprep.subr.mxu0 0.0
  %2804 = vmatpush1.msra.mxu0 %v2775
  %2805 = vmatprep.subr.mxu0 0.0
  %2806 = vmatpush1.msra.mxu0 %v2776
  %2807 = vmatprep.subr.mxu0 0.0
  %2808 = vmatpush1.msra.mxu0 0.0
  %2809 = vmatprep.subr.mxu0 0.0
  %2810 = vmatpush1.msra.mxu0 0.0
  %2811 = vmatprep.subr.mxu0 0.0
  %2812 = vmatpush1.msra.mxu0 0.0
  %2813 = vmatprep.subr.mxu0 0.0
  %2814 = vmatpush1.msra.mxu0 0.0
  %2815 = vmatprep.subr.mxu0 0.0
  %2816 = vmatpush1.msra.mxu0 0.0
  %2817 = vmatprep.subr.mxu0 0.0
  %2818 = vmatpush1.msra.mxu0 0.0
  %2819 = vmatprep.subr.mxu0 0.0
  %2820 = vmatpush1.msra.mxu0 0.0
  %2821 = vmatprep.subr.mxu0 0.0
  %2822 = vmatpush1.msra.mxu0 0.0
  %2823 = vmatprep.subr.mxu0 0.0
  %2824 = vmatpush1.msra.mxu0 0.0
  %2825 = vmatprep.subr.mxu0 0.0
  %2826 = vmatpush1.msra.mxu0 0.0
  %2827 = vmatprep.subr.mxu0 0.0
  %2828 = vmatpush1.msra.mxu0 0.0
  %2829 = vmatprep.subr.mxu0 0.0
  %2830 = vmatpush1.msra.mxu0 0.0
  %2831 = vmatprep.subr.mxu0 0.0
  %2832 = vmatpush1.msra.mxu0 0.0
  %2833 = vmatprep.subr.mxu0 0.0
  %2834 = vmatpush1.msra.mxu0 0.0
  %2835 = vmatprep.subr.mxu0 0.0
  %2836 = vmatpush1.msra.mxu0 0.0
  %2837 = vmatprep.subr.mxu0 0.0
  %2838 = vmatpush1.msra.mxu0 0.0
  %2839 = vmatprep.subr.mxu0 0.0
  %2840 = vmatpush1.msra.mxu0 0.0
  %2841 = vmatprep.subr.mxu0 0.0
  %2842 = vmatpush1.msra.mxu0 0.0
  %2843 = vmatprep.subr.mxu0 0.0
  %2844 = vmatpush1.msra.mxu0 0.0
  %2845 = vmatprep.subr.mxu0 0.0
  %2846 = vmatpush1.msra.mxu0 0.0
  %2847 = vmatprep.subr.mxu0 0.0
  %2848 = vmatpush1.msra.mxu0 0.0
  %2849 = vmatprep.subr.mxu0 0.0
  %2850 = vmatpush1.msra.mxu0 0.0
  %2851 = vmatprep.subr.mxu0 0.0
  %2852 = vmatpush1.msra.mxu0 0.0
  %2853 = vmatprep.subr.mxu0 0.0
  %2854 = vmatpush1.msra.mxu0 0.0
  %2855 = vmatprep.mubr.f32.mxu0 0.0
  %2856 = vmatmul.mubr.f32.gmra.mrb[0].mxu0 %v2786
  %v2857 = vpop.f32.mrb[0].mxu0
  %v2858 = vadd.f32 %v2783, %v2857
  %v2859 = vpop.f32.mrb[0].mxu0
  %2860 = vmatprep.mubr.f32.mxu0 0.0
  %2861 = vmatmul.mubr.f32.gmra.mrb[0].mxu0 %v2789
  %v2862 = vpop.f32.mrb[0].mxu0
  %v2863 = vadd.f32 %v2783, %v2862
  %v2864 = vpop.f32.mrb[0].mxu0
  %2865 = vdwg.mxu0
  %v2866 = vadd.f32 %v2654, %v2858
  %v2867 = vadd.f32 %v2655, %v2863
  %s2868 = scalar_lea.vmem %s19, 1
  %v2869 = vld [vmem:[%s2868] sm:$0x1]
  %s2870 = scalar_lea.vmem %s20, 1
  %v2871 = vld [vmem:[%s2870] sm:$0x1]
  %v2872 = vsel %vm88, %v2866, 0.0
  %2873 = vadd.xlane.f32.xlu0 %v2872
  %v2874 = vpop.xlane.xlu0 %2873
  %v2875 = vsel %vm88, %v2867, 0.0
  %2876 = vadd.xlane.f32.xlu0 %v2875
  %v2877 = vpop.xlane.xlu0 %2876
  %v2878 = vmul.f32 %v2874, %v95
  %v2879 = vmul.f32 %v2877, %v95
  %v2880 = vsub.f32 %v2866, %v2878
  %v2881 = vsub.f32 %v2867, %v2879
  %v2882 = vmul.f32 %v2880, %v2880
  %v2883 = vmul.f32 %v2881, %v2881
  %v2884 = vsel %vm88, %v2882, 0.0
  %2885 = vadd.xlane.f32.xlu0 %v2884
  %v2886 = vpop.xlane.xlu0 %2885
  %v2887 = vsel %vm88, %v2883, 0.0
  %2888 = vadd.xlane.f32.xlu0 %v2887
  %v2889 = vpop.xlane.xlu0 %2888
  %v2890 = vmul.f32 %v2886, %v95
  %v2891 = vmul.f32 %v2889, %v95
  %v2892 = vadd.f32 %v2890, 1e-12
  %v2893 = vadd.f32 %v2891, 1e-12
  %v2894 = vrsqrt.pop %v2892
  %v2895 = vrsqrt.pop %v2893
  %v2896 = vmul.f32 %v2880, %v2894
  %v2897 = vmul.f32 %v2881, %v2895
  %v2899 = vlaneseq
  %v2900 = vshrl.u32 %v2899, 7
  %v2901 = vsub.s32 0, %v2900
  %v2902 = vrot.slane %v2869, %v2901
  %v2904 = vmul.f32 %v2896, %v2902
  %v2905 = vmul.f32 %v2897, %v2902
  %v2907 = vlaneseq
  %v2908 = vshrl.u32 %v2907, 7
  %v2909 = vsub.s32 0, %v2908
  %v2910 = vrot.slane %v2871, %v2909
  %v2912 = vadd.f32 %v2904, %v2910
  %v2913 = vadd.f32 %v2905, %v2910
  %v2914 = vld [vmem:[%s2] sm:$0x3]
  %v2916 = vsel %vm396, %v2914, 0
  %2918 = vmatprep.subr.mxu0 0.0
  %2919 = vmatpush1.msra.mxu0 %v2912
  %2920 = vmatprep.subr.mxu0 0.0
  %2921 = vmatpush1.msra.mxu0 %v2913
  %2922 = vmatprep.subr.mxu0 0.0
  %2923 = vmatpush1.msra.mxu0 0.0
  %2924 = vmatprep.subr.mxu0 0.0
  %2925 = vmatpush1.msra.mxu0 0.0
  %2926 = vmatprep.subr.mxu0 0.0
  %2927 = vmatpush1.msra.mxu0 0.0
  %2928 = vmatprep.subr.mxu0 0.0
  %2929 = vmatpush1.msra.mxu0 0.0
  %2930 = vmatprep.subr.mxu0 0.0
  %2931 = vmatpush1.msra.mxu0 0.0
  %2932 = vmatprep.subr.mxu0 0.0
  %2933 = vmatpush1.msra.mxu0 0.0
  %2934 = vmatprep.subr.mxu0 0.0
  %2935 = vmatpush1.msra.mxu0 0.0
  %2936 = vmatprep.subr.mxu0 0.0
  %2937 = vmatpush1.msra.mxu0 0.0
  %2938 = vmatprep.subr.mxu0 0.0
  %2939 = vmatpush1.msra.mxu0 0.0
  %2940 = vmatprep.subr.mxu0 0.0
  %2941 = vmatpush1.msra.mxu0 0.0
  %2942 = vmatprep.subr.mxu0 0.0
  %2943 = vmatpush1.msra.mxu0 0.0
  %2944 = vmatprep.subr.mxu0 0.0
  %2945 = vmatpush1.msra.mxu0 0.0
  %2946 = vmatprep.subr.mxu0 0.0
  %2947 = vmatpush1.msra.mxu0 0.0
  %2948 = vmatprep.subr.mxu0 0.0
  %2949 = vmatpush1.msra.mxu0 0.0
  %2950 = vmatprep.subr.mxu0 0.0
  %2951 = vmatpush1.msra.mxu0 0.0
  %2952 = vmatprep.subr.mxu0 0.0
  %2953 = vmatpush1.msra.mxu0 0.0
  %2954 = vmatprep.subr.mxu0 0.0
  %2955 = vmatpush1.msra.mxu0 0.0
  %2956 = vmatprep.subr.mxu0 0.0
  %2957 = vmatpush1.msra.mxu0 0.0
  %2958 = vmatprep.subr.mxu0 0.0
  %2959 = vmatpush1.msra.mxu0 0.0
  %2960 = vmatprep.subr.mxu0 0.0
  %2961 = vmatpush1.msra.mxu0 0.0
  %2962 = vmatprep.subr.mxu0 0.0
  %2963 = vmatpush1.msra.mxu0 0.0
  %2964 = vmatprep.subr.mxu0 0.0
  %2965 = vmatpush1.msra.mxu0 0.0
  %2966 = vmatprep.subr.mxu0 0.0
  %2967 = vmatpush1.msra.mxu0 0.0
  %2968 = vmatprep.subr.mxu0 0.0
  %2969 = vmatpush1.msra.mxu0 0.0
  %2970 = vmatprep.subr.mxu0 0.0
  %2971 = vmatpush1.msra.mxu0 0.0
  %2972 = vmatprep.subr.mxu0 0.0
  %2973 = vmatpush1.msra.mxu0 0.0
  %2974 = vmatprep.subr.mxu0 0.0
  %2975 = vmatpush1.msra.mxu0 0.0
  %2976 = vmatprep.subr.mxu0 0.0
  %2977 = vmatpush1.msra.mxu0 0.0
  %2978 = vmatprep.subr.mxu0 0.0
  %2979 = vmatpush1.msra.mxu0 0.0
  %2980 = vmatprep.subr.mxu0 0.0
  %2981 = vmatpush1.msra.mxu0 0.0
  %2982 = vmatprep.mubr.f32.mxu0 0.0
  %2983 = vmatmul.mubr.f32.gmra.mrb[0].mxu0 %v2916
  %v2984 = vpop.f32.mrb[0].mxu0
  %v2985 = vadd.f32 0.0, %v2984
  %v2986 = vpop.f32.mrb[0].mxu0
  %2987 = vdwg.mxu0
  %v2988 = vld [vmem:[%s21] sm:$0xff]
  %v2989 = vld [vmem:[%s21 + $0x8] sm:$0xff]
  %v2990 = vld [vmem:[%s21 + $0x10] sm:$0xff]
  %v2991 = vld [vmem:[%s21 + $0x18] sm:$0xff]
  %v2992 = vld [vmem:[%s22] sm:$0x1]
  %v2994 = vlaneseq
  %v2995 = vshrl.u32 %v2994, 7
  %v2996 = vsub.s32 0, %v2995
  %v2997 = vrot.slane %v2992, %v2996
  %v3000 = vsel %vm88, %v2985, 0
  %3002 = vmatprep.subr.mxu0 0.0
  %3003 = vmatpush1.msra.mxu0 %v2988
  %3004 = vmatprep.subr.mxu0 0.0
  %3005 = vmatpush1.msra.mxu0 %v2989
  %3006 = vmatprep.subr.mxu0 0.0
  %3007 = vmatpush1.msra.mxu0 %v2990
  %3008 = vmatprep.subr.mxu0 0.0
  %3009 = vmatpush1.msra.mxu0 %v2991
  %3010 = vmatprep.subr.mxu0 0.0
  %3011 = vmatpush1.msra.mxu0 0.0
  %3012 = vmatprep.subr.mxu0 0.0
  %3013 = vmatpush1.msra.mxu0 0.0
  %3014 = vmatprep.subr.mxu0 0.0
  %3015 = vmatpush1.msra.mxu0 0.0
  %3016 = vmatprep.subr.mxu0 0.0
  %3017 = vmatpush1.msra.mxu0 0.0
  %3018 = vmatprep.subr.mxu0 0.0
  %3019 = vmatpush1.msra.mxu0 0.0
  %3020 = vmatprep.subr.mxu0 0.0
  %3021 = vmatpush1.msra.mxu0 0.0
  %3022 = vmatprep.subr.mxu0 0.0
  %3023 = vmatpush1.msra.mxu0 0.0
  %3024 = vmatprep.subr.mxu0 0.0
  %3025 = vmatpush1.msra.mxu0 0.0
  %3026 = vmatprep.subr.mxu0 0.0
  %3027 = vmatpush1.msra.mxu0 0.0
  %3028 = vmatprep.subr.mxu0 0.0
  %3029 = vmatpush1.msra.mxu0 0.0
  %3030 = vmatprep.subr.mxu0 0.0
  %3031 = vmatpush1.msra.mxu0 0.0
  %3032 = vmatprep.subr.mxu0 0.0
  %3033 = vmatpush1.msra.mxu0 0.0
  %3034 = vmatprep.subr.mxu0 0.0
  %3035 = vmatpush1.msra.mxu0 0.0
  %3036 = vmatprep.subr.mxu0 0.0
  %3037 = vmatpush1.msra.mxu0 0.0
  %3038 = vmatprep.subr.mxu0 0.0
  %3039 = vmatpush1.msra.mxu0 0.0
  %3040 = vmatprep.subr.mxu0 0.0
  %3041 = vmatpush1.msra.mxu0 0.0
  %3042 = vmatprep.subr.mxu0 0.0
  %3043 = vmatpush1.msra.mxu0 0.0
  %3044 = vmatprep.subr.mxu0 0.0
  %3045 = vmatpush1.msra.mxu0 0.0
  %3046 = vmatprep.subr.mxu0 0.0
  %3047 = vmatpush1.msra.mxu0 0.0
  %3048 = vmatprep.subr.mxu0 0.0
  %3049 = vmatpush1.msra.mxu0 0.0
  %3050 = vmatprep.subr.mxu0 0.0
  %3051 = vmatpush1.msra.mxu0 0.0
  %3052 = vmatprep.subr.mxu0 0.0
  %3053 = vmatpush1.msra.mxu0 0.0
  %3054 = vmatprep.subr.mxu0 0.0
  %3055 = vmatpush1.msra.mxu0 0.0
  %3056 = vmatprep.subr.mxu0 0.0
  %3057 = vmatpush1.msra.mxu0 0.0
  %3058 = vmatprep.subr.mxu0 0.0
  %3059 = vmatpush1.msra.mxu0 0.0
  %3060 = vmatprep.subr.mxu0 0.0
  %3061 = vmatpush1.msra.mxu0 0.0
  %3062 = vmatprep.subr.mxu0 0.0
  %3063 = vmatpush1.msra.mxu0 0.0
  %3064 = vmatprep.subr.mxu0 0.0
  %3065 = vmatpush1.msra.mxu0 0.0
  %3066 = vmatprep.mubr.f32.mxu0 0.0
  %3067 = vmatmul.mubr.f32.gmra.mrb[0].mxu0 %v3000
  %v3068 = vpop.f32.mrb[0].mxu0
  %v3069 = vadd.f32 %v2997, %v3068
  %v3070 = vpop.f32.mrb[0].mxu0
  %3071 = vdwg.mxu0
  %v3072 = vtanh.pop %v3069
  %v3073 = vld [vmem:[%s23] sm:$0x1]
  %v3075 = vlaneseq
  %v3076 = vshrl.u32 %v3075, 7
  %v3077 = vsub.s32 0, %v3076
  %v3078 = vrot.slane %v3073, %v3077
  %v3080 = vmul.f32 %v3072, %v3078
  %vm3081 = vcmask 254976
  %v3082 = vsel %vm3081, %v3080, 0.0
  %3083 = vadd.xlane.f32.xlu0 %v3082
  %v3084 = vpop.xlane.xlu0 %3083
  %v3085 = vld [vmem:[#allocation2] sm:$0x1]
  %v3087 = vlaneseq
  %v3088 = vshrl.u32 %v3087, 7
  %v3089 = vsub.s32 0, %v3088
  %v3090 = vrot.slane %v3085, %v3089
  %v3092 = vadd.f32 %v3084, %v3090
  %v3093 = vxor.u32 %v3092, 2147483648
  %v3094 = vmul.f32 %v3093, 1.442695
  %v3095 = vpow.pop %v3094
  %v3096 = vadd.f32 %v3095, 1.0
  %v3097 = vrcp.pop %v3096
  %v3098 = vmul.f32 1.0, %v3097
  %vm3099 = vcmask 1024
  %3100 = vst.msk [vmem:[%s25] sm:$0x3] %vm3099, %v3098
  // Predicated region
  $region102: #{legal_model_forward.1} parent=0 // pred_check
    _
  $region103: #{legal_model_forward.1} parent=0 // pred_check_branch
    %3102 = sbr.rel (0) target = $region105
  $region104: #{legal_model_forward.1} parent=0 // pred_region
    _
  $region105: #{legal_model_forward.1} parent=0 // pred_fallthru
    _
  // Predicated region
  $region106: #{legal_model_forward.1} parent=0 // pred_check
    _
  $region107: #{legal_model_forward.1} parent=0 // pred_check_branch
    %3104 = sbr.rel (0) target = $region109
  $region108: #{legal_model_forward.1} parent=0 // pred_region
    _
  $region109: #{legal_model_forward.1} parent=0 // pred_fallthru
    _

</llo_original>
